<compile_context>
chip_gen: v5e
topology: v5e:2x2
jax: 0.10.0
libtpu: 0.0.40
codegen_flags: <defaults>
</compile_context>

<pallas_src>
import jax
import jax.numpy as jnp
from jax import lax
from jax.experimental import pallas as pl
from jax.experimental.pallas import tpu as pltpu

IN_FEATURES = 1 * 256 * 256   # 65536
HIDDEN = 64
N_OUTPUT = 1
TK_F32 = 16384                # W1 tile = 64*16384*4 B = 4 MiB  (2x buffered: 8 MiB)
TK_BF16 = 32768               # W1 tile = 64*32768*2 B = 4 MiB  (2x buffered: 8 MiB)


def _tail(h1_pre, b1, w2, b2, w3, b3):
    """Everything after the big x @ W1^T reduction (all sub-vreg sized)."""
    h1 = jnp.maximum(h1_pre + b1, 0.0)
    h2 = jnp.maximum(
        jnp.dot(h1, w2, preferred_element_type=jnp.float32) + b2, 0.0)
    do = h2 + h1                       # Dropout(0.2) is identity at inference
    return jnp.dot(do, w3, preferred_element_type=jnp.float32) + b3


def _l1_step(x_tile, w1t_tile):
    """One K-chunk of x @ W1^T with f32 accumulation (MXU, transposed RHS)."""
    if w1t_tile.dtype != jnp.float32:
        # Match the streamed-weight dtype; tiny (B, TK) in-VMEM cast, hidden
        # under the W1 DMA.  Products are exact in f32, accumulation is f32.
        x_tile = x_tile.astype(w1t_tile.dtype)
    return lax.dot_general(
        x_tile, w1t_tile,
        dimension_numbers=(((1,), (1,)), ((), ())),   # contract last dims
        preferred_element_type=jnp.float32)


# ---------------------------------------------------------------------------
# Variant A (default): fully fused single kernel — best on single-TC v5e/v6e.
# ---------------------------------------------------------------------------
def _fused_kernel(x_ref, w1t_ref, b1_ref, w2_ref, b2_ref, w3_ref, b3_ref,
                  out_ref, acc_ref):
    k = pl.program_id(0)

    @pl.when(k == 0)
    def _():
        acc_ref[...] = jnp.zeros_like(acc_ref)

    acc_ref[...] += _l1_step(x_ref[...], w1t_ref[...])

    @pl.when(k == pl.num_programs(0) - 1)
    def _():
        out_ref[...] = _tail(acc_ref[...], b1_ref[...], w2_ref[...],
                             b2_ref[...], w3_ref[...],
                             b3_ref[...]).astype(out_ref.dtype)


# ---------------------------------------------------------------------------
# Variant B (opt-in, dual-TC v7x): K split across a leading "parallel" axis.
# The tiny combine + tail is plain jnp in the wrapper (no second pallas_call).
# ---------------------------------------------------------------------------
def _l1_partial_kernel(x_ref, w1t_ref, partial_ref):
    k = pl.program_id(1)

    @pl.when(k == 0)
    def _():
        partial_ref[...] = jnp.zeros_like(partial_ref)

    partial_ref[...] += _l1_step(x_ref[...], w1t_ref[...])[None, :, :]


def net_forward(x, w1_t, b1, w2, b2, w3, b3, *, tk=None, num_k_splits=1):
    """Forward pass of Net.

    Args:
      x:    (B, 65536) float32 input.
      w1_t: (64, 65536) l1 weight in PyTorch (out, in) layout.  Store it in
            bf16 ONCE at parameter-load time to halve the dominant HBM stream;
            do not cast per call.
      b1:   (1, 64);  w2: (64, 64);  b2: (1, 64);  w3: (64, 1);  b3: (1, 1).
      tk:   reduction-axis tile (auto: 32768 for <=2-byte W1, else 16384).
      num_k_splits: 1 = fused single kernel (v5e/v6e default); 2 = split-K
            across a "parallel" grid axis (benchmark on v7x before enabling).
    """
    B, K = x.shape
    H, K_w = w1_t.shape
    assert K == IN_FEATURES, (K, IN_FEATURES)
    assert (H, K_w) == (HIDDEN, K), (w1_t.shape,)
    if tk is None:
        tk = TK_BF16 if w1_t.dtype.itemsize <= 2 else TK_F32
    assert K % num_k_splits == 0, "K must divide evenly across splits"
    k_per_split = K // num_k_splits
    assert k_per_split % tk == 0, "per-split K must be a multiple of tk"
    assert tk % 128 == 0, "tk must be lane-aligned"
    k_steps = k_per_split // tk

    bytes_accessed = (x.size * x.dtype.itemsize
                      + w1_t.size * w1_t.dtype.itemsize
                      + (b1.size + w2.size + b2.size + w3.size + b3.size) * 4
                      + B * N_OUTPUT * 4)
    cost = pl.CostEstimate(
        flops=2 * B * K * HIDDEN + 2 * B * HIDDEN * HIDDEN
              + 2 * B * HIDDEN * N_OUTPUT,
        transcendentals=0,
        bytes_accessed=bytes_accessed)

    if num_k_splits == 1:
        grid_spec = pltpu.PrefetchScalarGridSpec(
            num_scalar_prefetch=0,
            grid=(k_steps,),
            in_specs=[
                pl.BlockSpec((B, tk), lambda k: (0, k)),             # x tile
                pl.BlockSpec((HIDDEN, tk), lambda k: (0, k)),        # W1^T tile
                pl.BlockSpec((1, HIDDEN), lambda k: (0, 0)),         # b1
                pl.BlockSpec((HIDDEN, HIDDEN), lambda k: (0, 0)),    # W2
                pl.BlockSpec((1, HIDDEN), lambda k: (0, 0)),         # b2
                pl.BlockSpec((HIDDEN, N_OUTPUT), lambda k: (0, 0)),  # W3
                pl.BlockSpec((1, N_OUTPUT), lambda k: (0, 0)),       # b3
            ],
            out_specs=pl.BlockSpec((B, N_OUTPUT), lambda k: (0, 0)),
            scratch_shapes=[pltpu.VMEM((B, HIDDEN), jnp.float32)],
        )
        return pl.pallas_call(
            _fused_kernel,
            out_shape=jax.ShapeDtypeStruct((B, N_OUTPUT), jnp.float32),
            grid_spec=grid_spec,
            compiler_params=pltpu.CompilerParams(
                dimension_semantics=("arbitrary",)),
            cost_estimate=cost,
        )(x, w1_t, b1, w2, b2, w3, b3)

    # --- split-K: per-split partials from one kernel, combine + tail in jnp --
    grid_spec = pltpu.PrefetchScalarGridSpec(
        num_scalar_prefetch=0,
        grid=(num_k_splits, k_steps),
        in_specs=[
            pl.BlockSpec((B, tk), lambda s, k: (0, s * k_steps + k)),
            pl.BlockSpec((HIDDEN, tk), lambda s, k: (0, s * k_steps + k)),
        ],
        out_specs=pl.BlockSpec((1, B, HIDDEN), lambda s, k: (s, 0, 0)),
    )
    partial = pl.pallas_call(
        _l1_partial_kernel,
        out_shape=jax.ShapeDtypeStruct((num_k_splits, B, HIDDEN), jnp.float32),
        grid_spec=grid_spec,
        compiler_params=pltpu.CompilerParams(
            dimension_semantics=("parallel", "arbitrary")),
        cost_estimate=cost,
    )(x, w1_t)

    h1_pre = jnp.sum(partial, axis=0)          # (B, 64): tiny, XLA fuses this
    return _tail(h1_pre, b1, w2, b2, w3, b3)


def init_params(key):
    """Deterministic init mimicking nn.Linear's U(-1/sqrt(fan_in), +1/sqrt(fan_in)).

    w1 is kept in PyTorch's native (out_features, in_features) layout so the
    kernel's lane-dense (64, TK) tiling needs no transpose; w2/w3 are stored
    (in, out) since they are tiny and consumed as plain x @ W.
    """
    k1, k2, k3, k4, k5, k6 = jax.random.split(key, 6)

    def lin(kw, kb, fan_in, fan_out, w_shape):
        bound = 1.0 / jnp.sqrt(jnp.float32(fan_in))
        w = jax.random.uniform(kw, w_shape, jnp.float32, -bound, bound)
        b = jax.random.uniform(kb, (1, fan_out), jnp.float32, -bound, bound)
        return w, b

    w1_t, b1 = lin(k1, k2, IN_FEATURES, HIDDEN, (HIDDEN, IN_FEATURES))
    w2, b2 = lin(k3, k4, HIDDEN, HIDDEN, (HIDDEN, HIDDEN))
    w3, b3 = lin(k5, k6, HIDDEN, N_OUTPUT, (HIDDEN, N_OUTPUT))
    return w1_t, b1, w2, b2, w3, b3


def reference_forward(x, w1_t, b1, w2, b2, w3, b3):
    h1 = jnp.maximum(x @ w1_t.T + b1, 0.0)
    h2 = jnp.maximum(h1 @ w2 + b2, 0.0)
    do = h2 + h1   # Dropout(0.2) is identity in eval mode
    return do @ w3 + b3


if __name__ == "__main__":
    # TODO(synk): nn.Dropout training-mode random masking is not implemented;
    # inference (eval-mode identity) semantics only.
    key = jax.random.PRNGKey(0)
    kx, kp = jax.random.split(key)

    B = 2
    x = jax.random.normal(kx, (B, IN_FEATURES), jnp.float32)
    w1_t, b1, w2, b2, w3, b3 = init_params(kp)
    ref_f32 = reference_forward(x, w1_t, b1, w2, b2, w3, b3)

    # 1) f32 weights, fused single kernel (default; best on v5e/v6e).
    out_f32 = jax.block_until_ready(net_forward(x, w1_t, b1, w2, b2, w3, b3))
    assert out_f32.shape == (B, N_OUTPUT)
    assert jnp.allclose(out_f32, ref_f32, atol=1e-2, rtol=1e-2), (out_f32, ref_f32)

    # 2) Recommended deployment: W1 stored bf16 ONCE (outside the hot path),
    #    halving the dominant HBM stream.  Compare against the same quantized
    #    weights so only the in-kernel x-tile rounding differs.
    w1_t_bf16 = w1_t.astype(jnp.bfloat16)
    ref_q = reference_forward(x, w1_t_bf16.astype(jnp.float32), b1, w2, b2, w3, b3)
    out_bf16 = jax.block_until_ready(
        net_forward(x, w1_t_bf16, b1, w2, b2, w3, b3))
    assert jnp.allclose(out_bf16, ref_q, atol=3e-2, rtol=3e-2), (out_bf16, ref_q)

    # 3) Opt-in split-K path (dual-TC v7x): partial kernel + plain-JAX tail.
    out_split = jax.block_until_ready(
        net_forward(x, w1_t_bf16, b1, w2, b2, w3, b3, num_k_splits=2))
    assert jnp.allclose(out_split, ref_q, atol=3e-2, rtol=3e-2), (out_split, ref_q)

    print("KERNEL_OK")
</pallas_src>

<mosaic_0001>
module attributes {stable_mosaic.version = 11 : i64} {
  func.func @_fused_kernel(%arg0: i32, %arg1: memref<2x16384xf32, #tpu.memory_space<vmem>>, %arg2: memref<64x16384xf32, #tpu.memory_space<vmem>>, %arg3: memref<1x64xf32, #tpu.memory_space<vmem>>, %arg4: memref<64x64xf32, #tpu.memory_space<vmem>>, %arg5: memref<1x64xf32, #tpu.memory_space<vmem>>, %arg6: memref<64x1xf32, #tpu.memory_space<vmem>>, %arg7: memref<1x1xf32, #tpu.memory_space<vmem>>, %arg8: memref<2x1xf32, #tpu.memory_space<vmem>>, %arg9: memref<2x64xf32, #tpu.memory_space<vmem>>) attributes {dimension_semantics = [#tpu.dimension_semantics<arbitrary>], iteration_bounds = array<i64: 4>, scalar_prefetch = 0 : i64, scratch_operands = 1 : i64, tpu.core_type = #tpu.core_type<tc>, window_params = [{transform_indices = @transform_0, window_bounds = array<i64: 2, 16384>}, {transform_indices = @transform_1, window_bounds = array<i64: 64, 16384>}, {pipeline_mode = #tpu.pipeline_mode<synchronous>, transform_indices = @transform_2, window_bounds = array<i64: 1, 64>}, {pipeline_mode = #tpu.pipeline_mode<synchronous>, transform_indices = @transform_3, window_bounds = array<i64: 64, 64>}, {pipeline_mode = #tpu.pipeline_mode<synchronous>, transform_indices = @transform_4, window_bounds = array<i64: 1, 64>}, {pipeline_mode = #tpu.pipeline_mode<synchronous>, transform_indices = @transform_5, window_bounds = array<i64: 64, 1>}, {pipeline_mode = #tpu.pipeline_mode<synchronous>, transform_indices = @transform_6, window_bounds = array<i64: 1, 1>}, {pipeline_mode = #tpu.pipeline_mode<synchronous>, transform_indices = @transform_7, window_bounds = array<i64: 2, 1>}]} {
    %c0_i32 = arith.constant 0 : i32
    %0 = arith.cmpi eq, %arg0, %c0_i32 : i32
    %1 = arith.extui %0 : i1 to i32
    %c0_i32_0 = arith.constant 0 : i32
    %2 = arith.cmpi ne, %1, %c0_i32_0 : i32
    scf.if %2 {
      %cst_9 = arith.constant 0.000000e+00 : f32
      %12 = vector.broadcast %cst_9 : f32 to vector<2x64xf32>
      %c0_10 = arith.constant 0 : index
      %c0_11 = arith.constant 0 : index
      %13 = vector.load %arg9[%c0_10, %c0_11] : memref<2x64xf32, #tpu.memory_space<vmem>>, vector<2x64xf32>
      tpu.vector_store %arg9[%c0_10, %c0_11], %12 {strides = array<i32>} : memref<2x64xf32, #tpu.memory_space<vmem>>, vector<2x64xf32>,
    } else {
    }
    %c0 = arith.constant 0 : index
    %c0_1 = arith.constant 0 : index
    %3 = vector.load %arg9[%c0, %c0_1] : memref<2x64xf32, #tpu.memory_space<vmem>>, vector<2x64xf32>
    %c0_2 = arith.constant 0 : index
    %c0_3 = arith.constant 0 : index
    %4 = vector.load %arg1[%c0_2, %c0_3] : memref<2x16384xf32, #tpu.memory_space<vmem>>, vector<2x16384xf32>
    %c0_4 = arith.constant 0 : index
    %c0_5 = arith.constant 0 : index
    %5 = vector.load %arg2[%c0_4, %c0_5] : memref<64x16384xf32, #tpu.memory_space<vmem>>, vector<64x16384xf32>
    %cst = arith.constant dense<0.000000e+00> : vector<2x64xf32>
    %6 = tpu.matmul %4, %5, %cst {dimension_numbers = #tpu.dot_dimension_numbers<[1], [1], [0], [0], [0, 0, 1, 0], [], []>} : vector<2x16384xf32>, vector<64x16384xf32>, vector<2x64xf32> -> vector<2x64xf32>
    %7 = arith.addf %3, %6 : vector<2x64xf32>
    %c0_6 = arith.constant 0 : index
    %c0_7 = arith.constant 0 : index
    %8 = vector.load %arg9[%c0_6, %c0_7] : memref<2x64xf32, #tpu.memory_space<vmem>>, vector<2x64xf32>
    tpu.vector_store %arg9[%c0_6, %c0_7], %7 {strides = array<i32>} : memref<2x64xf32, #tpu.memory_space<vmem>>, vector<2x64xf32>,
    %c3_i32 = arith.constant 3 : i32
    %9 = arith.cmpi eq, %arg0, %c3_i32 : i32
    %10 = arith.extui %9 : i1 to i32
    %c0_i32_8 = arith.constant 0 : i32
    %11 = arith.cmpi ne, %10, %c0_i32_8 : i32
    scf.if %11 {
      %c0_9 = arith.constant 0 : index
      %c0_10 = arith.constant 0 : index
      %12 = vector.load %arg9[%c0_9, %c0_10] : memref<2x64xf32, #tpu.memory_space<vmem>>, vector<2x64xf32>
      %c0_11 = arith.constant 0 : index
      %c0_12 = arith.constant 0 : index
      %13 = vector.load %arg3[%c0_11, %c0_12] : memref<1x64xf32, #tpu.memory_space<vmem>>, vector<1x64xf32>
      %c0_13 = arith.constant 0 : index
      %c0_14 = arith.constant 0 : index
      %14 = vector.load %arg4[%c0_13, %c0_14] : memref<64x64xf32, #tpu.memory_space<vmem>>, vector<64x64xf32>
      %c0_15 = arith.constant 0 : index
      %c0_16 = arith.constant 0 : index
      %15 = vector.load %arg5[%c0_15, %c0_16] : memref<1x64xf32, #tpu.memory_space<vmem>>, vector<1x64xf32>
      %c0_17 = arith.constant 0 : index
      %c0_18 = arith.constant 0 : index
      %16 = vector.load %arg6[%c0_17, %c0_18] : memref<64x1xf32, #tpu.memory_space<vmem>>, vector<64x1xf32>
      %c0_19 = arith.constant 0 : index
      %c0_20 = arith.constant 0 : index
      %17 = vector.load %arg7[%c0_19, %c0_20] : memref<1x1xf32, #tpu.memory_space<vmem>>, vector<1x1xf32>
      %18 = vector.broadcast %13 : vector<1x64xf32> to vector<2x64xf32>
      %19 = arith.addf %12, %18 : vector<2x64xf32>
      %cst_21 = arith.constant 0.000000e+00 : f32
      %20 = vector.broadcast %cst_21 : f32 to vector<2x64xf32>
      %21 = arith.maximumf %19, %20 : vector<2x64xf32>
      %cst_22 = arith.constant dense<0.000000e+00> : vector<2x64xf32>
      %22 = tpu.matmul %21, %14, %cst_22 {dimension_numbers = #tpu.dot_dimension_numbers<[1], [0], [0], [1], [0, 0, 1, 1], [], []>} : vector<2x64xf32>, vector<64x64xf32>, vector<2x64xf32> -> vector<2x64xf32>
      %23 = vector.broadcast %15 : vector<1x64xf32> to vector<2x64xf32>
      %24 = arith.addf %22, %23 : vector<2x64xf32>
      %cst_23 = arith.constant 0.000000e+00 : f32
      %25 = vector.broadcast %cst_23 : f32 to vector<2x64xf32>
      %26 = arith.maximumf %24, %25 : vector<2x64xf32>
      %27 = arith.addf %26, %21 : vector<2x64xf32>
      %cst_24 = arith.constant dense<0.000000e+00> : vector<2x1xf32>
      %28 = tpu.matmul %27, %16, %cst_24 {dimension_numbers = #tpu.dot_dimension_numbers<[1], [0], [0], [1], [0, 0, 1, 1], [], []>} : vector<2x64xf32>, vector<64x1xf32>, vector<2x1xf32> -> vector<2x1xf32>
      %29 = vector.broadcast %17 : vector<1x1xf32> to vector<2x1xf32>
      %30 = arith.addf %28, %29 : vector<2x1xf32>
      %c0_25 = arith.constant 0 : index
      %c0_26 = arith.constant 0 : index
      %31 = vector.load %arg8[%c0_25, %c0_26] : memref<2x1xf32, #tpu.memory_space<vmem>>, vector<2x1xf32>
      tpu.vector_store %arg8[%c0_25, %c0_26], %30 {strides = array<i32>} : memref<2x1xf32, #tpu.memory_space<vmem>>, vector<2x1xf32>,
    } else {
    }
    return
  }
  func.func @transform_0(%arg0: i32) -> (i32, i32) {
    %c0_i32 = arith.constant 0 : i32
    %c0_i32_0 = arith.constant 0 : i32
    return %c0_i32, %arg0 : i32, i32
  }
  func.func @transform_1(%arg0: i32) -> (i32, i32) {
    %c0_i32 = arith.constant 0 : i32
    %c0_i32_0 = arith.constant 0 : i32
    return %c0_i32, %arg0 : i32, i32
  }
  func.func @transform_2(%arg0: i32) -> (i32, i32) {
    %c0_i32 = arith.constant 0 : i32
    %c0_i32_0 = arith.constant 0 : i32
    %c0_i32_1 = arith.constant 0 : i32
    return %c0_i32, %c0_i32_0 : i32, i32
  }
  func.func @transform_3(%arg0: i32) -> (i32, i32) {
    %c0_i32 = arith.constant 0 : i32
    %c0_i32_0 = arith.constant 0 : i32
    %c0_i32_1 = arith.constant 0 : i32
    return %c0_i32, %c0_i32_0 : i32, i32
  }
  func.func @transform_4(%arg0: i32) -> (i32, i32) {
    %c0_i32 = arith.constant 0 : i32
    %c0_i32_0 = arith.constant 0 : i32
    %c0_i32_1 = arith.constant 0 : i32
    return %c0_i32, %c0_i32_0 : i32, i32
  }
  func.func @transform_5(%arg0: i32) -> (i32, i32) {
    %c0_i32 = arith.constant 0 : i32
    %c0_i32_0 = arith.constant 0 : i32
    %c0_i32_1 = arith.constant 0 : i32
    return %c0_i32, %c0_i32_0 : i32, i32
  }
  func.func @transform_6(%arg0: i32) -> (i32, i32) {
    %c0_i32 = arith.constant 0 : i32
    %c0_i32_0 = arith.constant 0 : i32
    %c0_i32_1 = arith.constant 0 : i32
    return %c0_i32, %c0_i32_0 : i32, i32
  }
  func.func @transform_7(%arg0: i32) -> (i32, i32) {
    %c0_i32 = arith.constant 0 : i32
    %c0_i32_0 = arith.constant 0 : i32
    %c0_i32_1 = arith.constant 0 : i32
    return %c0_i32, %c0_i32_0 : i32, i32
  }
}

</mosaic_0001>

<llo_original>
// kernel: tpu_custom_call.1
$region0: #{tpu_custom_call.1}
  #allocation0 [shape = 'u32[]', space=smem, size = 0x4, offset = 0x4, fixed_abs, tag = 'smem constant byte address 0x4 - core index']
  #allocation1 [shape = 'u32[72,128]{1,0:T(1,128)}', space=vmem, size = 0x9000, scoped, tag = 'internal scratch']
  #allocation2 [shape = 'f32[2,64]{1,0:T(2,128)}', space=vmem, size = 0x400, scoped, tag = 'scratch operand']
  #allocation3 [shape = 'f32[1,1]{1,0:T(1,128)S(1)}', space=vmem, size = 0x200, scoped, tag = 'scoped memory for tpu_custom_call.1']
  %s0 = inlined_call_operand.hbm [shape: f32[2,65536], index: 0, kind: input, shape index: {}]
  %s1 = inlined_call_operand.hbm [shape: f32[64,65536], index: 1, kind: input, shape index: {}]
  %s2 = inlined_call_operand.hbm [shape: f32[1,64], index: 2, kind: input, shape index: {}]
  %s3 = inlined_call_operand.hbm [shape: f32[64,64], index: 3, kind: input, shape index: {}]
  %s4 = inlined_call_operand.hbm [shape: f32[1,64], index: 4, kind: input, shape index: {}]
  %s5 = inlined_call_operand.vmem [shape: f32[64,1], index: 5, kind: input, shape index: {}]
  %s6 = inlined_call_operand.<no memory space> [shape: f32[1,1], index: 6, kind: input, shape index: {}]
  %s7 = inlined_call_operand.vmem [shape: f32[2,1], index: 7, kind: output, shape index: {}]
  %s8 = sld [smem:[#allocation0]]
  $region89: #{tpu_custom_call.1} parent=0
    _
  %s10 = ssub.s32 1, %s8
  %s11 = scalar_select 0, %s10, %s8
  %v12 = vstv %s6
  %13 = vst [vmem:[#allocation3] sm:$0x1] %v12
  $region1: #{tpu_custom_call.1} parent=0
    #allocation4 [shape = 'u8[262144]{0}', space=vmem, size = 0x40000, scoped, tag = 'input window, operand 0']
    #allocation5 [shape = 's32[2]{0}', space=sflag, size = 0x8, scoped, tag = 'scoped memory for tpu_custom_call.1']
    #allocation6 [shape = 'u8[8388608]{0}', space=vmem, size = 0x800000, scoped, tag = 'input window, operand 1']
    #allocation7 [shape = 's32[2]{0}', space=sflag, size = 0x8, scoped, tag = 'scoped memory for tpu_custom_call.1']
    #allocation8 [shape = 'u8[512]{0}', space=vmem, size = 0x400, scoped, tag = 'input window, operand 2, single buffered']
    #allocation9 [shape = 'u8[32768]{0}', space=vmem, size = 0x8000, scoped, tag = 'input window, operand 3, single buffered']
    #allocation10 [shape = 's32[1]{0}', space=sflag, size = 0x4, scoped, tag = 'scoped memory for tpu_custom_call.1']
    #allocation11 [shape = 'u8[512]{0}', space=vmem, size = 0x400, scoped, tag = 'input window, operand 4, single buffered']
    %14 = vsyncpa [#allocation5], 0
    %s15 = scalar_lea.sflag [#allocation5], 1
    %16 = vsyncpa %s15, 0
    %17 = vsyncpa [#allocation7], 0
    %s18 = scalar_lea.sflag [#allocation7], 1
    %19 = vsyncpa %s18, 0
    %20 = vsyncpa [#allocation10], 0
    loop: start=0, step=1, limit=6
    $region2: #{tpu_custom_call.1} parent=1 // loop_pre_header
      _
    $region3: #{tpu_custom_call.1} parent=1 // loop_header
      %s22 = sphi 0, %s26
      %p23 = scmp.ge.s32.totalorder %s22, 6
      %s32 = sphi 0, %s34
      %s35 = sphi 0, %s32
      %s36 = sphi 0, %s35
      %s52 = sphi 0, %s36
      %s58 = sphi 0, %s60
      %s61 = sphi 0, %s58
      %s62 = sphi 0, %s61
      %s78 = sphi 0, %s62
      %s82 = sphi 0, %s82
      %s84 = sphi 0, %s82
      %s85 = sphi 0, %s84
      %s99 = sphi 0, %s85
      %s103 = sphi 0, %s103
      %s105 = sphi 0, %s103
      %s106 = sphi 0, %s105
      %s120 = sphi 0, %s106
      %s124 = sphi 0, %s124
      %s126 = sphi 0, %s124
      %s127 = sphi 0, %s126
      %s141 = sphi 0, %s127
      %s145 = sphi 0, %s145
      %s147 = sphi 0, %s145
      %s148 = sphi 0, %s147
      %s162 = sphi 0, %s148
      %s166 = sphi 0, %s166
      %s168 = sphi 0, %s166
      %s169 = sphi 0, %s168
      %s183 = sphi 0, %s169
      %s187 = sphi 0, %s187
      %s189 = sphi 0, %s187
      %s190 = sphi 0, %s189
      %s204 = sphi 0, %s190
    $region4: #{tpu_custom_call.1} parent=1 // loop_header_branch
      %25 = sbr.rel (%p23) target = $region8
    $region5: #{tpu_custom_call.1} parent=1 // loop_body
      %s27 = ssub.s32 %s22, 1
      %s28 = ssub.s32 %s22, 2
      %s29 = sadd.s32 %s22, 1
      %s30 = ssub.s32 %s22, %s29
      %p31 = scmp.eq.s32.totalorder %s30, 0
      %s33 = sadd.s32 %s32, 1
      %s34 = scalar_select %p31, %s32, %s33
      %p37 = pneg %p31
      %p38 = scmp.eq.s32.totalorder %s22, 3
      %p39 = por %p37, %p38
      %p40 = scmp.ne.s32.totalorder %s32, %s35
      %p41 = scmp.eq.s32.totalorder %s22, 0
      %p42 = por %p40, %p41
      %p43 = scmp.ne.s32.totalorder %s32, %s35
      %p44 = scmp.eq.s32.totalorder %s27, 3
      %p45 = por %p43, %p44
      %p46 = scmp.ne.s32.totalorder %s35, %s36
      %p47 = scmp.eq.s32.totalorder %s27, 0
      %p48 = por %p46, %p47
      %p49 = scmp.ne.s32.totalorder %s35, %s36
      %p50 = scmp.eq.s32.totalorder %s28, 3
      %p51 = por %p49, %p50
      %p53 = scmp.ne.s32.totalorder %s36, %s52
      %p54 = scmp.eq.s32.totalorder %s28, 0
      %p55 = por %p53, %p54
      %s56 = ssub.s32 %s22, %s29
      %p57 = scmp.eq.s32.totalorder %s56, 0
      %s59 = sadd.s32 %s58, 1
      %s60 = scalar_select %p57, %s58, %s59
      %p63 = pneg %p57
      %p64 = scmp.eq.s32.totalorder %s22, 3
      %p65 = por %p63, %p64
      %p66 = scmp.ne.s32.totalorder %s58, %s61
      %p67 = scmp.eq.s32.totalorder %s22, 0
      %p68 = por %p66, %p67
      %p69 = scmp.ne.s32.totalorder %s58, %s61
      %p70 = scmp.eq.s32.totalorder %s27, 3
      %p71 = por %p69, %p70
      %p72 = scmp.ne.s32.totalorder %s61, %s62
      %p73 = scmp.eq.s32.totalorder %s27, 0
      %p74 = por %p72, %p73
      %p75 = scmp.ne.s32.totalorder %s61, %s62
      %p76 = scmp.eq.s32.totalorder %s28, 3
      %p77 = por %p75, %p76
      %p79 = scmp.ne.s32.totalorder %s62, %s78
      %p80 = scmp.eq.s32.totalorder %s28, 0
      %p81 = por %p79, %p80
      %s83 = sadd.s32 %s82, 1
      %p86 = scmp.eq.s32.totalorder %s22, 3
      %p87 = scmp.ne.s32.totalorder %s82, %s84
      %p88 = scmp.eq.s32.totalorder %s22, 0
      %p89 = por %p87, %p88
      %p90 = scmp.ne.s32.totalorder %s82, %s84
      %p91 = scmp.eq.s32.totalorder %s27, 3
      %p92 = por %p90, %p91
      %p93 = scmp.ne.s32.totalorder %s84, %s85
      %p94 = scmp.eq.s32.totalorder %s27, 0
      %p95 = por %p93, %p94
      %p96 = scmp.ne.s32.totalorder %s84, %s85
      %p97 = scmp.eq.s32.totalorder %s28, 3
      %p98 = por %p96, %p97
      %p100 = scmp.ne.s32.totalorder %s85, %s99
      %p101 = scmp.eq.s32.totalorder %s28, 0
      %p102 = por %p100, %p101
      %s104 = sadd.s32 %s103, 1
      %p107 = scmp.eq.s32.totalorder %s22, 3
      %p108 = scmp.ne.s32.totalorder %s103, %s105
      %p109 = scmp.eq.s32.totalorder %s22, 0
      %p110 = por %p108, %p109
      %p111 = scmp.ne.s32.totalorder %s103, %s105
      %p112 = scmp.eq.s32.totalorder %s27, 3
      %p113 = por %p111, %p112
      %p114 = scmp.ne.s32.totalorder %s105, %s106
      %p115 = scmp.eq.s32.totalorder %s27, 0
      %p116 = por %p114, %p115
      %p117 = scmp.ne.s32.totalorder %s105, %s106
      %p118 = scmp.eq.s32.totalorder %s28, 3
      %p119 = por %p117, %p118
      %p121 = scmp.ne.s32.totalorder %s106, %s120
      %p122 = scmp.eq.s32.totalorder %s28, 0
      %p123 = por %p121, %p122
      %s125 = sadd.s32 %s124, 1
      %p128 = scmp.eq.s32.totalorder %s22, 3
      %p129 = scmp.ne.s32.totalorder %s124, %s126
      %p130 = scmp.eq.s32.totalorder %s22, 0
      %p131 = por %p129, %p130
      %p132 = scmp.ne.s32.totalorder %s124, %s126
      %p133 = scmp.eq.s32.totalorder %s27, 3
      %p134 = por %p132, %p133
      %p135 = scmp.ne.s32.totalorder %s126, %s127
      %p136 = scmp.eq.s32.totalorder %s27, 0
      %p137 = por %p135, %p136
      %p138 = scmp.ne.s32.totalorder %s126, %s127
      %p139 = scmp.eq.s32.totalorder %s28, 3
      %p140 = por %p138, %p139
      %p142 = scmp.ne.s32.totalorder %s127, %s141
      %p143 = scmp.eq.s32.totalorder %s28, 0
      %p144 = por %p142, %p143
      %s146 = sadd.s32 %s145, 1
      %p149 = scmp.eq.s32.totalorder %s22, 3
      %p150 = scmp.ne.s32.totalorder %s145, %s147
      %p151 = scmp.eq.s32.totalorder %s22, 0
      %p152 = por %p150, %p151
      %p153 = scmp.ne.s32.totalorder %s145, %s147
      %p154 = scmp.eq.s32.totalorder %s27, 3
      %p155 = por %p153, %p154
      %p156 = scmp.ne.s32.totalorder %s147, %s148
      %p157 = scmp.eq.s32.totalorder %s27, 0
      %p158 = por %p156, %p157
      %p159 = scmp.ne.s32.totalorder %s147, %s148
      %p160 = scmp.eq.s32.totalorder %s28, 3
      %p161 = por %p159, %p160
      %p163 = scmp.ne.s32.totalorder %s148, %s162
      %p164 = scmp.eq.s32.totalorder %s28, 0
      %p165 = por %p163, %p164
      %s167 = sadd.s32 %s166, 1
      %p170 = scmp.eq.s32.totalorder %s22, 3
      %p171 = scmp.ne.s32.totalorder %s166, %s168
      %p172 = scmp.eq.s32.totalorder %s22, 0
      %p173 = por %p171, %p172
      %p174 = scmp.ne.s32.totalorder %s166, %s168
      %p175 = scmp.eq.s32.totalorder %s27, 3
      %p176 = por %p174, %p175
      %p177 = scmp.ne.s32.totalorder %s168, %s169
      %p178 = scmp.eq.s32.totalorder %s27, 0
      %p179 = por %p177, %p178
      %p180 = scmp.ne.s32.totalorder %s168, %s169
      %p181 = scmp.eq.s32.totalorder %s28, 3
      %p182 = por %p180, %p181
      %p184 = scmp.ne.s32.totalorder %s169, %s183
      %p185 = scmp.eq.s32.totalorder %s28, 0
      %p186 = por %p184, %p185
      %s188 = sadd.s32 %s187, 1
      %p191 = scmp.eq.s32.totalorder %s22, 3
      %p192 = scmp.ne.s32.totalorder %s187, %s189
      %p193 = scmp.eq.s32.totalorder %s22, 0
      %p194 = por %p192, %p193
      %p195 = scmp.ne.s32.totalorder %s187, %s189
      %p196 = scmp.eq.s32.totalorder %s27, 3
      %p197 = por %p195, %p196
      %p198 = scmp.ne.s32.totalorder %s189, %s190
      %p199 = scmp.eq.s32.totalorder %s27, 0
      %p200 = por %p198, %p199
      %p201 = scmp.ne.s32.totalorder %s189, %s190
      %p202 = scmp.eq.s32.totalorder %s28, 3
      %p203 = por %p201, %p202
      %p205 = scmp.ne.s32.totalorder %s190, %s204
      %p206 = scmp.eq.s32.totalorder %s28, 0
      %p207 = por %p205, %p206
      %p208 = scmp.le.s32.totalorder 1, %s22
      %p209 = scmp.lt.s32.totalorder %s22, 5
      %p210 = pnand %p208, %p209
      %p211 = pneg %p210
      // Predicated region
      $region9: #{tpu_custom_call.1} parent=5 // pred_check
        _
      $region10: #{tpu_custom_call.1} parent=5 // pred_check_branch
        %213 = sbr.rel (%p210) target = $region12
      $region11: #{tpu_custom_call.1} parent=5 // pred_region
        %s214 = ssub.s32 %s22, 1
        // Predicated region
        $region13: #{tpu_custom_call.1} parent=11 // pred_check
          %p215 = pneg %p95
        $region14: #{tpu_custom_call.1} parent=11 // pred_check_branch
          %217 = sbr.rel (%p215) target = $region16
        $region15: #{tpu_custom_call.1} parent=11 // pred_region
          %219 = vsyncadd [#allocation7], 0
          %s221 = sshll.u32 %s2, 4
          %s222 = int_to_ptr.hbm [resolvable:$true] %s221
          %s223 = sshll.u32 [#allocation8], 4
          %s224 = int_to_ptr.vmem [resolvable:$true] %s223
          %226 = dma.hbm_to_vmem [thread:$0]  %s222, 16, %s224, [#allocation7]
        $region16: #{tpu_custom_call.1} parent=11 // pred_fallthru
          _
        // Predicated region
        $region17: #{tpu_custom_call.1} parent=11 // pred_check
          %p227 = pneg %p116
        $region18: #{tpu_custom_call.1} parent=11 // pred_check_branch
          %229 = sbr.rel (%p227) target = $region20
        $region19: #{tpu_custom_call.1} parent=11 // pred_region
          %231 = vsyncadd [#allocation10], 0
          %s232 = sshll.u32 %s3, 4
          %s233 = int_to_ptr.hbm [resolvable:$true] %s232
          %s234 = sshll.u32 [#allocation9], 4
          %s235 = int_to_ptr.vmem [resolvable:$true] %s234
          %240 = dma.hbm_to_vmem [thread:$0]  %s233, 1024, %s235, [#allocation10], 128, 128, 8
        $region20: #{tpu_custom_call.1} parent=11 // pred_fallthru
          _
        // Predicated region
        $region21: #{tpu_custom_call.1} parent=11 // pred_check
          %p241 = pneg %p137
        $region22: #{tpu_custom_call.1} parent=11 // pred_check_branch
          %243 = sbr.rel (%p241) target = $region24
        $region23: #{tpu_custom_call.1} parent=11 // pred_region
          %245 = vsyncadd [#allocation10], 0
          %s247 = sshll.u32 %s4, 4
          %s248 = int_to_ptr.hbm [resolvable:$true] %s247
          %s249 = sshll.u32 [#allocation11], 4
          %s250 = int_to_ptr.vmem [resolvable:$true] %s249
          %252 = dma.hbm_to_vmem [thread:$0]  %s248, 16, %s250, [#allocation10]
        $region24: #{tpu_custom_call.1} parent=11 // pred_fallthru
          _
        // Predicated region
        $region25: #{tpu_custom_call.1} parent=11 // pred_check
          %p253 = pneg %p158
        $region26: #{tpu_custom_call.1} parent=11 // pred_check_branch
          %255 = sbr.rel (%p253) target = $region28
        $region27: #{tpu_custom_call.1} parent=11 // pred_region
          _
        $region28: #{tpu_custom_call.1} parent=11 // pred_fallthru
          _
        // Predicated region
        $region29: #{tpu_custom_call.1} parent=11 // pred_check
          %p256 = pneg %p179
        $region30: #{tpu_custom_call.1} parent=11 // pred_check_branch
          %258 = sbr.rel (%p256) target = $region32
        $region31: #{tpu_custom_call.1} parent=11 // pred_region
          _
        $region32: #{tpu_custom_call.1} parent=11 // pred_fallthru
          _
      $region12: #{tpu_custom_call.1} parent=5 // pred_fallthru
        _
      %p259 = scmp.lt.s32.totalorder %s22, 4
      // Predicated region
      $region33: #{tpu_custom_call.1} parent=5 // pred_check
        %p260 = pneg %p259
      $region34: #{tpu_custom_call.1} parent=5 // pred_check_branch
        %262 = sbr.rel (%p260) target = $region36
      $region35: #{tpu_custom_call.1} parent=5 // pred_region
        // Predicated region
        $region37: #{tpu_custom_call.1} parent=35 // pred_check
          %p263 = pneg %p42
        $region38: #{tpu_custom_call.1} parent=35 // pred_check_branch
          %265 = sbr.rel (%p263) target = $region40
        $region39: #{tpu_custom_call.1} parent=35 // pred_region
          %s266 = sand.u32 %s32, 1
          %s267 = scalar_lea.sflag [#allocation5], %s266
          %s268 = sand.u32 %s32, 1
          %s269 = smul.addr %s268, 256
          %s270 = scalar_lea.vmem [#allocation4], %s269
          %s271 = smul.u32 128, %s22
          %273 = vsyncadd %s267, 0
          %s274 = smul.addr %s271, 2
          %s275 = scalar_lea.hbm %s0, %s274
          %s277 = sshll.u32 %s275, 4
          %s278 = int_to_ptr.hbm [resolvable:$true] %s277
          %s279 = sshll.u32 %s270, 4
          %s280 = int_to_ptr.vmem [resolvable:$true] %s279
          %282 = dma.hbm_to_vmem [thread:$0]  %s278, 4096, %s280, %s267
        $region40: #{tpu_custom_call.1} parent=35 // pred_fallthru
          _
        // Predicated region
        $region41: #{tpu_custom_call.1} parent=35 // pred_check
          %p283 = pneg %p68
        $region42: #{tpu_custom_call.1} parent=35 // pred_check_branch
          %285 = sbr.rel (%p283) target = $region44
        $region43: #{tpu_custom_call.1} parent=35 // pred_region
          %s286 = sand.u32 %s22, 1
          %s287 = scalar_lea.sflag [#allocation7], %s286
          %s288 = sand.u32 %s58, 1
          %s289 = smul.addr %s288, 8192
          %s290 = scalar_lea.vmem [#allocation6], %s289
          %s291 = smul.u32 128, %s22
          %293 = vsyncadd %s287, 0
          %s294 = smul.addr %s291, 8
          %s295 = scalar_lea.hbm %s1, %s294
          %s296 = sshll.u32 %s295, 4
          %s297 = int_to_ptr.hbm [resolvable:$true] %s296
          %s298 = sshll.u32 %s290, 4
          %s299 = int_to_ptr.vmem [resolvable:$true] %s298
          %304 = dma.hbm_to_vmem [thread:$0]  %s297, 131072, %s299, %s287, 65536, 16384, 1024
        $region44: #{tpu_custom_call.1} parent=35 // pred_fallthru
          _
      $region36: #{tpu_custom_call.1} parent=5 // pred_fallthru
        _
      %p305 = scmp.le.s32.totalorder 1, %s22
      %p306 = scmp.lt.s32.totalorder %s22, 5
      %p307 = pnand %p305, %p306
      %p308 = pneg %p307
      // Predicated region
      $region45: #{tpu_custom_call.1} parent=5 // pred_check
        _
      $region46: #{tpu_custom_call.1} parent=5 // pred_check_branch
        %310 = sbr.rel (%p307) target = $region48
      $region47: #{tpu_custom_call.1} parent=5 // pred_region
        %s311 = ssub.s32 %s22, 1
        %s312 = sand.u32 %s35, 1
        %s313 = scalar_lea.sflag [#allocation5], %s312
        %s314 = sand.u32 %s35, 1
        %s315 = smul.addr %s314, 256
        %s316 = scalar_lea.vmem [#allocation4], %s315
        // Predicated region
        $region49: #{tpu_custom_call.1} parent=47 // pred_check
          %p317 = pneg %p48
        $region50: #{tpu_custom_call.1} parent=47 // pred_check_branch
          %319 = sbr.rel (%p317) target = $region52
        $region51: #{tpu_custom_call.1} parent=47 // pred_region
          %321 = dma.done %s313, 4096
        $region52: #{tpu_custom_call.1} parent=47 // pred_fallthru
          _
        %s322 = sand.u32 %s27, 1
        %s323 = scalar_lea.sflag [#allocation7], %s322
        %s324 = sand.u32 %s61, 1
        %s325 = smul.addr %s324, 8192
        %s326 = scalar_lea.vmem [#allocation6], %s325
        // Predicated region
        $region53: #{tpu_custom_call.1} parent=47 // pred_check
          %p327 = pneg %p74
        $region54: #{tpu_custom_call.1} parent=47 // pred_check_branch
          %329 = sbr.rel (%p327) target = $region56
        $region55: #{tpu_custom_call.1} parent=47 // pred_region
          %331 = dma.done %s323, 131072
        $region56: #{tpu_custom_call.1} parent=47 // pred_fallthru
          _
        // Predicated region
        $region57: #{tpu_custom_call.1} parent=47 // pred_check
          %p332 = pneg %p95
        $region58: #{tpu_custom_call.1} parent=47 // pred_check_branch
          %334 = sbr.rel (%p332) target = $region60
        $region59: #{tpu_custom_call.1} parent=47 // pred_region
          %336 = dma.done [#allocation7], 16
        $region60: #{tpu_custom_call.1} parent=47 // pred_fallthru
          _
        // Predicated region
        $region61: #{tpu_custom_call.1} parent=47 // pred_check
          %p337 = pneg %p116
        $region62: #{tpu_custom_call.1} parent=47 // pred_check_branch
          %339 = sbr.rel (%p337) target = $region64
        $region63: #{tpu_custom_call.1} parent=47 // pred_region
          %341 = dma.done [#allocation10], 1024
        $region64: #{tpu_custom_call.1} parent=47 // pred_fallthru
          _
        // Predicated region
        $region65: #{tpu_custom_call.1} parent=47 // pred_check
          %p342 = pneg %p137
        $region66: #{tpu_custom_call.1} parent=47 // pred_check_branch
          %344 = sbr.rel (%p342) target = $region68
        $region67: #{tpu_custom_call.1} parent=47 // pred_region
          %346 = dma.done [#allocation10], 16
        $region68: #{tpu_custom_call.1} parent=47 // pred_fallthru
          _
        %s347 = sand.u32 %s35, 1
        %s348 = scalar_lea.sflag [#allocation5], %s347
        %s349 = sand.u32 %s35, 1
        %s350 = smul.addr %s349, 256
        %s351 = scalar_lea.vmem [#allocation4], %s350
        %p352 = pneg %p48
        %p353 = pneg %p45
        %s354 = sand.u32 %s27, 1
        %s355 = scalar_lea.sflag [#allocation7], %s354
        %s356 = sand.u32 %s61, 1
        %s357 = smul.addr %s356, 8192
        %s358 = scalar_lea.vmem [#allocation6], %s357
        %p359 = pneg %p74
        %p360 = pneg %p71
        %p361 = pneg %p95
        %p362 = pneg %p92
        %p363 = pneg %p116
        %p364 = pneg %p113
        %p365 = pneg %p137
        %p366 = pneg %p134
        %p367 = pneg %p158
        %p368 = pneg %p155
        %p369 = pneg %p179
        %p370 = pneg %p176
        %p371 = pneg %p200
        %p372 = pneg %p197
        %s373 = smul.u32 128, %s27
        %s374 = smul.u32 128, %s27
        %p375 = scmp.eq.s32.totalorder %s27, 0
        // Predicated region
        $region69: #{tpu_custom_call.1} parent=47 // pred_check
          %p376 = pneg %p375
        $region70: #{tpu_custom_call.1} parent=47 // pred_check_branch
          %378 = sbr.rel (%p376) target = $region72
        $region71: #{tpu_custom_call.1} parent=47 // pred_region
          %vm379 = vcmask 517120
          %380 = vst.msk [vmem:[#allocation2] sm:$0x3] %vm379, 0.0
        $region72: #{tpu_custom_call.1} parent=47 // pred_fallthru
          _
        %v381 = vld [vmem:[#allocation2] sm:$0x3]
        %v382 = vld [vmem:[%s316] sm:$0xff]
        %v383 = vld [vmem:[%s316 + $0x8] sm:$0xff]
        %v384 = vld [vmem:[%s316 + $0x10] sm:$0xff]
        %v385 = vld [vmem:[%s316 + $0x18] sm:$0xff]
        %v386 = vld [vmem:[%s316 + $0x20] sm:$0xff]
        %v387 = vld [vmem:[%s316 + $0x28] sm:$0xff]
        %v388 = vld [vmem:[%s316 + $0x30] sm:$0xff]
        %v389 = vld [vmem:[%s316 + $0x38] sm:$0xff]
        %v390 = vld [vmem:[%s316 + $0x40] sm:$0xff]
        %v391 = vld [vmem:[%s316 + $0x48] sm:$0xff]
        %v392 = vld [vmem:[%s316 + $0x50] sm:$0xff]
        %v393 = vld [vmem:[%s316 + $0x58] sm:$0xff]
        %v394 = vld [vmem:[%s316 + $0x60] sm:$0xff]
        %v395 = vld [vmem:[%s316 + $0x68] sm:$0xff]
        %v396 = vld [vmem:[%s316 + $0x70] sm:$0xff]
        %v397 = vld [vmem:[%s316 + $0x78] sm:$0xff]
        %v398 = vld [vmem:[%s316 + $0x80] sm:$0xff]
        %v399 = vld [vmem:[%s316 + $0x88] sm:$0xff]
        %v400 = vld [vmem:[%s316 + $0x90] sm:$0xff]
        %v401 = vld [vmem:[%s316 + $0x98] sm:$0xff]
        %v402 = vld [vmem:[%s316 + $0xa0] sm:$0xff]
        %v403 = vld [vmem:[%s316 + $0xa8] sm:$0xff]
        %v404 = vld [vmem:[%s316 + $0xb0] sm:$0xff]
        %v405 = vld [vmem:[%s316 + $0xb8] sm:$0xff]
        %v406 = vld [vmem:[%s316 + $0xc0] sm:$0xff]
        %v407 = vld [vmem:[%s316 + $0xc8] sm:$0xff]
        %v408 = vld [vmem:[%s316 + $0xd0] sm:$0xff]
        %v409 = vld [vmem:[%s316 + $0xd8] sm:$0xff]
        %v410 = vld [vmem:[%s316 + $0xe0] sm:$0xff]
        %v411 = vld [vmem:[%s316 + $0xe8] sm:$0xff]
        %v412 = vld [vmem:[%s316 + $0xf0] sm:$0xff]
        %v413 = vld [vmem:[%s316 + $0xf8] sm:$0xff]
        %v414 = vld [vmem:[%s326] sm:$0xff]
        %v415 = vld [vmem:[%s326 + $0x8] sm:$0xff]
        %v416 = vld [vmem:[%s326 + $0x10] sm:$0xff]
        %v417 = vld [vmem:[%s326 + $0x18] sm:$0xff]
        %v418 = vld [vmem:[%s326 + $0x20] sm:$0xff]
        %v419 = vld [vmem:[%s326 + $0x28] sm:$0xff]
        %v420 = vld [vmem:[%s326 + $0x30] sm:$0xff]
        %v421 = vld [vmem:[%s326 + $0x38] sm:$0xff]
        %v422 = vld [vmem:[%s326 + $0x40] sm:$0xff]
        %v423 = vld [vmem:[%s326 + $0x48] sm:$0xff]
        %v424 = vld [vmem:[%s326 + $0x50] sm:$0xff]
        %v425 = vld [vmem:[%s326 + $0x58] sm:$0xff]
        %v426 = vld [vmem:[%s326 + $0x60] sm:$0xff]
        %v427 = vld [vmem:[%s326 + $0x68] sm:$0xff]
        %v428 = vld [vmem:[%s326 + $0x70] sm:$0xff]
        %v429 = vld [vmem:[%s326 + $0x78] sm:$0xff]
        %v430 = vld [vmem:[%s326 + $0x80] sm:$0xff]
        %v431 = vld [vmem:[%s326 + $0x88] sm:$0xff]
        %v432 = vld [vmem:[%s326 + $0x90] sm:$0xff]
        %v433 = vld [vmem:[%s326 + $0x98] sm:$0xff]
        %v434 = vld [vmem:[%s326 + $0xa0] sm:$0xff]
        %v435 = vld [vmem:[%s326 + $0xa8] sm:$0xff]
        %v436 = vld [vmem:[%s326 + $0xb0] sm:$0xff]
        %v437 = vld [vmem:[%s326 + $0xb8] sm:$0xff]
        %v438 = vld [vmem:[%s326 + $0xc0] sm:$0xff]
        %v439 = vld [vmem:[%s326 + $0xc8] sm:$0xff]
        %v440 = vld [vmem:[%s326 + $0xd0] sm:$0xff]
        %v441 = vld [vmem:[%s326 + $0xd8] sm:$0xff]
        %v442 = vld [vmem:[%s326 + $0xe0] sm:$0xff]
        %v443 = vld [vmem:[%s326 + $0xe8] sm:$0xff]
        %v444 = vld [vmem:[%s326 + $0xf0] sm:$0xff]
        %v445 = vld [vmem:[%s326 + $0xf8] sm:$0xff]
        %v446 = vld [vmem:[%s326 + $0x100] sm:$0xff]
        %v447 = vld [vmem:[%s326 + $0x108] sm:$0xff]
        %v448 = vld [vmem:[%s326 + $0x110] sm:$0xff]
        %v449 = vld [vmem:[%s326 + $0x118] sm:$0xff]
        %v450 = vld [vmem:[%s326 + $0x120] sm:$0xff]
        %v451 = vld [vmem:[%s326 + $0x128] sm:$0xff]
        %v452 = vld [vmem:[%s326 + $0x130] sm:$0xff]
        %v453 = vld [vmem:[%s326 + $0x138] sm:$0xff]
        %v454 = vld [vmem:[%s326 + $0x140] sm:$0xff]
        %v455 = vld [vmem:[%s326 + $0x148] sm:$0xff]
        %v456 = vld [vmem:[%s326 + $0x150] sm:$0xff]
        %v457 = vld [vmem:[%s326 + $0x158] sm:$0xff]
        %v458 = vld [vmem:[%s326 + $0x160] sm:$0xff]
        %v459 = vld [vmem:[%s326 + $0x168] sm:$0xff]
        %v460 = vld [vmem:[%s326 + $0x170] sm:$0xff]
        %v461 = vld [vmem:[%s326 + $0x178] sm:$0xff]
        %v462 = vld [vmem:[%s326 + $0x180] sm:$0xff]
        %v463 = vld [vmem:[%s326 + $0x188] sm:$0xff]
        %v464 = vld [vmem:[%s326 + $0x190] sm:$0xff]
        %v465 = vld [vmem:[%s326 + $0x198] sm:$0xff]
        %v466 = vld [vmem:[%s326 + $0x1a0] sm:$0xff]
        %v467 = vld [vmem:[%s326 + $0x1a8] sm:$0xff]
        %v468 = vld [vmem:[%s326 + $0x1b0] sm:$0xff]
        %v469 = vld [vmem:[%s326 + $0x1b8] sm:$0xff]
        %v470 = vld [vmem:[%s326 + $0x1c0] sm:$0xff]
        %v471 = vld [vmem:[%s326 + $0x1c8] sm:$0xff]
        %v472 = vld [vmem:[%s326 + $0x1d0] sm:$0xff]
        %v473 = vld [vmem:[%s326 + $0x1d8] sm:$0xff]
        %v474 = vld [vmem:[%s326 + $0x1e0] sm:$0xff]
        %v475 = vld [vmem:[%s326 + $0x1e8] sm:$0xff]
        %v476 = vld [vmem:[%s326 + $0x1f0] sm:$0xff]
        %v477 = vld [vmem:[%s326 + $0x1f8] sm:$0xff]
        %v478 = vld [vmem:[%s326 + $0x200] sm:$0xff]
        %v479 = vld [vmem:[%s326 + $0x208] sm:$0xff]
        %v480 = vld [vmem:[%s326 + $0x210] sm:$0xff]
        %v481 = vld [vmem:[%s326 + $0x218] sm:$0xff]
        %v482 = vld [vmem:[%s326 + $0x220] sm:$0xff]
        %v483 = vld [vmem:[%s326 + $0x228] sm:$0xff]
        %v484 = vld [vmem:[%s326 + $0x230] sm:$0xff]
        %v485 = vld [vmem:[%s326 + $0x238] sm:$0xff]
        %v486 = vld [vmem:[%s326 + $0x240] sm:$0xff]
        %v487 = vld [vmem:[%s326 + $0x248] sm:$0xff]
        %v488 = vld [vmem:[%s326 + $0x250] sm:$0xff]
        %v489 = vld [vmem:[%s326 + $0x258] sm:$0xff]
        %v490 = vld [vmem:[%s326 + $0x260] sm:$0xff]
        %v491 = vld [vmem:[%s326 + $0x268] sm:$0xff]
        %v492 = vld [vmem:[%s326 + $0x270] sm:$0xff]
        %v493 = vld [vmem:[%s326 + $0x278] sm:$0xff]
        %v494 = vld [vmem:[%s326 + $0x280] sm:$0xff]
        %v495 = vld [vmem:[%s326 + $0x288] sm:$0xff]
        %v496 = vld [vmem:[%s326 + $0x290] sm:$0xff]
        %v497 = vld [vmem:[%s326 + $0x298] sm:$0xff]
        %v498 = vld [vmem:[%s326 + $0x2a0] sm:$0xff]
        %v499 = vld [vmem:[%s326 + $0x2a8] sm:$0xff]
        %v500 = vld [vmem:[%s326 + $0x2b0] sm:$0xff]
        %v501 = vld [vmem:[%s326 + $0x2b8] sm:$0xff]
        %v502 = vld [vmem:[%s326 + $0x2c0] sm:$0xff]
        %v503 = vld [vmem:[%s326 + $0x2c8] sm:$0xff]
        %v504 = vld [vmem:[%s326 + $0x2d0] sm:$0xff]
        %v505 = vld [vmem:[%s326 + $0x2d8] sm:$0xff]
        %v506 = vld [vmem:[%s326 + $0x2e0] sm:$0xff]
        %v507 = vld [vmem:[%s326 + $0x2e8] sm:$0xff]
        %v508 = vld [vmem:[%s326 + $0x2f0] sm:$0xff]
        %v509 = vld [vmem:[%s326 + $0x2f8] sm:$0xff]
        %v510 = vld [vmem:[%s326 + $0x300] sm:$0xff]
        %v511 = vld [vmem:[%s326 + $0x308] sm:$0xff]
        %v512 = vld [vmem:[%s326 + $0x310] sm:$0xff]
        %v513 = vld [vmem:[%s326 + $0x318] sm:$0xff]
        %v514 = vld [vmem:[%s326 + $0x320] sm:$0xff]
        %v515 = vld [vmem:[%s326 + $0x328] sm:$0xff]
        %v516 = vld [vmem:[%s326 + $0x330] sm:$0xff]
        %v517 = vld [vmem:[%s326 + $0x338] sm:$0xff]
        %v518 = vld [vmem:[%s326 + $0x340] sm:$0xff]
        %v519 = vld [vmem:[%s326 + $0x348] sm:$0xff]
        %v520 = vld [vmem:[%s326 + $0x350] sm:$0xff]
        %v521 = vld [vmem:[%s326 + $0x358] sm:$0xff]
        %v522 = vld [vmem:[%s326 + $0x360] sm:$0xff]
        %v523 = vld [vmem:[%s326 + $0x368] sm:$0xff]
        %v524 = vld [vmem:[%s326 + $0x370] sm:$0xff]
        %v525 = vld [vmem:[%s326 + $0x378] sm:$0xff]
        %v526 = vld [vmem:[%s326 + $0x380] sm:$0xff]
        %v527 = vld [vmem:[%s326 + $0x388] sm:$0xff]
        %v528 = vld [vmem:[%s326 + $0x390] sm:$0xff]
        %v529 = vld [vmem:[%s326 + $0x398] sm:$0xff]
        %v530 = vld [vmem:[%s326 + $0x3a0] sm:$0xff]
        %v531 = vld [vmem:[%s326 + $0x3a8] sm:$0xff]
        %v532 = vld [vmem:[%s326 + $0x3b0] sm:$0xff]
        %v533 = vld [vmem:[%s326 + $0x3b8] sm:$0xff]
        %v534 = vld [vmem:[%s326 + $0x3c0] sm:$0xff]
        %v535 = vld [vmem:[%s326 + $0x3c8] sm:$0xff]
        %v536 = vld [vmem:[%s326 + $0x3d0] sm:$0xff]
        %v537 = vld [vmem:[%s326 + $0x3d8] sm:$0xff]
        %v538 = vld [vmem:[%s326 + $0x3e0] sm:$0xff]
        %v539 = vld [vmem:[%s326 + $0x3e8] sm:$0xff]
        %v540 = vld [vmem:[%s326 + $0x3f0] sm:$0xff]
        %v541 = vld [vmem:[%s326 + $0x3f8] sm:$0xff]
        %v542 = vld [vmem:[%s326 + $0x400] sm:$0xff]
        %v543 = vld [vmem:[%s326 + $0x408] sm:$0xff]
        %v544 = vld [vmem:[%s326 + $0x410] sm:$0xff]
        %v545 = vld [vmem:[%s326 + $0x418] sm:$0xff]
        %v546 = vld [vmem:[%s326 + $0x420] sm:$0xff]
        %v547 = vld [vmem:[%s326 + $0x428] sm:$0xff]
        %v548 = vld [vmem:[%s326 + $0x430] sm:$0xff]
        %v549 = vld [vmem:[%s326 + $0x438] sm:$0xff]
        %v550 = vld [vmem:[%s326 + $0x440] sm:$0xff]
        %v551 = vld [vmem:[%s326 + $0x448] sm:$0xff]
        %v552 = vld [vmem:[%s326 + $0x450] sm:$0xff]
        %v553 = vld [vmem:[%s326 + $0x458] sm:$0xff]
        %v554 = vld [vmem:[%s326 + $0x460] sm:$0xff]
        %v555 = vld [vmem:[%s326 + $0x468] sm:$0xff]
        %v556 = vld [vmem:[%s326 + $0x470] sm:$0xff]
        %v557 = vld [vmem:[%s326 + $0x478] sm:$0xff]
        %v558 = vld [vmem:[%s326 + $0x480] sm:$0xff]
        %v559 = vld [vmem:[%s326 + $0x488] sm:$0xff]
        %v560 = vld [vmem:[%s326 + $0x490] sm:$0xff]
        %v561 = vld [vmem:[%s326 + $0x498] sm:$0xff]
        %v562 = vld [vmem:[%s326 + $0x4a0] sm:$0xff]
        %v563 = vld [vmem:[%s326 + $0x4a8] sm:$0xff]
        %v564 = vld [vmem:[%s326 + $0x4b0] sm:$0xff]
        %v565 = vld [vmem:[%s326 + $0x4b8] sm:$0xff]
        %v566 = vld [vmem:[%s326 + $0x4c0] sm:$0xff]
        %v567 = vld [vmem:[%s326 + $0x4c8] sm:$0xff]
        %v568 = vld [vmem:[%s326 + $0x4d0] sm:$0xff]
        %v569 = vld [vmem:[%s326 + $0x4d8] sm:$0xff]
        %v570 = vld [vmem:[%s326 + $0x4e0] sm:$0xff]
        %v571 = vld [vmem:[%s326 + $0x4e8] sm:$0xff]
        %v572 = vld [vmem:[%s326 + $0x4f0] sm:$0xff]
        %v573 = vld [vmem:[%s326 + $0x4f8] sm:$0xff]
        %v574 = vld [vmem:[%s326 + $0x500] sm:$0xff]
        %v575 = vld [vmem:[%s326 + $0x508] sm:$0xff]
        %v576 = vld [vmem:[%s326 + $0x510] sm:$0xff]
        %v577 = vld [vmem:[%s326 + $0x518] sm:$0xff]
        %v578 = vld [vmem:[%s326 + $0x520] sm:$0xff]
        %v579 = vld [vmem:[%s326 + $0x528] sm:$0xff]
        %v580 = vld [vmem:[%s326 + $0x530] sm:$0xff]
        %v581 = vld [vmem:[%s326 + $0x538] sm:$0xff]
        %v582 = vld [vmem:[%s326 + $0x540] sm:$0xff]
        %v583 = vld [vmem:[%s326 + $0x548] sm:$0xff]
        %v584 = vld [vmem:[%s326 + $0x550] sm:$0xff]
        %v585 = vld [vmem:[%s326 + $0x558] sm:$0xff]
        %v586 = vld [vmem:[%s326 + $0x560] sm:$0xff]
        %v587 = vld [vmem:[%s326 + $0x568] sm:$0xff]
        %v588 = vld [vmem:[%s326 + $0x570] sm:$0xff]
        %v589 = vld [vmem:[%s326 + $0x578] sm:$0xff]
        %v590 = vld [vmem:[%s326 + $0x580] sm:$0xff]
        %v591 = vld [vmem:[%s326 + $0x588] sm:$0xff]
        %v592 = vld [vmem:[%s326 + $0x590] sm:$0xff]
        %v593 = vld [vmem:[%s326 + $0x598] sm:$0xff]
        %v594 = vld [vmem:[%s326 + $0x5a0] sm:$0xff]
        %v595 = vld [vmem:[%s326 + $0x5a8] sm:$0xff]
        %v596 = vld [vmem:[%s326 + $0x5b0] sm:$0xff]
        %v597 = vld [vmem:[%s326 + $0x5b8] sm:$0xff]
        %v598 = vld [vmem:[%s326 + $0x5c0] sm:$0xff]
        %v599 = vld [vmem:[%s326 + $0x5c8] sm:$0xff]
        %v600 = vld [vmem:[%s326 + $0x5d0] sm:$0xff]
        %v601 = vld [vmem:[%s326 + $0x5d8] sm:$0xff]
        %v602 = vld [vmem:[%s326 + $0x5e0] sm:$0xff]
        %v603 = vld [vmem:[%s326 + $0x5e8] sm:$0xff]
        %v604 = vld [vmem:[%s326 + $0x5f0] sm:$0xff]
        %v605 = vld [vmem:[%s326 + $0x5f8] sm:$0xff]
        %v606 = vld [vmem:[%s326 + $0x600] sm:$0xff]
        %v607 = vld [vmem:[%s326 + $0x608] sm:$0xff]
        %v608 = vld [vmem:[%s326 + $0x610] sm:$0xff]
        %v609 = vld [vmem:[%s326 + $0x618] sm:$0xff]
        %v610 = vld [vmem:[%s326 + $0x620] sm:$0xff]
        %v611 = vld [vmem:[%s326 + $0x628] sm:$0xff]
        %v612 = vld [vmem:[%s326 + $0x630] sm:$0xff]
        %v613 = vld [vmem:[%s326 + $0x638] sm:$0xff]
        %v614 = vld [vmem:[%s326 + $0x640] sm:$0xff]
        %v615 = vld [vmem:[%s326 + $0x648] sm:$0xff]
        %v616 = vld [vmem:[%s326 + $0x650] sm:$0xff]
        %v617 = vld [vmem:[%s326 + $0x658] sm:$0xff]
        %v618 = vld [vmem:[%s326 + $0x660] sm:$0xff]
        %v619 = vld [vmem:[%s326 + $0x668] sm:$0xff]
        %v620 = vld [vmem:[%s326 + $0x670] sm:$0xff]
        %v621 = vld [vmem:[%s326 + $0x678] sm:$0xff]
        %v622 = vld [vmem:[%s326 + $0x680] sm:$0xff]
        %v623 = vld [vmem:[%s326 + $0x688] sm:$0xff]
        %v624 = vld [vmem:[%s326 + $0x690] sm:$0xff]
        %v625 = vld [vmem:[%s326 + $0x698] sm:$0xff]
        %v626 = vld [vmem:[%s326 + $0x6a0] sm:$0xff]
        %v627 = vld [vmem:[%s326 + $0x6a8] sm:$0xff]
        %v628 = vld [vmem:[%s326 + $0x6b0] sm:$0xff]
        %v629 = vld [vmem:[%s326 + $0x6b8] sm:$0xff]
        %v630 = vld [vmem:[%s326 + $0x6c0] sm:$0xff]
        %v631 = vld [vmem:[%s326 + $0x6c8] sm:$0xff]
        %v632 = vld [vmem:[%s326 + $0x6d0] sm:$0xff]
        %v633 = vld [vmem:[%s326 + $0x6d8] sm:$0xff]
        %v634 = vld [vmem:[%s326 + $0x6e0] sm:$0xff]
        %v635 = vld [vmem:[%s326 + $0x6e8] sm:$0xff]
        %v636 = vld [vmem:[%s326 + $0x6f0] sm:$0xff]
        %v637 = vld [vmem:[%s326 + $0x6f8] sm:$0xff]
        %v638 = vld [vmem:[%s326 + $0x700] sm:$0xff]
        %v639 = vld [vmem:[%s326 + $0x708] sm:$0xff]
        %v640 = vld [vmem:[%s326 + $0x710] sm:$0xff]
        %v641 = vld [vmem:[%s326 + $0x718] sm:$0xff]
        %v642 = vld [vmem:[%s326 + $0x720] sm:$0xff]
        %v643 = vld [vmem:[%s326 + $0x728] sm:$0xff]
        %v644 = vld [vmem:[%s326 + $0x730] sm:$0xff]
        %v645 = vld [vmem:[%s326 + $0x738] sm:$0xff]
        %v646 = vld [vmem:[%s326 + $0x740] sm:$0xff]
        %v647 = vld [vmem:[%s326 + $0x748] sm:$0xff]
        %v648 = vld [vmem:[%s326 + $0x750] sm:$0xff]
        %v649 = vld [vmem:[%s326 + $0x758] sm:$0xff]
        %v650 = vld [vmem:[%s326 + $0x760] sm:$0xff]
        %v651 = vld [vmem:[%s326 + $0x768] sm:$0xff]
        %v652 = vld [vmem:[%s326 + $0x770] sm:$0xff]
        %v653 = vld [vmem:[%s326 + $0x778] sm:$0xff]
        %v654 = vld [vmem:[%s326 + $0x780] sm:$0xff]
        %v655 = vld [vmem:[%s326 + $0x788] sm:$0xff]
        %v656 = vld [vmem:[%s326 + $0x790] sm:$0xff]
        %v657 = vld [vmem:[%s326 + $0x798] sm:$0xff]
        %v658 = vld [vmem:[%s326 + $0x7a0] sm:$0xff]
        %v659 = vld [vmem:[%s326 + $0x7a8] sm:$0xff]
        %v660 = vld [vmem:[%s326 + $0x7b0] sm:$0xff]
        %v661 = vld [vmem:[%s326 + $0x7b8] sm:$0xff]
        %v662 = vld [vmem:[%s326 + $0x7c0] sm:$0xff]
        %v663 = vld [vmem:[%s326 + $0x7c8] sm:$0xff]
        %v664 = vld [vmem:[%s326 + $0x7d0] sm:$0xff]
        %v665 = vld [vmem:[%s326 + $0x7d8] sm:$0xff]
        %v666 = vld [vmem:[%s326 + $0x7e0] sm:$0xff]
        %v667 = vld [vmem:[%s326 + $0x7e8] sm:$0xff]
        %v668 = vld [vmem:[%s326 + $0x7f0] sm:$0xff]
        %v669 = vld [vmem:[%s326 + $0x7f8] sm:$0xff]
        %v670 = vld [vmem:[%s326 + $0x800] sm:$0xff]
        %v671 = vld [vmem:[%s326 + $0x808] sm:$0xff]
        %v672 = vld [vmem:[%s326 + $0x810] sm:$0xff]
        %v673 = vld [vmem:[%s326 + $0x818] sm:$0xff]
        %v674 = vld [vmem:[%s326 + $0x820] sm:$0xff]
        %v675 = vld [vmem:[%s326 + $0x828] sm:$0xff]
        %v676 = vld [vmem:[%s326 + $0x830] sm:$0xff]
        %v677 = vld [vmem:[%s326 + $0x838] sm:$0xff]
        %v678 = vld [vmem:[%s326 + $0x840] sm:$0xff]
        %v679 = vld [vmem:[%s326 + $0x848] sm:$0xff]
        %v680 = vld [vmem:[%s326 + $0x850] sm:$0xff]
        %v681 = vld [vmem:[%s326 + $0x858] sm:$0xff]
        %v682 = vld [vmem:[%s326 + $0x860] sm:$0xff]
        %v683 = vld [vmem:[%s326 + $0x868] sm:$0xff]
        %v684 = vld [vmem:[%s326 + $0x870] sm:$0xff]
        %v685 = vld [vmem:[%s326 + $0x878] sm:$0xff]
        %v686 = vld [vmem:[%s326 + $0x880] sm:$0xff]
        %v687 = vld [vmem:[%s326 + $0x888] sm:$0xff]
        %v688 = vld [vmem:[%s326 + $0x890] sm:$0xff]
        %v689 = vld [vmem:[%s326 + $0x898] sm:$0xff]
        %v690 = vld [vmem:[%s326 + $0x8a0] sm:$0xff]
        %v691 = vld [vmem:[%s326 + $0x8a8] sm:$0xff]
        %v692 = vld [vmem:[%s326 + $0x8b0] sm:$0xff]
        %v693 = vld [vmem:[%s326 + $0x8b8] sm:$0xff]
        %v694 = vld [vmem:[%s326 + $0x8c0] sm:$0xff]
        %v695 = vld [vmem:[%s326 + $0x8c8] sm:$0xff]
        %v696 = vld [vmem:[%s326 + $0x8d0] sm:$0xff]
        %v697 = vld [vmem:[%s326 + $0x8d8] sm:$0xff]
        %v698 = vld [vmem:[%s326 + $0x8e0] sm:$0xff]
        %v699 = vld [vmem:[%s326 + $0x8e8] sm:$0xff]
        %v700 = vld [vmem:[%s326 + $0x8f0] sm:$0xff]
        %v701 = vld [vmem:[%s326 + $0x8f8] sm:$0xff]
        %v702 = vld [vmem:[%s326 + $0x900] sm:$0xff]
        %v703 = vld [vmem:[%s326 + $0x908] sm:$0xff]
        %v704 = vld [vmem:[%s326 + $0x910] sm:$0xff]
        %v705 = vld [vmem:[%s326 + $0x918] sm:$0xff]
        %v706 = vld [vmem:[%s326 + $0x920] sm:$0xff]
        %v707 = vld [vmem:[%s326 + $0x928] sm:$0xff]
        %v708 = vld [vmem:[%s326 + $0x930] sm:$0xff]
        %v709 = vld [vmem:[%s326 + $0x938] sm:$0xff]
        %v710 = vld [vmem:[%s326 + $0x940] sm:$0xff]
        %v711 = vld [vmem:[%s326 + $0x948] sm:$0xff]
        %v712 = vld [vmem:[%s326 + $0x950] sm:$0xff]
        %v713 = vld [vmem:[%s326 + $0x958] sm:$0xff]
        %v714 = vld [vmem:[%s326 + $0x960] sm:$0xff]
        %v715 = vld [vmem:[%s326 + $0x968] sm:$0xff]
        %v716 = vld [vmem:[%s326 + $0x970] sm:$0xff]
        %v717 = vld [vmem:[%s326 + $0x978] sm:$0xff]
        %v718 = vld [vmem:[%s326 + $0x980] sm:$0xff]
        %v719 = vld [vmem:[%s326 + $0x988] sm:$0xff]
        %v720 = vld [vmem:[%s326 + $0x990] sm:$0xff]
        %v721 = vld [vmem:[%s326 + $0x998] sm:$0xff]
        %v722 = vld [vmem:[%s326 + $0x9a0] sm:$0xff]
        %v723 = vld [vmem:[%s326 + $0x9a8] sm:$0xff]
        %v724 = vld [vmem:[%s326 + $0x9b0] sm:$0xff]
        %v725 = vld [vmem:[%s326 + $0x9b8] sm:$0xff]
        %v726 = vld [vmem:[%s326 + $0x9c0] sm:$0xff]
        %v727 = vld [vmem:[%s326 + $0x9c8] sm:$0xff]
        %v728 = vld [vmem:[%s326 + $0x9d0] sm:$0xff]
        %v729 = vld [vmem:[%s326 + $0x9d8] sm:$0xff]
        %v730 = vld [vmem:[%s326 + $0x9e0] sm:$0xff]
        %v731 = vld [vmem:[%s326 + $0x9e8] sm:$0xff]
        %v732 = vld [vmem:[%s326 + $0x9f0] sm:$0xff]
        %v733 = vld [vmem:[%s326 + $0x9f8] sm:$0xff]
        %v734 = vld [vmem:[%s326 + $0xa00] sm:$0xff]
        %v735 = vld [vmem:[%s326 + $0xa08] sm:$0xff]
        %v736 = vld [vmem:[%s326 + $0xa10] sm:$0xff]
        %v737 = vld [vmem:[%s326 + $0xa18] sm:$0xff]
        %v738 = vld [vmem:[%s326 + $0xa20] sm:$0xff]
        %v739 = vld [vmem:[%s326 + $0xa28] sm:$0xff]
        %v740 = vld [vmem:[%s326 + $0xa30] sm:$0xff]
        %v741 = vld [vmem:[%s326 + $0xa38] sm:$0xff]
        %v742 = vld [vmem:[%s326 + $0xa40] sm:$0xff]
        %v743 = vld [vmem:[%s326 + $0xa48] sm:$0xff]
        %v744 = vld [vmem:[%s326 + $0xa50] sm:$0xff]
        %v745 = vld [vmem:[%s326 + $0xa58] sm:$0xff]
        %v746 = vld [vmem:[%s326 + $0xa60] sm:$0xff]
        %v747 = vld [vmem:[%s326 + $0xa68] sm:$0xff]
        %v748 = vld [vmem:[%s326 + $0xa70] sm:$0xff]
        %v749 = vld [vmem:[%s326 + $0xa78] sm:$0xff]
        %v750 = vld [vmem:[%s326 + $0xa80] sm:$0xff]
        %v751 = vld [vmem:[%s326 + $0xa88] sm:$0xff]
        %v752 = vld [vmem:[%s326 + $0xa90] sm:$0xff]
        %v753 = vld [vmem:[%s326 + $0xa98] sm:$0xff]
        %v754 = vld [vmem:[%s326 + $0xaa0] sm:$0xff]
        %v755 = vld [vmem:[%s326 + $0xaa8] sm:$0xff]
        %v756 = vld [vmem:[%s326 + $0xab0] sm:$0xff]
        %v757 = vld [vmem:[%s326 + $0xab8] sm:$0xff]
        %v758 = vld [vmem:[%s326 + $0xac0] sm:$0xff]
        %v759 = vld [vmem:[%s326 + $0xac8] sm:$0xff]
        %v760 = vld [vmem:[%s326 + $0xad0] sm:$0xff]
        %v761 = vld [vmem:[%s326 + $0xad8] sm:$0xff]
        %v762 = vld [vmem:[%s326 + $0xae0] sm:$0xff]
        %v763 = vld [vmem:[%s326 + $0xae8] sm:$0xff]
        %v764 = vld [vmem:[%s326 + $0xaf0] sm:$0xff]
        %v765 = vld [vmem:[%s326 + $0xaf8] sm:$0xff]
        %v766 = vld [vmem:[%s326 + $0xb00] sm:$0xff]
        %v767 = vld [vmem:[%s326 + $0xb08] sm:$0xff]
        %v768 = vld [vmem:[%s326 + $0xb10] sm:$0xff]
        %v769 = vld [vmem:[%s326 + $0xb18] sm:$0xff]
        %v770 = vld [vmem:[%s326 + $0xb20] sm:$0xff]
        %v771 = vld [vmem:[%s326 + $0xb28] sm:$0xff]
        %v772 = vld [vmem:[%s326 + $0xb30] sm:$0xff]
        %v773 = vld [vmem:[%s326 + $0xb38] sm:$0xff]
        %v774 = vld [vmem:[%s326 + $0xb40] sm:$0xff]
        %v775 = vld [vmem:[%s326 + $0xb48] sm:$0xff]
        %v776 = vld [vmem:[%s326 + $0xb50] sm:$0xff]
        %v777 = vld [vmem:[%s326 + $0xb58] sm:$0xff]
        %v778 = vld [vmem:[%s326 + $0xb60] sm:$0xff]
        %v779 = vld [vmem:[%s326 + $0xb68] sm:$0xff]
        %v780 = vld [vmem:[%s326 + $0xb70] sm:$0xff]
        %v781 = vld [vmem:[%s326 + $0xb78] sm:$0xff]
        %v782 = vld [vmem:[%s326 + $0xb80] sm:$0xff]
        %v783 = vld [vmem:[%s326 + $0xb88] sm:$0xff]
        %v784 = vld [vmem:[%s326 + $0xb90] sm:$0xff]
        %v785 = vld [vmem:[%s326 + $0xb98] sm:$0xff]
        %v786 = vld [vmem:[%s326 + $0xba0] sm:$0xff]
        %v787 = vld [vmem:[%s326 + $0xba8] sm:$0xff]
        %v788 = vld [vmem:[%s326 + $0xbb0] sm:$0xff]
        %v789 = vld [vmem:[%s326 + $0xbb8] sm:$0xff]
        %v790 = vld [vmem:[%s326 + $0xbc0] sm:$0xff]
        %v791 = vld [vmem:[%s326 + $0xbc8] sm:$0xff]
        %v792 = vld [vmem:[%s326 + $0xbd0] sm:$0xff]
        %v793 = vld [vmem:[%s326 + $0xbd8] sm:$0xff]
        %v794 = vld [vmem:[%s326 + $0xbe0] sm:$0xff]
        %v795 = vld [vmem:[%s326 + $0xbe8] sm:$0xff]
        %v796 = vld [vmem:[%s326 + $0xbf0] sm:$0xff]
        %v797 = vld [vmem:[%s326 + $0xbf8] sm:$0xff]
        %v798 = vld [vmem:[%s326 + $0xc00] sm:$0xff]
        %v799 = vld [vmem:[%s326 + $0xc08] sm:$0xff]
        %v800 = vld [vmem:[%s326 + $0xc10] sm:$0xff]
        %v801 = vld [vmem:[%s326 + $0xc18] sm:$0xff]
        %v802 = vld [vmem:[%s326 + $0xc20] sm:$0xff]
        %v803 = vld [vmem:[%s326 + $0xc28] sm:$0xff]
        %v804 = vld [vmem:[%s326 + $0xc30] sm:$0xff]
        %v805 = vld [vmem:[%s326 + $0xc38] sm:$0xff]
        %v806 = vld [vmem:[%s326 + $0xc40] sm:$0xff]
        %v807 = vld [vmem:[%s326 + $0xc48] sm:$0xff]
        %v808 = vld [vmem:[%s326 + $0xc50] sm:$0xff]
        %v809 = vld [vmem:[%s326 + $0xc58] sm:$0xff]
        %v810 = vld [vmem:[%s326 + $0xc60] sm:$0xff]
        %v811 = vld [vmem:[%s326 + $0xc68] sm:$0xff]
        %v812 = vld [vmem:[%s326 + $0xc70] sm:$0xff]
        %v813 = vld [vmem:[%s326 + $0xc78] sm:$0xff]
        %v814 = vld [vmem:[%s326 + $0xc80] sm:$0xff]
        %v815 = vld [vmem:[%s326 + $0xc88] sm:$0xff]
        %v816 = vld [vmem:[%s326 + $0xc90] sm:$0xff]
        %v817 = vld [vmem:[%s326 + $0xc98] sm:$0xff]
        %v818 = vld [vmem:[%s326 + $0xca0] sm:$0xff]
        %v819 = vld [vmem:[%s326 + $0xca8] sm:$0xff]
        %v820 = vld [vmem:[%s326 + $0xcb0] sm:$0xff]
        %v821 = vld [vmem:[%s326 + $0xcb8] sm:$0xff]
        %v822 = vld [vmem:[%s326 + $0xcc0] sm:$0xff]
        %v823 = vld [vmem:[%s326 + $0xcc8] sm:$0xff]
        %v824 = vld [vmem:[%s326 + $0xcd0] sm:$0xff]
        %v825 = vld [vmem:[%s326 + $0xcd8] sm:$0xff]
        %v826 = vld [vmem:[%s326 + $0xce0] sm:$0xff]
        %v827 = vld [vmem:[%s326 + $0xce8] sm:$0xff]
        %v828 = vld [vmem:[%s326 + $0xcf0] sm:$0xff]
        %v829 = vld [vmem:[%s326 + $0xcf8] sm:$0xff]
        %v830 = vld [vmem:[%s326 + $0xd00] sm:$0xff]
        %v831 = vld [vmem:[%s326 + $0xd08] sm:$0xff]
        %v832 = vld [vmem:[%s326 + $0xd10] sm:$0xff]
        %v833 = vld [vmem:[%s326 + $0xd18] sm:$0xff]
        %v834 = vld [vmem:[%s326 + $0xd20] sm:$0xff]
        %v835 = vld [vmem:[%s326 + $0xd28] sm:$0xff]
        %v836 = vld [vmem:[%s326 + $0xd30] sm:$0xff]
        %v837 = vld [vmem:[%s326 + $0xd38] sm:$0xff]
        %v838 = vld [vmem:[%s326 + $0xd40] sm:$0xff]
        %v839 = vld [vmem:[%s326 + $0xd48] sm:$0xff]
        %v840 = vld [vmem:[%s326 + $0xd50] sm:$0xff]
        %v841 = vld [vmem:[%s326 + $0xd58] sm:$0xff]
        %v842 = vld [vmem:[%s326 + $0xd60] sm:$0xff]
        %v843 = vld [vmem:[%s326 + $0xd68] sm:$0xff]
        %v844 = vld [vmem:[%s326 + $0xd70] sm:$0xff]
        %v845 = vld [vmem:[%s326 + $0xd78] sm:$0xff]
        %v846 = vld [vmem:[%s326 + $0xd80] sm:$0xff]
        %v847 = vld [vmem:[%s326 + $0xd88] sm:$0xff]
        %v848 = vld [vmem:[%s326 + $0xd90] sm:$0xff]
        %v849 = vld [vmem:[%s326 + $0xd98] sm:$0xff]
        %v850 = vld [vmem:[%s326 + $0xda0] sm:$0xff]
        %v851 = vld [vmem:[%s326 + $0xda8] sm:$0xff]
        %v852 = vld [vmem:[%s326 + $0xdb0] sm:$0xff]
        %v853 = vld [vmem:[%s326 + $0xdb8] sm:$0xff]
        %v854 = vld [vmem:[%s326 + $0xdc0] sm:$0xff]
        %v855 = vld [vmem:[%s326 + $0xdc8] sm:$0xff]
        %v856 = vld [vmem:[%s326 + $0xdd0] sm:$0xff]
        %v857 = vld [vmem:[%s326 + $0xdd8] sm:$0xff]
        %v858 = vld [vmem:[%s326 + $0xde0] sm:$0xff]
        %v859 = vld [vmem:[%s326 + $0xde8] sm:$0xff]
        %v860 = vld [vmem:[%s326 + $0xdf0] sm:$0xff]
        %v861 = vld [vmem:[%s326 + $0xdf8] sm:$0xff]
        %v862 = vld [vmem:[%s326 + $0xe00] sm:$0xff]
        %v863 = vld [vmem:[%s326 + $0xe08] sm:$0xff]
        %v864 = vld [vmem:[%s326 + $0xe10] sm:$0xff]
        %v865 = vld [vmem:[%s326 + $0xe18] sm:$0xff]
        %v866 = vld [vmem:[%s326 + $0xe20] sm:$0xff]
        %v867 = vld [vmem:[%s326 + $0xe28] sm:$0xff]
        %v868 = vld [vmem:[%s326 + $0xe30] sm:$0xff]
        %v869 = vld [vmem:[%s326 + $0xe38] sm:$0xff]
        %v870 = vld [vmem:[%s326 + $0xe40] sm:$0xff]
        %v871 = vld [vmem:[%s326 + $0xe48] sm:$0xff]
        %v872 = vld [vmem:[%s326 + $0xe50] sm:$0xff]
        %v873 = vld [vmem:[%s326 + $0xe58] sm:$0xff]
        %v874 = vld [vmem:[%s326 + $0xe60] sm:$0xff]
        %v875 = vld [vmem:[%s326 + $0xe68] sm:$0xff]
        %v876 = vld [vmem:[%s326 + $0xe70] sm:$0xff]
        %v877 = vld [vmem:[%s326 + $0xe78] sm:$0xff]
        %v878 = vld [vmem:[%s326 + $0xe80] sm:$0xff]
        %v879 = vld [vmem:[%s326 + $0xe88] sm:$0xff]
        %v880 = vld [vmem:[%s326 + $0xe90] sm:$0xff]
        %v881 = vld [vmem:[%s326 + $0xe98] sm:$0xff]
        %v882 = vld [vmem:[%s326 + $0xea0] sm:$0xff]
        %v883 = vld [vmem:[%s326 + $0xea8] sm:$0xff]
        %v884 = vld [vmem:[%s326 + $0xeb0] sm:$0xff]
        %v885 = vld [vmem:[%s326 + $0xeb8] sm:$0xff]
        %v886 = vld [vmem:[%s326 + $0xec0] sm:$0xff]
        %v887 = vld [vmem:[%s326 + $0xec8] sm:$0xff]
        %v888 = vld [vmem:[%s326 + $0xed0] sm:$0xff]
        %v889 = vld [vmem:[%s326 + $0xed8] sm:$0xff]
        %v890 = vld [vmem:[%s326 + $0xee0] sm:$0xff]
        %v891 = vld [vmem:[%s326 + $0xee8] sm:$0xff]
        %v892 = vld [vmem:[%s326 + $0xef0] sm:$0xff]
        %v893 = vld [vmem:[%s326 + $0xef8] sm:$0xff]
        %v894 = vld [vmem:[%s326 + $0xf00] sm:$0xff]
        %v895 = vld [vmem:[%s326 + $0xf08] sm:$0xff]
        %v896 = vld [vmem:[%s326 + $0xf10] sm:$0xff]
        %v897 = vld [vmem:[%s326 + $0xf18] sm:$0xff]
        %v898 = vld [vmem:[%s326 + $0xf20] sm:$0xff]
        %v899 = vld [vmem:[%s326 + $0xf28] sm:$0xff]
        %v900 = vld [vmem:[%s326 + $0xf30] sm:$0xff]
        %v901 = vld [vmem:[%s326 + $0xf38] sm:$0xff]
        %v902 = vld [vmem:[%s326 + $0xf40] sm:$0xff]
        %v903 = vld [vmem:[%s326 + $0xf48] sm:$0xff]
        %v904 = vld [vmem:[%s326 + $0xf50] sm:$0xff]
        %v905 = vld [vmem:[%s326 + $0xf58] sm:$0xff]
        %v906 = vld [vmem:[%s326 + $0xf60] sm:$0xff]
        %v907 = vld [vmem:[%s326 + $0xf68] sm:$0xff]
        %v908 = vld [vmem:[%s326 + $0xf70] sm:$0xff]
        %v909 = vld [vmem:[%s326 + $0xf78] sm:$0xff]
        %v910 = vld [vmem:[%s326 + $0xf80] sm:$0xff]
        %v911 = vld [vmem:[%s326 + $0xf88] sm:$0xff]
        %v912 = vld [vmem:[%s326 + $0xf90] sm:$0xff]
        %v913 = vld [vmem:[%s326 + $0xf98] sm:$0xff]
        %v914 = vld [vmem:[%s326 + $0xfa0] sm:$0xff]
        %v915 = vld [vmem:[%s326 + $0xfa8] sm:$0xff]
        %v916 = vld [vmem:[%s326 + $0xfb0] sm:$0xff]
        %v917 = vld [vmem:[%s326 + $0xfb8] sm:$0xff]
        %v918 = vld [vmem:[%s326 + $0xfc0] sm:$0xff]
        %v919 = vld [vmem:[%s326 + $0xfc8] sm:$0xff]
        %v920 = vld [vmem:[%s326 + $0xfd0] sm:$0xff]
        %v921 = vld [vmem:[%s326 + $0xfd8] sm:$0xff]
        %v922 = vld [vmem:[%s326 + $0xfe0] sm:$0xff]
        %v923 = vld [vmem:[%s326 + $0xfe8] sm:$0xff]
        %v924 = vld [vmem:[%s326 + $0xff0] sm:$0xff]
        %v925 = vld [vmem:[%s326 + $0xff8] sm:$0xff]
        %v926 = vld [vmem:[%s326 + $0x1000] sm:$0xff]
        %v927 = vld [vmem:[%s326 + $0x1008] sm:$0xff]
        %v928 = vld [vmem:[%s326 + $0x1010] sm:$0xff]
        %v929 = vld [vmem:[%s326 + $0x1018] sm:$0xff]
        %v930 = vld [vmem:[%s326 + $0x1020] sm:$0xff]
        %v931 = vld [vmem:[%s326 + $0x1028] sm:$0xff]
        %v932 = vld [vmem:[%s326 + $0x1030] sm:$0xff]
        %v933 = vld [vmem:[%s326 + $0x1038] sm:$0xff]
        %v934 = vld [vmem:[%s326 + $0x1040] sm:$0xff]
        %v935 = vld [vmem:[%s326 + $0x1048] sm:$0xff]
        %v936 = vld [vmem:[%s326 + $0x1050] sm:$0xff]
        %v937 = vld [vmem:[%s326 + $0x1058] sm:$0xff]
        %v938 = vld [vmem:[%s326 + $0x1060] sm:$0xff]
        %v939 = vld [vmem:[%s326 + $0x1068] sm:$0xff]
        %v940 = vld [vmem:[%s326 + $0x1070] sm:$0xff]
        %v941 = vld [vmem:[%s326 + $0x1078] sm:$0xff]
        %v942 = vld [vmem:[%s326 + $0x1080] sm:$0xff]
        %v943 = vld [vmem:[%s326 + $0x1088] sm:$0xff]
        %v944 = vld [vmem:[%s326 + $0x1090] sm:$0xff]
        %v945 = vld [vmem:[%s326 + $0x1098] sm:$0xff]
        %v946 = vld [vmem:[%s326 + $0x10a0] sm:$0xff]
        %v947 = vld [vmem:[%s326 + $0x10a8] sm:$0xff]
        %v948 = vld [vmem:[%s326 + $0x10b0] sm:$0xff]
        %v949 = vld [vmem:[%s326 + $0x10b8] sm:$0xff]
        %v950 = vld [vmem:[%s326 + $0x10c0] sm:$0xff]
        %v951 = vld [vmem:[%s326 + $0x10c8] sm:$0xff]
        %v952 = vld [vmem:[%s326 + $0x10d0] sm:$0xff]
        %v953 = vld [vmem:[%s326 + $0x10d8] sm:$0xff]
        %v954 = vld [vmem:[%s326 + $0x10e0] sm:$0xff]
        %v955 = vld [vmem:[%s326 + $0x10e8] sm:$0xff]
        %v956 = vld [vmem:[%s326 + $0x10f0] sm:$0xff]
        %v957 = vld [vmem:[%s326 + $0x10f8] sm:$0xff]
        %v958 = vld [vmem:[%s326 + $0x1100] sm:$0xff]
        %v959 = vld [vmem:[%s326 + $0x1108] sm:$0xff]
        %v960 = vld [vmem:[%s326 + $0x1110] sm:$0xff]
        %v961 = vld [vmem:[%s326 + $0x1118] sm:$0xff]
        %v962 = vld [vmem:[%s326 + $0x1120] sm:$0xff]
        %v963 = vld [vmem:[%s326 + $0x1128] sm:$0xff]
        %v964 = vld [vmem:[%s326 + $0x1130] sm:$0xff]
        %v965 = vld [vmem:[%s326 + $0x1138] sm:$0xff]
        %v966 = vld [vmem:[%s326 + $0x1140] sm:$0xff]
        %v967 = vld [vmem:[%s326 + $0x1148] sm:$0xff]
        %v968 = vld [vmem:[%s326 + $0x1150] sm:$0xff]
        %v969 = vld [vmem:[%s326 + $0x1158] sm:$0xff]
        %v970 = vld [vmem:[%s326 + $0x1160] sm:$0xff]
        %v971 = vld [vmem:[%s326 + $0x1168] sm:$0xff]
        %v972 = vld [vmem:[%s326 + $0x1170] sm:$0xff]
        %v973 = vld [vmem:[%s326 + $0x1178] sm:$0xff]
        %v974 = vld [vmem:[%s326 + $0x1180] sm:$0xff]
        %v975 = vld [vmem:[%s326 + $0x1188] sm:$0xff]
        %v976 = vld [vmem:[%s326 + $0x1190] sm:$0xff]
        %v977 = vld [vmem:[%s326 + $0x1198] sm:$0xff]
        %v978 = vld [vmem:[%s326 + $0x11a0] sm:$0xff]
        %v979 = vld [vmem:[%s326 + $0x11a8] sm:$0xff]
        %v980 = vld [vmem:[%s326 + $0x11b0] sm:$0xff]
        %v981 = vld [vmem:[%s326 + $0x11b8] sm:$0xff]
        %v982 = vld [vmem:[%s326 + $0x11c0] sm:$0xff]
        %v983 = vld [vmem:[%s326 + $0x11c8] sm:$0xff]
        %v984 = vld [vmem:[%s326 + $0x11d0] sm:$0xff]
        %v985 = vld [vmem:[%s326 + $0x11d8] sm:$0xff]
        %v986 = vld [vmem:[%s326 + $0x11e0] sm:$0xff]
        %v987 = vld [vmem:[%s326 + $0x11e8] sm:$0xff]
        %v988 = vld [vmem:[%s326 + $0x11f0] sm:$0xff]
        %v989 = vld [vmem:[%s326 + $0x11f8] sm:$0xff]
        %v990 = vld [vmem:[%s326 + $0x1200] sm:$0xff]
        %v991 = vld [vmem:[%s326 + $0x1208] sm:$0xff]
        %v992 = vld [vmem:[%s326 + $0x1210] sm:$0xff]
        %v993 = vld [vmem:[%s326 + $0x1218] sm:$0xff]
        %v994 = vld [vmem:[%s326 + $0x1220] sm:$0xff]
        %v995 = vld [vmem:[%s326 + $0x1228] sm:$0xff]
        %v996 = vld [vmem:[%s326 + $0x1230] sm:$0xff]
        %v997 = vld [vmem:[%s326 + $0x1238] sm:$0xff]
        %v998 = vld [vmem:[%s326 + $0x1240] sm:$0xff]
        %v999 = vld [vmem:[%s326 + $0x1248] sm:$0xff]
        %v1000 = vld [vmem:[%s326 + $0x1250] sm:$0xff]
        %v1001 = vld [vmem:[%s326 + $0x1258] sm:$0xff]
        %v1002 = vld [vmem:[%s326 + $0x1260] sm:$0xff]
        %v1003 = vld [vmem:[%s326 + $0x1268] sm:$0xff]
        %v1004 = vld [vmem:[%s326 + $0x1270] sm:$0xff]
        %v1005 = vld [vmem:[%s326 + $0x1278] sm:$0xff]
        %v1006 = vld [vmem:[%s326 + $0x1280] sm:$0xff]
        %v1007 = vld [vmem:[%s326 + $0x1288] sm:$0xff]
        %v1008 = vld [vmem:[%s326 + $0x1290] sm:$0xff]
        %v1009 = vld [vmem:[%s326 + $0x1298] sm:$0xff]
        %v1010 = vld [vmem:[%s326 + $0x12a0] sm:$0xff]
        %v1011 = vld [vmem:[%s326 + $0x12a8] sm:$0xff]
        %v1012 = vld [vmem:[%s326 + $0x12b0] sm:$0xff]
        %v1013 = vld [vmem:[%s326 + $0x12b8] sm:$0xff]
        %v1014 = vld [vmem:[%s326 + $0x12c0] sm:$0xff]
        %v1015 = vld [vmem:[%s326 + $0x12c8] sm:$0xff]
        %v1016 = vld [vmem:[%s326 + $0x12d0] sm:$0xff]
        %v1017 = vld [vmem:[%s326 + $0x12d8] sm:$0xff]
        %v1018 = vld [vmem:[%s326 + $0x12e0] sm:$0xff]
        %v1019 = vld [vmem:[%s326 + $0x12e8] sm:$0xff]
        %v1020 = vld [vmem:[%s326 + $0x12f0] sm:$0xff]
        %v1021 = vld [vmem:[%s326 + $0x12f8] sm:$0xff]
        %v1022 = vld [vmem:[%s326 + $0x1300] sm:$0xff]
        %v1023 = vld [vmem:[%s326 + $0x1308] sm:$0xff]
        %v1024 = vld [vmem:[%s326 + $0x1310] sm:$0xff]
        %v1025 = vld [vmem:[%s326 + $0x1318] sm:$0xff]
        %v1026 = vld [vmem:[%s326 + $0x1320] sm:$0xff]
        %v1027 = vld [vmem:[%s326 + $0x1328] sm:$0xff]
        %v1028 = vld [vmem:[%s326 + $0x1330] sm:$0xff]
        %v1029 = vld [vmem:[%s326 + $0x1338] sm:$0xff]
        %v1030 = vld [vmem:[%s326 + $0x1340] sm:$0xff]
        %v1031 = vld [vmem:[%s326 + $0x1348] sm:$0xff]
        %v1032 = vld [vmem:[%s326 + $0x1350] sm:$0xff]
        %v1033 = vld [vmem:[%s326 + $0x1358] sm:$0xff]
        %v1034 = vld [vmem:[%s326 + $0x1360] sm:$0xff]
        %v1035 = vld [vmem:[%s326 + $0x1368] sm:$0xff]
        %v1036 = vld [vmem:[%s326 + $0x1370] sm:$0xff]
        %v1037 = vld [vmem:[%s326 + $0x1378] sm:$0xff]
        %v1038 = vld [vmem:[%s326 + $0x1380] sm:$0xff]
        %v1039 = vld [vmem:[%s326 + $0x1388] sm:$0xff]
        %v1040 = vld [vmem:[%s326 + $0x1390] sm:$0xff]
        %v1041 = vld [vmem:[%s326 + $0x1398] sm:$0xff]
        %v1042 = vld [vmem:[%s326 + $0x13a0] sm:$0xff]
        %v1043 = vld [vmem:[%s326 + $0x13a8] sm:$0xff]
        %v1044 = vld [vmem:[%s326 + $0x13b0] sm:$0xff]
        %v1045 = vld [vmem:[%s326 + $0x13b8] sm:$0xff]
        %v1046 = vld [vmem:[%s326 + $0x13c0] sm:$0xff]
        %v1047 = vld [vmem:[%s326 + $0x13c8] sm:$0xff]
        %v1048 = vld [vmem:[%s326 + $0x13d0] sm:$0xff]
        %v1049 = vld [vmem:[%s326 + $0x13d8] sm:$0xff]
        %v1050 = vld [vmem:[%s326 + $0x13e0] sm:$0xff]
        %v1051 = vld [vmem:[%s326 + $0x13e8] sm:$0xff]
        %v1052 = vld [vmem:[%s326 + $0x13f0] sm:$0xff]
        %v1053 = vld [vmem:[%s326 + $0x13f8] sm:$0xff]
        %v1054 = vld [vmem:[%s326 + $0x1400] sm:$0xff]
        %v1055 = vld [vmem:[%s326 + $0x1408] sm:$0xff]
        %v1056 = vld [vmem:[%s326 + $0x1410] sm:$0xff]
        %v1057 = vld [vmem:[%s326 + $0x1418] sm:$0xff]
        %v1058 = vld [vmem:[%s326 + $0x1420] sm:$0xff]
        %v1059 = vld [vmem:[%s326 + $0x1428] sm:$0xff]
        %v1060 = vld [vmem:[%s326 + $0x1430] sm:$0xff]
        %v1061 = vld [vmem:[%s326 + $0x1438] sm:$0xff]
        %v1062 = vld [vmem:[%s326 + $0x1440] sm:$0xff]
        %v1063 = vld [vmem:[%s326 + $0x1448] sm:$0xff]
        %v1064 = vld [vmem:[%s326 + $0x1450] sm:$0xff]
        %v1065 = vld [vmem:[%s326 + $0x1458] sm:$0xff]
        %v1066 = vld [vmem:[%s326 + $0x1460] sm:$0xff]
        %v1067 = vld [vmem:[%s326 + $0x1468] sm:$0xff]
        %v1068 = vld [vmem:[%s326 + $0x1470] sm:$0xff]
        %v1069 = vld [vmem:[%s326 + $0x1478] sm:$0xff]
        %v1070 = vld [vmem:[%s326 + $0x1480] sm:$0xff]
        %v1071 = vld [vmem:[%s326 + $0x1488] sm:$0xff]
        %v1072 = vld [vmem:[%s326 + $0x1490] sm:$0xff]
        %v1073 = vld [vmem:[%s326 + $0x1498] sm:$0xff]
        %v1074 = vld [vmem:[%s326 + $0x14a0] sm:$0xff]
        %v1075 = vld [vmem:[%s326 + $0x14a8] sm:$0xff]
        %v1076 = vld [vmem:[%s326 + $0x14b0] sm:$0xff]
        %v1077 = vld [vmem:[%s326 + $0x14b8] sm:$0xff]
        %v1078 = vld [vmem:[%s326 + $0x14c0] sm:$0xff]
        %v1079 = vld [vmem:[%s326 + $0x14c8] sm:$0xff]
        %v1080 = vld [vmem:[%s326 + $0x14d0] sm:$0xff]
        %v1081 = vld [vmem:[%s326 + $0x14d8] sm:$0xff]
        %v1082 = vld [vmem:[%s326 + $0x14e0] sm:$0xff]
        %v1083 = vld [vmem:[%s326 + $0x14e8] sm:$0xff]
        %v1084 = vld [vmem:[%s326 + $0x14f0] sm:$0xff]
        %v1085 = vld [vmem:[%s326 + $0x14f8] sm:$0xff]
        %v1086 = vld [vmem:[%s326 + $0x1500] sm:$0xff]
        %v1087 = vld [vmem:[%s326 + $0x1508] sm:$0xff]
        %v1088 = vld [vmem:[%s326 + $0x1510] sm:$0xff]
        %v1089 = vld [vmem:[%s326 + $0x1518] sm:$0xff]
        %v1090 = vld [vmem:[%s326 + $0x1520] sm:$0xff]
        %v1091 = vld [vmem:[%s326 + $0x1528] sm:$0xff]
        %v1092 = vld [vmem:[%s326 + $0x1530] sm:$0xff]
        %v1093 = vld [vmem:[%s326 + $0x1538] sm:$0xff]
        %v1094 = vld [vmem:[%s326 + $0x1540] sm:$0xff]
        %v1095 = vld [vmem:[%s326 + $0x1548] sm:$0xff]
        %v1096 = vld [vmem:[%s326 + $0x1550] sm:$0xff]
        %v1097 = vld [vmem:[%s326 + $0x1558] sm:$0xff]
        %v1098 = vld [vmem:[%s326 + $0x1560] sm:$0xff]
        %v1099 = vld [vmem:[%s326 + $0x1568] sm:$0xff]
        %v1100 = vld [vmem:[%s326 + $0x1570] sm:$0xff]
        %v1101 = vld [vmem:[%s326 + $0x1578] sm:$0xff]
        %v1102 = vld [vmem:[%s326 + $0x1580] sm:$0xff]
        %v1103 = vld [vmem:[%s326 + $0x1588] sm:$0xff]
        %v1104 = vld [vmem:[%s326 + $0x1590] sm:$0xff]
        %v1105 = vld [vmem:[%s326 + $0x1598] sm:$0xff]
        %v1106 = vld [vmem:[%s326 + $0x15a0] sm:$0xff]
        %v1107 = vld [vmem:[%s326 + $0x15a8] sm:$0xff]
        %v1108 = vld [vmem:[%s326 + $0x15b0] sm:$0xff]
        %v1109 = vld [vmem:[%s326 + $0x15b8] sm:$0xff]
        %v1110 = vld [vmem:[%s326 + $0x15c0] sm:$0xff]
        %v1111 = vld [vmem:[%s326 + $0x15c8] sm:$0xff]
        %v1112 = vld [vmem:[%s326 + $0x15d0] sm:$0xff]
        %v1113 = vld [vmem:[%s326 + $0x15d8] sm:$0xff]
        %v1114 = vld [vmem:[%s326 + $0x15e0] sm:$0xff]
        %v1115 = vld [vmem:[%s326 + $0x15e8] sm:$0xff]
        %v1116 = vld [vmem:[%s326 + $0x15f0] sm:$0xff]
        %v1117 = vld [vmem:[%s326 + $0x15f8] sm:$0xff]
        %v1118 = vld [vmem:[%s326 + $0x1600] sm:$0xff]
        %v1119 = vld [vmem:[%s326 + $0x1608] sm:$0xff]
        %v1120 = vld [vmem:[%s326 + $0x1610] sm:$0xff]
        %v1121 = vld [vmem:[%s326 + $0x1618] sm:$0xff]
        %v1122 = vld [vmem:[%s326 + $0x1620] sm:$0xff]
        %v1123 = vld [vmem:[%s326 + $0x1628] sm:$0xff]
        %v1124 = vld [vmem:[%s326 + $0x1630] sm:$0xff]
        %v1125 = vld [vmem:[%s326 + $0x1638] sm:$0xff]
        %v1126 = vld [vmem:[%s326 + $0x1640] sm:$0xff]
        %v1127 = vld [vmem:[%s326 + $0x1648] sm:$0xff]
        %v1128 = vld [vmem:[%s326 + $0x1650] sm:$0xff]
        %v1129 = vld [vmem:[%s326 + $0x1658] sm:$0xff]
        %v1130 = vld [vmem:[%s326 + $0x1660] sm:$0xff]
        %v1131 = vld [vmem:[%s326 + $0x1668] sm:$0xff]
        %v1132 = vld [vmem:[%s326 + $0x1670] sm:$0xff]
        %v1133 = vld [vmem:[%s326 + $0x1678] sm:$0xff]
        %v1134 = vld [vmem:[%s326 + $0x1680] sm:$0xff]
        %v1135 = vld [vmem:[%s326 + $0x1688] sm:$0xff]
        %v1136 = vld [vmem:[%s326 + $0x1690] sm:$0xff]
        %v1137 = vld [vmem:[%s326 + $0x1698] sm:$0xff]
        %v1138 = vld [vmem:[%s326 + $0x16a0] sm:$0xff]
        %v1139 = vld [vmem:[%s326 + $0x16a8] sm:$0xff]
        %v1140 = vld [vmem:[%s326 + $0x16b0] sm:$0xff]
        %v1141 = vld [vmem:[%s326 + $0x16b8] sm:$0xff]
        %v1142 = vld [vmem:[%s326 + $0x16c0] sm:$0xff]
        %v1143 = vld [vmem:[%s326 + $0x16c8] sm:$0xff]
        %v1144 = vld [vmem:[%s326 + $0x16d0] sm:$0xff]
        %v1145 = vld [vmem:[%s326 + $0x16d8] sm:$0xff]
        %v1146 = vld [vmem:[%s326 + $0x16e0] sm:$0xff]
        %v1147 = vld [vmem:[%s326 + $0x16e8] sm:$0xff]
        %v1148 = vld [vmem:[%s326 + $0x16f0] sm:$0xff]
        %v1149 = vld [vmem:[%s326 + $0x16f8] sm:$0xff]
        %v1150 = vld [vmem:[%s326 + $0x1700] sm:$0xff]
        %v1151 = vld [vmem:[%s326 + $0x1708] sm:$0xff]
        %v1152 = vld [vmem:[%s326 + $0x1710] sm:$0xff]
        %v1153 = vld [vmem:[%s326 + $0x1718] sm:$0xff]
        %v1154 = vld [vmem:[%s326 + $0x1720] sm:$0xff]
        %v1155 = vld [vmem:[%s326 + $0x1728] sm:$0xff]
        %v1156 = vld [vmem:[%s326 + $0x1730] sm:$0xff]
        %v1157 = vld [vmem:[%s326 + $0x1738] sm:$0xff]
        %v1158 = vld [vmem:[%s326 + $0x1740] sm:$0xff]
        %v1159 = vld [vmem:[%s326 + $0x1748] sm:$0xff]
        %v1160 = vld [vmem:[%s326 + $0x1750] sm:$0xff]
        %v1161 = vld [vmem:[%s326 + $0x1758] sm:$0xff]
        %v1162 = vld [vmem:[%s326 + $0x1760] sm:$0xff]
        %v1163 = vld [vmem:[%s326 + $0x1768] sm:$0xff]
        %v1164 = vld [vmem:[%s326 + $0x1770] sm:$0xff]
        %v1165 = vld [vmem:[%s326 + $0x1778] sm:$0xff]
        %v1166 = vld [vmem:[%s326 + $0x1780] sm:$0xff]
        %v1167 = vld [vmem:[%s326 + $0x1788] sm:$0xff]
        %v1168 = vld [vmem:[%s326 + $0x1790] sm:$0xff]
        %v1169 = vld [vmem:[%s326 + $0x1798] sm:$0xff]
        %v1170 = vld [vmem:[%s326 + $0x17a0] sm:$0xff]
        %v1171 = vld [vmem:[%s326 + $0x17a8] sm:$0xff]
        %v1172 = vld [vmem:[%s326 + $0x17b0] sm:$0xff]
        %v1173 = vld [vmem:[%s326 + $0x17b8] sm:$0xff]
        %v1174 = vld [vmem:[%s326 + $0x17c0] sm:$0xff]
        %v1175 = vld [vmem:[%s326 + $0x17c8] sm:$0xff]
        %v1176 = vld [vmem:[%s326 + $0x17d0] sm:$0xff]
        %v1177 = vld [vmem:[%s326 + $0x17d8] sm:$0xff]
        %v1178 = vld [vmem:[%s326 + $0x17e0] sm:$0xff]
        %v1179 = vld [vmem:[%s326 + $0x17e8] sm:$0xff]
        %v1180 = vld [vmem:[%s326 + $0x17f0] sm:$0xff]
        %v1181 = vld [vmem:[%s326 + $0x17f8] sm:$0xff]
        %v1182 = vld [vmem:[%s326 + $0x1800] sm:$0xff]
        %v1183 = vld [vmem:[%s326 + $0x1808] sm:$0xff]
        %v1184 = vld [vmem:[%s326 + $0x1810] sm:$0xff]
        %v1185 = vld [vmem:[%s326 + $0x1818] sm:$0xff]
        %v1186 = vld [vmem:[%s326 + $0x1820] sm:$0xff]
        %v1187 = vld [vmem:[%s326 + $0x1828] sm:$0xff]
        %v1188 = vld [vmem:[%s326 + $0x1830] sm:$0xff]
        %v1189 = vld [vmem:[%s326 + $0x1838] sm:$0xff]
        %v1190 = vld [vmem:[%s326 + $0x1840] sm:$0xff]
        %v1191 = vld [vmem:[%s326 + $0x1848] sm:$0xff]
        %v1192 = vld [vmem:[%s326 + $0x1850] sm:$0xff]
        %v1193 = vld [vmem:[%s326 + $0x1858] sm:$0xff]
        %v1194 = vld [vmem:[%s326 + $0x1860] sm:$0xff]
        %v1195 = vld [vmem:[%s326 + $0x1868] sm:$0xff]
        %v1196 = vld [vmem:[%s326 + $0x1870] sm:$0xff]
        %v1197 = vld [vmem:[%s326 + $0x1878] sm:$0xff]
        %v1198 = vld [vmem:[%s326 + $0x1880] sm:$0xff]
        %v1199 = vld [vmem:[%s326 + $0x1888] sm:$0xff]
        %v1200 = vld [vmem:[%s326 + $0x1890] sm:$0xff]
        %v1201 = vld [vmem:[%s326 + $0x1898] sm:$0xff]
        %v1202 = vld [vmem:[%s326 + $0x18a0] sm:$0xff]
        %v1203 = vld [vmem:[%s326 + $0x18a8] sm:$0xff]
        %v1204 = vld [vmem:[%s326 + $0x18b0] sm:$0xff]
        %v1205 = vld [vmem:[%s326 + $0x18b8] sm:$0xff]
        %v1206 = vld [vmem:[%s326 + $0x18c0] sm:$0xff]
        %v1207 = vld [vmem:[%s326 + $0x18c8] sm:$0xff]
        %v1208 = vld [vmem:[%s326 + $0x18d0] sm:$0xff]
        %v1209 = vld [vmem:[%s326 + $0x18d8] sm:$0xff]
        %v1210 = vld [vmem:[%s326 + $0x18e0] sm:$0xff]
        %v1211 = vld [vmem:[%s326 + $0x18e8] sm:$0xff]
        %v1212 = vld [vmem:[%s326 + $0x18f0] sm:$0xff]
        %v1213 = vld [vmem:[%s326 + $0x18f8] sm:$0xff]
        %v1214 = vld [vmem:[%s326 + $0x1900] sm:$0xff]
        %v1215 = vld [vmem:[%s326 + $0x1908] sm:$0xff]
        %v1216 = vld [vmem:[%s326 + $0x1910] sm:$0xff]
        %v1217 = vld [vmem:[%s326 + $0x1918] sm:$0xff]
        %v1218 = vld [vmem:[%s326 + $0x1920] sm:$0xff]
        %v1219 = vld [vmem:[%s326 + $0x1928] sm:$0xff]
        %v1220 = vld [vmem:[%s326 + $0x1930] sm:$0xff]
        %v1221 = vld [vmem:[%s326 + $0x1938] sm:$0xff]
        %v1222 = vld [vmem:[%s326 + $0x1940] sm:$0xff]
        %v1223 = vld [vmem:[%s326 + $0x1948] sm:$0xff]
        %v1224 = vld [vmem:[%s326 + $0x1950] sm:$0xff]
        %v1225 = vld [vmem:[%s326 + $0x1958] sm:$0xff]
        %v1226 = vld [vmem:[%s326 + $0x1960] sm:$0xff]
        %v1227 = vld [vmem:[%s326 + $0x1968] sm:$0xff]
        %v1228 = vld [vmem:[%s326 + $0x1970] sm:$0xff]
        %v1229 = vld [vmem:[%s326 + $0x1978] sm:$0xff]
        %v1230 = vld [vmem:[%s326 + $0x1980] sm:$0xff]
        %v1231 = vld [vmem:[%s326 + $0x1988] sm:$0xff]
        %v1232 = vld [vmem:[%s326 + $0x1990] sm:$0xff]
        %v1233 = vld [vmem:[%s326 + $0x1998] sm:$0xff]
        %v1234 = vld [vmem:[%s326 + $0x19a0] sm:$0xff]
        %v1235 = vld [vmem:[%s326 + $0x19a8] sm:$0xff]
        %v1236 = vld [vmem:[%s326 + $0x19b0] sm:$0xff]
        %v1237 = vld [vmem:[%s326 + $0x19b8] sm:$0xff]
        %v1238 = vld [vmem:[%s326 + $0x19c0] sm:$0xff]
        %v1239 = vld [vmem:[%s326 + $0x19c8] sm:$0xff]
        %v1240 = vld [vmem:[%s326 + $0x19d0] sm:$0xff]
        %v1241 = vld [vmem:[%s326 + $0x19d8] sm:$0xff]
        %v1242 = vld [vmem:[%s326 + $0x19e0] sm:$0xff]
        %v1243 = vld [vmem:[%s326 + $0x19e8] sm:$0xff]
        %v1244 = vld [vmem:[%s326 + $0x19f0] sm:$0xff]
        %v1245 = vld [vmem:[%s326 + $0x19f8] sm:$0xff]
        %v1246 = vld [vmem:[%s326 + $0x1a00] sm:$0xff]
        %v1247 = vld [vmem:[%s326 + $0x1a08] sm:$0xff]
        %v1248 = vld [vmem:[%s326 + $0x1a10] sm:$0xff]
        %v1249 = vld [vmem:[%s326 + $0x1a18] sm:$0xff]
        %v1250 = vld [vmem:[%s326 + $0x1a20] sm:$0xff]
        %v1251 = vld [vmem:[%s326 + $0x1a28] sm:$0xff]
        %v1252 = vld [vmem:[%s326 + $0x1a30] sm:$0xff]
        %v1253 = vld [vmem:[%s326 + $0x1a38] sm:$0xff]
        %v1254 = vld [vmem:[%s326 + $0x1a40] sm:$0xff]
        %v1255 = vld [vmem:[%s326 + $0x1a48] sm:$0xff]
        %v1256 = vld [vmem:[%s326 + $0x1a50] sm:$0xff]
        %v1257 = vld [vmem:[%s326 + $0x1a58] sm:$0xff]
        %v1258 = vld [vmem:[%s326 + $0x1a60] sm:$0xff]
        %v1259 = vld [vmem:[%s326 + $0x1a68] sm:$0xff]
        %v1260 = vld [vmem:[%s326 + $0x1a70] sm:$0xff]
        %v1261 = vld [vmem:[%s326 + $0x1a78] sm:$0xff]
        %v1262 = vld [vmem:[%s326 + $0x1a80] sm:$0xff]
        %v1263 = vld [vmem:[%s326 + $0x1a88] sm:$0xff]
        %v1264 = vld [vmem:[%s326 + $0x1a90] sm:$0xff]
        %v1265 = vld [vmem:[%s326 + $0x1a98] sm:$0xff]
        %v1266 = vld [vmem:[%s326 + $0x1aa0] sm:$0xff]
        %v1267 = vld [vmem:[%s326 + $0x1aa8] sm:$0xff]
        %v1268 = vld [vmem:[%s326 + $0x1ab0] sm:$0xff]
        %v1269 = vld [vmem:[%s326 + $0x1ab8] sm:$0xff]
        %v1270 = vld [vmem:[%s326 + $0x1ac0] sm:$0xff]
        %v1271 = vld [vmem:[%s326 + $0x1ac8] sm:$0xff]
        %v1272 = vld [vmem:[%s326 + $0x1ad0] sm:$0xff]
        %v1273 = vld [vmem:[%s326 + $0x1ad8] sm:$0xff]
        %v1274 = vld [vmem:[%s326 + $0x1ae0] sm:$0xff]
        %v1275 = vld [vmem:[%s326 + $0x1ae8] sm:$0xff]
        %v1276 = vld [vmem:[%s326 + $0x1af0] sm:$0xff]
        %v1277 = vld [vmem:[%s326 + $0x1af8] sm:$0xff]
        %v1278 = vld [vmem:[%s326 + $0x1b00] sm:$0xff]
        %v1279 = vld [vmem:[%s326 + $0x1b08] sm:$0xff]
        %v1280 = vld [vmem:[%s326 + $0x1b10] sm:$0xff]
        %v1281 = vld [vmem:[%s326 + $0x1b18] sm:$0xff]
        %v1282 = vld [vmem:[%s326 + $0x1b20] sm:$0xff]
        %v1283 = vld [vmem:[%s326 + $0x1b28] sm:$0xff]
        %v1284 = vld [vmem:[%s326 + $0x1b30] sm:$0xff]
        %v1285 = vld [vmem:[%s326 + $0x1b38] sm:$0xff]
        %v1286 = vld [vmem:[%s326 + $0x1b40] sm:$0xff]
        %v1287 = vld [vmem:[%s326 + $0x1b48] sm:$0xff]
        %v1288 = vld [vmem:[%s326 + $0x1b50] sm:$0xff]
        %v1289 = vld [vmem:[%s326 + $0x1b58] sm:$0xff]
        %v1290 = vld [vmem:[%s326 + $0x1b60] sm:$0xff]
        %v1291 = vld [vmem:[%s326 + $0x1b68] sm:$0xff]
        %v1292 = vld [vmem:[%s326 + $0x1b70] sm:$0xff]
        %v1293 = vld [vmem:[%s326 + $0x1b78] sm:$0xff]
        %v1294 = vld [vmem:[%s326 + $0x1b80] sm:$0xff]
        %v1295 = vld [vmem:[%s326 + $0x1b88] sm:$0xff]
        %v1296 = vld [vmem:[%s326 + $0x1b90] sm:$0xff]
        %v1297 = vld [vmem:[%s326 + $0x1b98] sm:$0xff]
        %v1298 = vld [vmem:[%s326 + $0x1ba0] sm:$0xff]
        %v1299 = vld [vmem:[%s326 + $0x1ba8] sm:$0xff]
        %v1300 = vld [vmem:[%s326 + $0x1bb0] sm:$0xff]
        %v1301 = vld [vmem:[%s326 + $0x1bb8] sm:$0xff]
        %v1302 = vld [vmem:[%s326 + $0x1bc0] sm:$0xff]
        %v1303 = vld [vmem:[%s326 + $0x1bc8] sm:$0xff]
        %v1304 = vld [vmem:[%s326 + $0x1bd0] sm:$0xff]
        %v1305 = vld [vmem:[%s326 + $0x1bd8] sm:$0xff]
        %v1306 = vld [vmem:[%s326 + $0x1be0] sm:$0xff]
        %v1307 = vld [vmem:[%s326 + $0x1be8] sm:$0xff]
        %v1308 = vld [vmem:[%s326 + $0x1bf0] sm:$0xff]
        %v1309 = vld [vmem:[%s326 + $0x1bf8] sm:$0xff]
        %v1310 = vld [vmem:[%s326 + $0x1c00] sm:$0xff]
        %v1311 = vld [vmem:[%s326 + $0x1c08] sm:$0xff]
        %v1312 = vld [vmem:[%s326 + $0x1c10] sm:$0xff]
        %v1313 = vld [vmem:[%s326 + $0x1c18] sm:$0xff]
        %v1314 = vld [vmem:[%s326 + $0x1c20] sm:$0xff]
        %v1315 = vld [vmem:[%s326 + $0x1c28] sm:$0xff]
        %v1316 = vld [vmem:[%s326 + $0x1c30] sm:$0xff]
        %v1317 = vld [vmem:[%s326 + $0x1c38] sm:$0xff]
        %v1318 = vld [vmem:[%s326 + $0x1c40] sm:$0xff]
        %v1319 = vld [vmem:[%s326 + $0x1c48] sm:$0xff]
        %v1320 = vld [vmem:[%s326 + $0x1c50] sm:$0xff]
        %v1321 = vld [vmem:[%s326 + $0x1c58] sm:$0xff]
        %v1322 = vld [vmem:[%s326 + $0x1c60] sm:$0xff]
        %v1323 = vld [vmem:[%s326 + $0x1c68] sm:$0xff]
        %v1324 = vld [vmem:[%s326 + $0x1c70] sm:$0xff]
        %v1325 = vld [vmem:[%s326 + $0x1c78] sm:$0xff]
        %v1326 = vld [vmem:[%s326 + $0x1c80] sm:$0xff]
        %v1327 = vld [vmem:[%s326 + $0x1c88] sm:$0xff]
        %v1328 = vld [vmem:[%s326 + $0x1c90] sm:$0xff]
        %v1329 = vld [vmem:[%s326 + $0x1c98] sm:$0xff]
        %v1330 = vld [vmem:[%s326 + $0x1ca0] sm:$0xff]
        %v1331 = vld [vmem:[%s326 + $0x1ca8] sm:$0xff]
        %v1332 = vld [vmem:[%s326 + $0x1cb0] sm:$0xff]
        %v1333 = vld [vmem:[%s326 + $0x1cb8] sm:$0xff]
        %v1334 = vld [vmem:[%s326 + $0x1cc0] sm:$0xff]
        %v1335 = vld [vmem:[%s326 + $0x1cc8] sm:$0xff]
        %v1336 = vld [vmem:[%s326 + $0x1cd0] sm:$0xff]
        %v1337 = vld [vmem:[%s326 + $0x1cd8] sm:$0xff]
        %v1338 = vld [vmem:[%s326 + $0x1ce0] sm:$0xff]
        %v1339 = vld [vmem:[%s326 + $0x1ce8] sm:$0xff]
        %v1340 = vld [vmem:[%s326 + $0x1cf0] sm:$0xff]
        %v1341 = vld [vmem:[%s326 + $0x1cf8] sm:$0xff]
        %v1342 = vld [vmem:[%s326 + $0x1d00] sm:$0xff]
        %v1343 = vld [vmem:[%s326 + $0x1d08] sm:$0xff]
        %v1344 = vld [vmem:[%s326 + $0x1d10] sm:$0xff]
        %v1345 = vld [vmem:[%s326 + $0x1d18] sm:$0xff]
        %v1346 = vld [vmem:[%s326 + $0x1d20] sm:$0xff]
        %v1347 = vld [vmem:[%s326 + $0x1d28] sm:$0xff]
        %v1348 = vld [vmem:[%s326 + $0x1d30] sm:$0xff]
        %v1349 = vld [vmem:[%s326 + $0x1d38] sm:$0xff]
        %v1350 = vld [vmem:[%s326 + $0x1d40] sm:$0xff]
        %v1351 = vld [vmem:[%s326 + $0x1d48] sm:$0xff]
        %v1352 = vld [vmem:[%s326 + $0x1d50] sm:$0xff]
        %v1353 = vld [vmem:[%s326 + $0x1d58] sm:$0xff]
        %v1354 = vld [vmem:[%s326 + $0x1d60] sm:$0xff]
        %v1355 = vld [vmem:[%s326 + $0x1d68] sm:$0xff]
        %v1356 = vld [vmem:[%s326 + $0x1d70] sm:$0xff]
        %v1357 = vld [vmem:[%s326 + $0x1d78] sm:$0xff]
        %v1358 = vld [vmem:[%s326 + $0x1d80] sm:$0xff]
        %v1359 = vld [vmem:[%s326 + $0x1d88] sm:$0xff]
        %v1360 = vld [vmem:[%s326 + $0x1d90] sm:$0xff]
        %v1361 = vld [vmem:[%s326 + $0x1d98] sm:$0xff]
        %v1362 = vld [vmem:[%s326 + $0x1da0] sm:$0xff]
        %v1363 = vld [vmem:[%s326 + $0x1da8] sm:$0xff]
        %v1364 = vld [vmem:[%s326 + $0x1db0] sm:$0xff]
        %v1365 = vld [vmem:[%s326 + $0x1db8] sm:$0xff]
        %v1366 = vld [vmem:[%s326 + $0x1dc0] sm:$0xff]
        %v1367 = vld [vmem:[%s326 + $0x1dc8] sm:$0xff]
        %v1368 = vld [vmem:[%s326 + $0x1dd0] sm:$0xff]
        %v1369 = vld [vmem:[%s326 + $0x1dd8] sm:$0xff]
        %v1370 = vld [vmem:[%s326 + $0x1de0] sm:$0xff]
        %v1371 = vld [vmem:[%s326 + $0x1de8] sm:$0xff]
        %v1372 = vld [vmem:[%s326 + $0x1df0] sm:$0xff]
        %v1373 = vld [vmem:[%s326 + $0x1df8] sm:$0xff]
        %v1374 = vld [vmem:[%s326 + $0x1e00] sm:$0xff]
        %v1375 = vld [vmem:[%s326 + $0x1e08] sm:$0xff]
        %v1376 = vld [vmem:[%s326 + $0x1e10] sm:$0xff]
        %v1377 = vld [vmem:[%s326 + $0x1e18] sm:$0xff]
        %v1378 = vld [vmem:[%s326 + $0x1e20] sm:$0xff]
        %v1379 = vld [vmem:[%s326 + $0x1e28] sm:$0xff]
        %v1380 = vld [vmem:[%s326 + $0x1e30] sm:$0xff]
        %v1381 = vld [vmem:[%s326 + $0x1e38] sm:$0xff]
        %v1382 = vld [vmem:[%s326 + $0x1e40] sm:$0xff]
        %v1383 = vld [vmem:[%s326 + $0x1e48] sm:$0xff]
        %v1384 = vld [vmem:[%s326 + $0x1e50] sm:$0xff]
        %v1385 = vld [vmem:[%s326 + $0x1e58] sm:$0xff]
        %v1386 = vld [vmem:[%s326 + $0x1e60] sm:$0xff]
        %v1387 = vld [vmem:[%s326 + $0x1e68] sm:$0xff]
        %v1388 = vld [vmem:[%s326 + $0x1e70] sm:$0xff]
        %v1389 = vld [vmem:[%s326 + $0x1e78] sm:$0xff]
        %v1390 = vld [vmem:[%s326 + $0x1e80] sm:$0xff]
        %v1391 = vld [vmem:[%s326 + $0x1e88] sm:$0xff]
        %v1392 = vld [vmem:[%s326 + $0x1e90] sm:$0xff]
        %v1393 = vld [vmem:[%s326 + $0x1e98] sm:$0xff]
        %v1394 = vld [vmem:[%s326 + $0x1ea0] sm:$0xff]
        %v1395 = vld [vmem:[%s326 + $0x1ea8] sm:$0xff]
        %v1396 = vld [vmem:[%s326 + $0x1eb0] sm:$0xff]
        %v1397 = vld [vmem:[%s326 + $0x1eb8] sm:$0xff]
        %v1398 = vld [vmem:[%s326 + $0x1ec0] sm:$0xff]
        %v1399 = vld [vmem:[%s326 + $0x1ec8] sm:$0xff]
        %v1400 = vld [vmem:[%s326 + $0x1ed0] sm:$0xff]
        %v1401 = vld [vmem:[%s326 + $0x1ed8] sm:$0xff]
        %v1402 = vld [vmem:[%s326 + $0x1ee0] sm:$0xff]
        %v1403 = vld [vmem:[%s326 + $0x1ee8] sm:$0xff]
        %v1404 = vld [vmem:[%s326 + $0x1ef0] sm:$0xff]
        %v1405 = vld [vmem:[%s326 + $0x1ef8] sm:$0xff]
        %v1406 = vld [vmem:[%s326 + $0x1f00] sm:$0xff]
        %v1407 = vld [vmem:[%s326 + $0x1f08] sm:$0xff]
        %v1408 = vld [vmem:[%s326 + $0x1f10] sm:$0xff]
        %v1409 = vld [vmem:[%s326 + $0x1f18] sm:$0xff]
        %v1410 = vld [vmem:[%s326 + $0x1f20] sm:$0xff]
        %v1411 = vld [vmem:[%s326 + $0x1f28] sm:$0xff]
        %v1412 = vld [vmem:[%s326 + $0x1f30] sm:$0xff]
        %v1413 = vld [vmem:[%s326 + $0x1f38] sm:$0xff]
        %v1414 = vld [vmem:[%s326 + $0x1f40] sm:$0xff]
        %v1415 = vld [vmem:[%s326 + $0x1f48] sm:$0xff]
        %v1416 = vld [vmem:[%s326 + $0x1f50] sm:$0xff]
        %v1417 = vld [vmem:[%s326 + $0x1f58] sm:$0xff]
        %v1418 = vld [vmem:[%s326 + $0x1f60] sm:$0xff]
        %v1419 = vld [vmem:[%s326 + $0x1f68] sm:$0xff]
        %v1420 = vld [vmem:[%s326 + $0x1f70] sm:$0xff]
        %v1421 = vld [vmem:[%s326 + $0x1f78] sm:$0xff]
        %v1422 = vld [vmem:[%s326 + $0x1f80] sm:$0xff]
        %v1423 = vld [vmem:[%s326 + $0x1f88] sm:$0xff]
        %v1424 = vld [vmem:[%s326 + $0x1f90] sm:$0xff]
        %v1425 = vld [vmem:[%s326 + $0x1f98] sm:$0xff]
        %v1426 = vld [vmem:[%s326 + $0x1fa0] sm:$0xff]
        %v1427 = vld [vmem:[%s326 + $0x1fa8] sm:$0xff]
        %v1428 = vld [vmem:[%s326 + $0x1fb0] sm:$0xff]
        %v1429 = vld [vmem:[%s326 + $0x1fb8] sm:$0xff]
        %v1430 = vld [vmem:[%s326 + $0x1fc0] sm:$0xff]
        %v1431 = vld [vmem:[%s326 + $0x1fc8] sm:$0xff]
        %v1432 = vld [vmem:[%s326 + $0x1fd0] sm:$0xff]
        %v1433 = vld [vmem:[%s326 + $0x1fd8] sm:$0xff]
        %v1434 = vld [vmem:[%s326 + $0x1fe0] sm:$0xff]
        %v1435 = vld [vmem:[%s326 + $0x1fe8] sm:$0xff]
        %v1436 = vld [vmem:[%s326 + $0x1ff0] sm:$0xff]
        %v1437 = vld [vmem:[%s326 + $0x1ff8] sm:$0xff]
        %1470 = vst [vmem:[#allocation1] ss:$4 sm:$0xff] %v382
        %s1471 = scalar_lea.vmem [#allocation1], 32
        %1472 = vst [vmem:[%s1471] ss:$4 sm:$0xff] %v383
        %v1473 = vld.sshfl [vmem:[#allocation1] sm:$0xff pattern:$0x73625140]
        %v1474 = vld.sshfl [vmem:[#allocation1 + $0x8] sm:$0xff pattern:$0x73625140]
        %v1475 = vld.sshfl [vmem:[#allocation1 + $0x10] sm:$0xff pattern:$0x73625140]
        %v1476 = vld.sshfl [vmem:[#allocation1 + $0x18] sm:$0xff pattern:$0x73625140]
        %v1477 = vld.sshfl [vmem:[#allocation1 + $0x20] sm:$0xff pattern:$0x73625140]
        %v1478 = vld.sshfl [vmem:[#allocation1 + $0x28] sm:$0xff pattern:$0x73625140]
        %v1479 = vld.sshfl [vmem:[#allocation1 + $0x30] sm:$0xff pattern:$0x73625140]
        %v1480 = vld.sshfl [vmem:[#allocation1 + $0x38] sm:$0xff pattern:$0x73625140]
        %1481 = vst [vmem:[#allocation1] ss:$4 sm:$0xff] %v384
        %1482 = vst [vmem:[%s1471] ss:$4 sm:$0xff] %v385
        %v1483 = vld.sshfl [vmem:[#allocation1] sm:$0xff pattern:$0x73625140]
        %v1484 = vld.sshfl [vmem:[#allocation1 + $0x8] sm:$0xff pattern:$0x73625140]
        %v1485 = vld.sshfl [vmem:[#allocation1 + $0x10] sm:$0xff pattern:$0x73625140]
        %v1486 = vld.sshfl [vmem:[#allocation1 + $0x18] sm:$0xff pattern:$0x73625140]
        %v1487 = vld.sshfl [vmem:[#allocation1 + $0x20] sm:$0xff pattern:$0x73625140]
        %v1488 = vld.sshfl [vmem:[#allocation1 + $0x28] sm:$0xff pattern:$0x73625140]
        %v1489 = vld.sshfl [vmem:[#allocation1 + $0x30] sm:$0xff pattern:$0x73625140]
        %v1490 = vld.sshfl [vmem:[#allocation1 + $0x38] sm:$0xff pattern:$0x73625140]
        %1491 = vst [vmem:[#allocation1] ss:$4 sm:$0xff] %v386
        %1492 = vst [vmem:[%s1471] ss:$4 sm:$0xff] %v387
        %v1493 = vld.sshfl [vmem:[#allocation1] sm:$0xff pattern:$0x73625140]
        %v1494 = vld.sshfl [vmem:[#allocation1 + $0x8] sm:$0xff pattern:$0x73625140]
        %v1495 = vld.sshfl [vmem:[#allocation1 + $0x10] sm:$0xff pattern:$0x73625140]
        %v1496 = vld.sshfl [vmem:[#allocation1 + $0x18] sm:$0xff pattern:$0x73625140]
        %v1497 = vld.sshfl [vmem:[#allocation1 + $0x20] sm:$0xff pattern:$0x73625140]
        %v1498 = vld.sshfl [vmem:[#allocation1 + $0x28] sm:$0xff pattern:$0x73625140]
        %v1499 = vld.sshfl [vmem:[#allocation1 + $0x30] sm:$0xff pattern:$0x73625140]
        %v1500 = vld.sshfl [vmem:[#allocation1 + $0x38] sm:$0xff pattern:$0x73625140]
        %1501 = vst [vmem:[#allocation1] ss:$4 sm:$0xff] %v388
        %1502 = vst [vmem:[%s1471] ss:$4 sm:$0xff] %v389
        %v1503 = vld.sshfl [vmem:[#allocation1] sm:$0xff pattern:$0x73625140]
        %v1504 = vld.sshfl [vmem:[#allocation1 + $0x8] sm:$0xff pattern:$0x73625140]
        %v1505 = vld.sshfl [vmem:[#allocation1 + $0x10] sm:$0xff pattern:$0x73625140]
        %v1506 = vld.sshfl [vmem:[#allocation1 + $0x18] sm:$0xff pattern:$0x73625140]
        %v1507 = vld.sshfl [vmem:[#allocation1 + $0x20] sm:$0xff pattern:$0x73625140]
        %v1508 = vld.sshfl [vmem:[#allocation1 + $0x28] sm:$0xff pattern:$0x73625140]
        %v1509 = vld.sshfl [vmem:[#allocation1 + $0x30] sm:$0xff pattern:$0x73625140]
        %v1510 = vld.sshfl [vmem:[#allocation1 + $0x38] sm:$0xff pattern:$0x73625140]
        %1511 = vst [vmem:[#allocation1] ss:$4 sm:$0xff] %v390
        %1512 = vst [vmem:[%s1471] ss:$4 sm:$0xff] %v391
        %v1513 = vld.sshfl [vmem:[#allocation1] sm:$0xff pattern:$0x73625140]
        %v1514 = vld.sshfl [vmem:[#allocation1 + $0x8] sm:$0xff pattern:$0x73625140]
        %v1515 = vld.sshfl [vmem:[#allocation1 + $0x10] sm:$0xff pattern:$0x73625140]
        %v1516 = vld.sshfl [vmem:[#allocation1 + $0x18] sm:$0xff pattern:$0x73625140]
        %v1517 = vld.sshfl [vmem:[#allocation1 + $0x20] sm:$0xff pattern:$0x73625140]
        %v1518 = vld.sshfl [vmem:[#allocation1 + $0x28] sm:$0xff pattern:$0x73625140]
        %v1519 = vld.sshfl [vmem:[#allocation1 + $0x30] sm:$0xff pattern:$0x73625140]
        %v1520 = vld.sshfl [vmem:[#allocation1 + $0x38] sm:$0xff pattern:$0x73625140]
        %1521 = vst [vmem:[#allocation1] ss:$4 sm:$0xff] %v392
        %1522 = vst [vmem:[%s1471] ss:$4 sm:$0xff] %v393
        %v1523 = vld.sshfl [vmem:[#allocation1] sm:$0xff pattern:$0x73625140]
        %v1524 = vld.sshfl [vmem:[#allocation1 + $0x8] sm:$0xff pattern:$0x73625140]
        %v1525 = vld.sshfl [vmem:[#allocation1 + $0x10] sm:$0xff pattern:$0x73625140]
        %v1526 = vld.sshfl [vmem:[#allocation1 + $0x18] sm:$0xff pattern:$0x73625140]
        %v1527 = vld.sshfl [vmem:[#allocation1 + $0x20] sm:$0xff pattern:$0x73625140]
        %v1528 = vld.sshfl [vmem:[#allocation1 + $0x28] sm:$0xff pattern:$0x73625140]
        %v1529 = vld.sshfl [vmem:[#allocation1 + $0x30] sm:$0xff pattern:$0x73625140]
        %v1530 = vld.sshfl [vmem:[#allocation1 + $0x38] sm:$0xff pattern:$0x73625140]
        %1531 = vst [vmem:[#allocation1] ss:$4 sm:$0xff] %v394
        %1532 = vst [vmem:[%s1471] ss:$4 sm:$0xff] %v395
        %v1533 = vld.sshfl [vmem:[#allocation1] sm:$0xff pattern:$0x73625140]
        %v1534 = vld.sshfl [vmem:[#allocation1 + $0x8] sm:$0xff pattern:$0x73625140]
        %v1535 = vld.sshfl [vmem:[#allocation1 + $0x10] sm:$0xff pattern:$0x73625140]
        %v1536 = vld.sshfl [vmem:[#allocation1 + $0x18] sm:$0xff pattern:$0x73625140]
        %v1537 = vld.sshfl [vmem:[#allocation1 + $0x20] sm:$0xff pattern:$0x73625140]
        %v1538 = vld.sshfl [vmem:[#allocation1 + $0x28] sm:$0xff pattern:$0x73625140]
        %v1539 = vld.sshfl [vmem:[#allocation1 + $0x30] sm:$0xff pattern:$0x73625140]
        %v1540 = vld.sshfl [vmem:[#allocation1 + $0x38] sm:$0xff pattern:$0x73625140]
        %1541 = vst [vmem:[#allocation1] ss:$4 sm:$0xff] %v396
        %1542 = vst [vmem:[%s1471] ss:$4 sm:$0xff] %v397
        %v1543 = vld.sshfl [vmem:[#allocation1] sm:$0xff pattern:$0x73625140]
        %v1544 = vld.sshfl [vmem:[#allocation1 + $0x8] sm:$0xff pattern:$0x73625140]
        %v1545 = vld.sshfl [vmem:[#allocation1 + $0x10] sm:$0xff pattern:$0x73625140]
        %v1546 = vld.sshfl [vmem:[#allocation1 + $0x18] sm:$0xff pattern:$0x73625140]
        %v1547 = vld.sshfl [vmem:[#allocation1 + $0x20] sm:$0xff pattern:$0x73625140]
        %v1548 = vld.sshfl [vmem:[#allocation1 + $0x28] sm:$0xff pattern:$0x73625140]
        %v1549 = vld.sshfl [vmem:[#allocation1 + $0x30] sm:$0xff pattern:$0x73625140]
        %v1550 = vld.sshfl [vmem:[#allocation1 + $0x38] sm:$0xff pattern:$0x73625140]
        %1551 = vst [vmem:[#allocation1] ss:$4 sm:$0xff] %v398
        %1552 = vst [vmem:[%s1471] ss:$4 sm:$0xff] %v399
        %v1553 = vld.sshfl [vmem:[#allocation1] sm:$0xff pattern:$0x73625140]
        %v1554 = vld.sshfl [vmem:[#allocation1 + $0x8] sm:$0xff pattern:$0x73625140]
        %v1555 = vld.sshfl [vmem:[#allocation1 + $0x10] sm:$0xff pattern:$0x73625140]
        %v1556 = vld.sshfl [vmem:[#allocation1 + $0x18] sm:$0xff pattern:$0x73625140]
        %v1557 = vld.sshfl [vmem:[#allocation1 + $0x20] sm:$0xff pattern:$0x73625140]
        %v1558 = vld.sshfl [vmem:[#allocation1 + $0x28] sm:$0xff pattern:$0x73625140]
        %v1559 = vld.sshfl [vmem:[#allocation1 + $0x30] sm:$0xff pattern:$0x73625140]
        %v1560 = vld.sshfl [vmem:[#allocation1 + $0x38] sm:$0xff pattern:$0x73625140]
        %1561 = vst [vmem:[#allocation1] ss:$4 sm:$0xff] %v400
        %1562 = vst [vmem:[%s1471] ss:$4 sm:$0xff] %v401
        %v1563 = vld.sshfl [vmem:[#allocation1] sm:$0xff pattern:$0x73625140]
        %v1564 = vld.sshfl [vmem:[#allocation1 + $0x8] sm:$0xff pattern:$0x73625140]
        %v1565 = vld.sshfl [vmem:[#allocation1 + $0x10] sm:$0xff pattern:$0x73625140]
        %v1566 = vld.sshfl [vmem:[#allocation1 + $0x18] sm:$0xff pattern:$0x73625140]
        %v1567 = vld.sshfl [vmem:[#allocation1 + $0x20] sm:$0xff pattern:$0x73625140]
        %v1568 = vld.sshfl [vmem:[#allocation1 + $0x28] sm:$0xff pattern:$0x73625140]
        %v1569 = vld.sshfl [vmem:[#allocation1 + $0x30] sm:$0xff pattern:$0x73625140]
        %v1570 = vld.sshfl [vmem:[#allocation1 + $0x38] sm:$0xff pattern:$0x73625140]
        %1571 = vst [vmem:[#allocation1] ss:$4 sm:$0xff] %v402
        %1572 = vst [vmem:[%s1471] ss:$4 sm:$0xff] %v403
        %v1573 = vld.sshfl [vmem:[#allocation1] sm:$0xff pattern:$0x73625140]
        %v1574 = vld.sshfl [vmem:[#allocation1 + $0x8] sm:$0xff pattern:$0x73625140]
        %v1575 = vld.sshfl [vmem:[#allocation1 + $0x10] sm:$0xff pattern:$0x73625140]
        %v1576 = vld.sshfl [vmem:[#allocation1 + $0x18] sm:$0xff pattern:$0x73625140]
        %v1577 = vld.sshfl [vmem:[#allocation1 + $0x20] sm:$0xff pattern:$0x73625140]
        %v1578 = vld.sshfl [vmem:[#allocation1 + $0x28] sm:$0xff pattern:$0x73625140]
        %v1579 = vld.sshfl [vmem:[#allocation1 + $0x30] sm:$0xff pattern:$0x73625140]
        %v1580 = vld.sshfl [vmem:[#allocation1 + $0x38] sm:$0xff pattern:$0x73625140]
        %1581 = vst [vmem:[#allocation1] ss:$4 sm:$0xff] %v404
        %1582 = vst [vmem:[%s1471] ss:$4 sm:$0xff] %v405
        %v1583 = vld.sshfl [vmem:[#allocation1] sm:$0xff pattern:$0x73625140]
        %v1584 = vld.sshfl [vmem:[#allocation1 + $0x8] sm:$0xff pattern:$0x73625140]
        %v1585 = vld.sshfl [vmem:[#allocation1 + $0x10] sm:$0xff pattern:$0x73625140]
        %v1586 = vld.sshfl [vmem:[#allocation1 + $0x18] sm:$0xff pattern:$0x73625140]
        %v1587 = vld.sshfl [vmem:[#allocation1 + $0x20] sm:$0xff pattern:$0x73625140]
        %v1588 = vld.sshfl [vmem:[#allocation1 + $0x28] sm:$0xff pattern:$0x73625140]
        %v1589 = vld.sshfl [vmem:[#allocation1 + $0x30] sm:$0xff pattern:$0x73625140]
        %v1590 = vld.sshfl [vmem:[#allocation1 + $0x38] sm:$0xff pattern:$0x73625140]
        %1591 = vst [vmem:[#allocation1] ss:$4 sm:$0xff] %v406
        %1592 = vst [vmem:[%s1471] ss:$4 sm:$0xff] %v407
        %v1593 = vld.sshfl [vmem:[#allocation1] sm:$0xff pattern:$0x73625140]
        %v1594 = vld.sshfl [vmem:[#allocation1 + $0x8] sm:$0xff pattern:$0x73625140]
        %v1595 = vld.sshfl [vmem:[#allocation1 + $0x10] sm:$0xff pattern:$0x73625140]
        %v1596 = vld.sshfl [vmem:[#allocation1 + $0x18] sm:$0xff pattern:$0x73625140]
        %v1597 = vld.sshfl [vmem:[#allocation1 + $0x20] sm:$0xff pattern:$0x73625140]
        %v1598 = vld.sshfl [vmem:[#allocation1 + $0x28] sm:$0xff pattern:$0x73625140]
        %v1599 = vld.sshfl [vmem:[#allocation1 + $0x30] sm:$0xff pattern:$0x73625140]
        %v1600 = vld.sshfl [vmem:[#allocation1 + $0x38] sm:$0xff pattern:$0x73625140]
        %1601 = vst [vmem:[#allocation1] ss:$4 sm:$0xff] %v408
        %1602 = vst [vmem:[%s1471] ss:$4 sm:$0xff] %v409
        %v1603 = vld.sshfl [vmem:[#allocation1] sm:$0xff pattern:$0x73625140]
        %v1604 = vld.sshfl [vmem:[#allocation1 + $0x8] sm:$0xff pattern:$0x73625140]
        %v1605 = vld.sshfl [vmem:[#allocation1 + $0x10] sm:$0xff pattern:$0x73625140]
        %v1606 = vld.sshfl [vmem:[#allocation1 + $0x18] sm:$0xff pattern:$0x73625140]
        %v1607 = vld.sshfl [vmem:[#allocation1 + $0x20] sm:$0xff pattern:$0x73625140]
        %v1608 = vld.sshfl [vmem:[#allocation1 + $0x28] sm:$0xff pattern:$0x73625140]
        %v1609 = vld.sshfl [vmem:[#allocation1 + $0x30] sm:$0xff pattern:$0x73625140]
        %v1610 = vld.sshfl [vmem:[#allocation1 + $0x38] sm:$0xff pattern:$0x73625140]
        %1611 = vst [vmem:[#allocation1] ss:$4 sm:$0xff] %v410
        %1612 = vst [vmem:[%s1471] ss:$4 sm:$0xff] %v411
        %v1613 = vld.sshfl [vmem:[#allocation1] sm:$0xff pattern:$0x73625140]
        %v1614 = vld.sshfl [vmem:[#allocation1 + $0x8] sm:$0xff pattern:$0x73625140]
        %v1615 = vld.sshfl [vmem:[#allocation1 + $0x10] sm:$0xff pattern:$0x73625140]
        %v1616 = vld.sshfl [vmem:[#allocation1 + $0x18] sm:$0xff pattern:$0x73625140]
        %v1617 = vld.sshfl [vmem:[#allocation1 + $0x20] sm:$0xff pattern:$0x73625140]
        %v1618 = vld.sshfl [vmem:[#allocation1 + $0x28] sm:$0xff pattern:$0x73625140]
        %v1619 = vld.sshfl [vmem:[#allocation1 + $0x30] sm:$0xff pattern:$0x73625140]
        %v1620 = vld.sshfl [vmem:[#allocation1 + $0x38] sm:$0xff pattern:$0x73625140]
        %1621 = vst [vmem:[#allocation1] ss:$4 sm:$0xff] %v412
        %1622 = vst [vmem:[%s1471] ss:$4 sm:$0xff] %v413
        %v1623 = vld.sshfl [vmem:[#allocation1] sm:$0xff pattern:$0x73625140]
        %v1624 = vld.sshfl [vmem:[#allocation1 + $0x8] sm:$0xff pattern:$0x73625140]
        %v1625 = vld.sshfl [vmem:[#allocation1 + $0x10] sm:$0xff pattern:$0x73625140]
        %v1626 = vld.sshfl [vmem:[#allocation1 + $0x18] sm:$0xff pattern:$0x73625140]
        %v1627 = vld.sshfl [vmem:[#allocation1 + $0x20] sm:$0xff pattern:$0x73625140]
        %v1628 = vld.sshfl [vmem:[#allocation1 + $0x28] sm:$0xff pattern:$0x73625140]
        %v1629 = vld.sshfl [vmem:[#allocation1 + $0x30] sm:$0xff pattern:$0x73625140]
        %v1630 = vld.sshfl [vmem:[#allocation1 + $0x38] sm:$0xff pattern:$0x73625140]
        %1759 = vmatpush.xpose.msra.mxu0 0.0
        %1760 = vmatpush.xpose.msra.mxu0 0.0
        %1761 = vmatpush.xpose.msra.mxu0 0.0
        %1762 = vmatpush.xpose.msra.mxu0 0.0
        %1763 = vmatpush.xpose.msra.mxu0 0.0
        %1764 = vmatpush.xpose.msra.mxu0 0.0
        %1765 = vmatpush.xpose.msra.mxu0 0.0
        %1766 = vmatpush.xpose.msra.mxu0 0.0
        %1767 = vmatpush.xpose.msra.mxu0 %v1310
        %1768 = vmatpush.xpose.msra.mxu0 %v1182
        %1769 = vmatpush.xpose.msra.mxu0 %v1054
        %1770 = vmatpush.xpose.msra.mxu0 %v926
        %1771 = vmatpush.xpose.msra.mxu0 %v798
        %1772 = vmatpush.xpose.msra.mxu0 %v670
        %1773 = vmatpush.xpose.msra.mxu0 %v542
        %1774 = vmatpush.xpose.msra.mxu0 %v414
        %1775 = vmatmul.f32.gmra.mxu0 %v1473
        %v1776 = vpop.f32.mrf.mxu0
        %v1777 = vadd.f32 0.0, %v1776
        %1778 = vdwg.mxu0
        %1779 = vmatpush.xpose.msra.mxu0 0.0
        %1780 = vmatpush.xpose.msra.mxu0 0.0
        %1781 = vmatpush.xpose.msra.mxu0 0.0
        %1782 = vmatpush.xpose.msra.mxu0 0.0
        %1783 = vmatpush.xpose.msra.mxu0 0.0
        %1784 = vmatpush.xpose.msra.mxu0 0.0
        %1785 = vmatpush.xpose.msra.mxu0 0.0
        %1786 = vmatpush.xpose.msra.mxu0 0.0
        %1787 = vmatpush.xpose.msra.mxu0 %v1311
        %1788 = vmatpush.xpose.msra.mxu0 %v1183
        %1789 = vmatpush.xpose.msra.mxu0 %v1055
        %1790 = vmatpush.xpose.msra.mxu0 %v927
        %1791 = vmatpush.xpose.msra.mxu0 %v799
        %1792 = vmatpush.xpose.msra.mxu0 %v671
        %1793 = vmatpush.xpose.msra.mxu0 %v543
        %1794 = vmatpush.xpose.msra.mxu0 %v415
        %1795 = vmatmul.f32.gmra.mxu0 %v1474
        %v1796 = vpop.f32.mrf.mxu0
        %v1797 = vadd.f32 %v1777, %v1796
        %1798 = vdwg.mxu0
        %1799 = vmatpush.xpose.msra.mxu0 0.0
        %1800 = vmatpush.xpose.msra.mxu0 0.0
        %1801 = vmatpush.xpose.msra.mxu0 0.0
        %1802 = vmatpush.xpose.msra.mxu0 0.0
        %1803 = vmatpush.xpose.msra.mxu0 0.0
        %1804 = vmatpush.xpose.msra.mxu0 0.0
        %1805 = vmatpush.xpose.msra.mxu0 0.0
        %1806 = vmatpush.xpose.msra.mxu0 0.0
        %1807 = vmatpush.xpose.msra.mxu0 %v1312
        %1808 = vmatpush.xpose.msra.mxu0 %v1184
        %1809 = vmatpush.xpose.msra.mxu0 %v1056
        %1810 = vmatpush.xpose.msra.mxu0 %v928
        %1811 = vmatpush.xpose.msra.mxu0 %v800
        %1812 = vmatpush.xpose.msra.mxu0 %v672
        %1813 = vmatpush.xpose.msra.mxu0 %v544
        %1814 = vmatpush.xpose.msra.mxu0 %v416
        %1815 = vmatmul.f32.gmra.mxu0 %v1475
        %v1816 = vpop.f32.mrf.mxu0
        %v1817 = vadd.f32 %v1797, %v1816
        %1818 = vdwg.mxu0
        %1819 = vmatpush.xpose.msra.mxu0 0.0
        %1820 = vmatpush.xpose.msra.mxu0 0.0
        %1821 = vmatpush.xpose.msra.mxu0 0.0
        %1822 = vmatpush.xpose.msra.mxu0 0.0
        %1823 = vmatpush.xpose.msra.mxu0 0.0
        %1824 = vmatpush.xpose.msra.mxu0 0.0
        %1825 = vmatpush.xpose.msra.mxu0 0.0
        %1826 = vmatpush.xpose.msra.mxu0 0.0
        %1827 = vmatpush.xpose.msra.mxu0 %v1313
        %1828 = vmatpush.xpose.msra.mxu0 %v1185
        %1829 = vmatpush.xpose.msra.mxu0 %v1057
        %1830 = vmatpush.xpose.msra.mxu0 %v929
        %1831 = vmatpush.xpose.msra.mxu0 %v801
        %1832 = vmatpush.xpose.msra.mxu0 %v673
        %1833 = vmatpush.xpose.msra.mxu0 %v545
        %1834 = vmatpush.xpose.msra.mxu0 %v417
        %1835 = vmatmul.f32.gmra.mxu0 %v1476
        %v1836 = vpop.f32.mrf.mxu0
        %v1837 = vadd.f32 %v1817, %v1836
        %1838 = vdwg.mxu0
        %1839 = vmatpush.xpose.msra.mxu0 0.0
        %1840 = vmatpush.xpose.msra.mxu0 0.0
        %1841 = vmatpush.xpose.msra.mxu0 0.0
        %1842 = vmatpush.xpose.msra.mxu0 0.0
        %1843 = vmatpush.xpose.msra.mxu0 0.0
        %1844 = vmatpush.xpose.msra.mxu0 0.0
        %1845 = vmatpush.xpose.msra.mxu0 0.0
        %1846 = vmatpush.xpose.msra.mxu0 0.0
        %1847 = vmatpush.xpose.msra.mxu0 %v1314
        %1848 = vmatpush.xpose.msra.mxu0 %v1186
        %1849 = vmatpush.xpose.msra.mxu0 %v1058
        %1850 = vmatpush.xpose.msra.mxu0 %v930
        %1851 = vmatpush.xpose.msra.mxu0 %v802
        %1852 = vmatpush.xpose.msra.mxu0 %v674
        %1853 = vmatpush.xpose.msra.mxu0 %v546
        %1854 = vmatpush.xpose.msra.mxu0 %v418
        %1855 = vmatmul.f32.gmra.mxu0 %v1477
        %v1856 = vpop.f32.mrf.mxu0
        %v1857 = vadd.f32 %v1837, %v1856
        %1858 = vdwg.mxu0
        %1859 = vmatpush.xpose.msra.mxu0 0.0
        %1860 = vmatpush.xpose.msra.mxu0 0.0
        %1861 = vmatpush.xpose.msra.mxu0 0.0
        %1862 = vmatpush.xpose.msra.mxu0 0.0
        %1863 = vmatpush.xpose.msra.mxu0 0.0
        %1864 = vmatpush.xpose.msra.mxu0 0.0
        %1865 = vmatpush.xpose.msra.mxu0 0.0
        %1866 = vmatpush.xpose.msra.mxu0 0.0
        %1867 = vmatpush.xpose.msra.mxu0 %v1315
        %1868 = vmatpush.xpose.msra.mxu0 %v1187
        %1869 = vmatpush.xpose.msra.mxu0 %v1059
        %1870 = vmatpush.xpose.msra.mxu0 %v931
        %1871 = vmatpush.xpose.msra.mxu0 %v803
        %1872 = vmatpush.xpose.msra.mxu0 %v675
        %1873 = vmatpush.xpose.msra.mxu0 %v547
        %1874 = vmatpush.xpose.msra.mxu0 %v419
        %1875 = vmatmul.f32.gmra.mxu0 %v1478
        %v1876 = vpop.f32.mrf.mxu0
        %v1877 = vadd.f32 %v1857, %v1876
        %1878 = vdwg.mxu0
        %1879 = vmatpush.xpose.msra.mxu0 0.0
        %1880 = vmatpush.xpose.msra.mxu0 0.0
        %1881 = vmatpush.xpose.msra.mxu0 0.0
        %1882 = vmatpush.xpose.msra.mxu0 0.0
        %1883 = vmatpush.xpose.msra.mxu0 0.0
        %1884 = vmatpush.xpose.msra.mxu0 0.0
        %1885 = vmatpush.xpose.msra.mxu0 0.0
        %1886 = vmatpush.xpose.msra.mxu0 0.0
        %1887 = vmatpush.xpose.msra.mxu0 %v1316
        %1888 = vmatpush.xpose.msra.mxu0 %v1188
        %1889 = vmatpush.xpose.msra.mxu0 %v1060
        %1890 = vmatpush.xpose.msra.mxu0 %v932
        %1891 = vmatpush.xpose.msra.mxu0 %v804
        %1892 = vmatpush.xpose.msra.mxu0 %v676
        %1893 = vmatpush.xpose.msra.mxu0 %v548
        %1894 = vmatpush.xpose.msra.mxu0 %v420
        %1895 = vmatmul.f32.gmra.mxu0 %v1479
        %v1896 = vpop.f32.mrf.mxu0
        %v1897 = vadd.f32 %v1877, %v1896
        %1898 = vdwg.mxu0
        %1899 = vmatpush.xpose.msra.mxu0 0.0
        %1900 = vmatpush.xpose.msra.mxu0 0.0
        %1901 = vmatpush.xpose.msra.mxu0 0.0
        %1902 = vmatpush.xpose.msra.mxu0 0.0
        %1903 = vmatpush.xpose.msra.mxu0 0.0
        %1904 = vmatpush.xpose.msra.mxu0 0.0
        %1905 = vmatpush.xpose.msra.mxu0 0.0
        %1906 = vmatpush.xpose.msra.mxu0 0.0
        %1907 = vmatpush.xpose.msra.mxu0 %v1317
        %1908 = vmatpush.xpose.msra.mxu0 %v1189
        %1909 = vmatpush.xpose.msra.mxu0 %v1061
        %1910 = vmatpush.xpose.msra.mxu0 %v933
        %1911 = vmatpush.xpose.msra.mxu0 %v805
        %1912 = vmatpush.xpose.msra.mxu0 %v677
        %1913 = vmatpush.xpose.msra.mxu0 %v549
        %1914 = vmatpush.xpose.msra.mxu0 %v421
        %1915 = vmatmul.f32.gmra.mxu0 %v1480
        %v1916 = vpop.f32.mrf.mxu0
        %v1917 = vadd.f32 %v1897, %v1916
        %1918 = vdwg.mxu0
        %1919 = vmatpush.xpose.msra.mxu0 0.0
        %1920 = vmatpush.xpose.msra.mxu0 0.0
        %1921 = vmatpush.xpose.msra.mxu0 0.0
        %1922 = vmatpush.xpose.msra.mxu0 0.0
        %1923 = vmatpush.xpose.msra.mxu0 0.0
        %1924 = vmatpush.xpose.msra.mxu0 0.0
        %1925 = vmatpush.xpose.msra.mxu0 0.0
        %1926 = vmatpush.xpose.msra.mxu0 0.0
        %1927 = vmatpush.xpose.msra.mxu0 %v1318
        %1928 = vmatpush.xpose.msra.mxu0 %v1190
        %1929 = vmatpush.xpose.msra.mxu0 %v1062
        %1930 = vmatpush.xpose.msra.mxu0 %v934
        %1931 = vmatpush.xpose.msra.mxu0 %v806
        %1932 = vmatpush.xpose.msra.mxu0 %v678
        %1933 = vmatpush.xpose.msra.mxu0 %v550
        %1934 = vmatpush.xpose.msra.mxu0 %v422
        %1935 = vmatmul.f32.gmra.mxu0 %v1483
        %v1936 = vpop.f32.mrf.mxu0
        %v1937 = vadd.f32 %v1917, %v1936
        %1938 = vdwg.mxu0
        %1939 = vmatpush.xpose.msra.mxu0 0.0
        %1940 = vmatpush.xpose.msra.mxu0 0.0
        %1941 = vmatpush.xpose.msra.mxu0 0.0
        %1942 = vmatpush.xpose.msra.mxu0 0.0
        %1943 = vmatpush.xpose.msra.mxu0 0.0
        %1944 = vmatpush.xpose.msra.mxu0 0.0
        %1945 = vmatpush.xpose.msra.mxu0 0.0
        %1946 = vmatpush.xpose.msra.mxu0 0.0
        %1947 = vmatpush.xpose.msra.mxu0 %v1319
        %1948 = vmatpush.xpose.msra.mxu0 %v1191
        %1949 = vmatpush.xpose.msra.mxu0 %v1063
        %1950 = vmatpush.xpose.msra.mxu0 %v935
        %1951 = vmatpush.xpose.msra.mxu0 %v807
        %1952 = vmatpush.xpose.msra.mxu0 %v679
        %1953 = vmatpush.xpose.msra.mxu0 %v551
        %1954 = vmatpush.xpose.msra.mxu0 %v423
        %1955 = vmatmul.f32.gmra.mxu0 %v1484
        %v1956 = vpop.f32.mrf.mxu0
        %v1957 = vadd.f32 %v1937, %v1956
        %1958 = vdwg.mxu0
        %1959 = vmatpush.xpose.msra.mxu0 0.0
        %1960 = vmatpush.xpose.msra.mxu0 0.0
        %1961 = vmatpush.xpose.msra.mxu0 0.0
        %1962 = vmatpush.xpose.msra.mxu0 0.0
        %1963 = vmatpush.xpose.msra.mxu0 0.0
        %1964 = vmatpush.xpose.msra.mxu0 0.0
        %1965 = vmatpush.xpose.msra.mxu0 0.0
        %1966 = vmatpush.xpose.msra.mxu0 0.0
        %1967 = vmatpush.xpose.msra.mxu0 %v1320
        %1968 = vmatpush.xpose.msra.mxu0 %v1192
        %1969 = vmatpush.xpose.msra.mxu0 %v1064
        %1970 = vmatpush.xpose.msra.mxu0 %v936
        %1971 = vmatpush.xpose.msra.mxu0 %v808
        %1972 = vmatpush.xpose.msra.mxu0 %v680
        %1973 = vmatpush.xpose.msra.mxu0 %v552
        %1974 = vmatpush.xpose.msra.mxu0 %v424
        %1975 = vmatmul.f32.gmra.mxu0 %v1485
        %v1976 = vpop.f32.mrf.mxu0
        %v1977 = vadd.f32 %v1957, %v1976
        %1978 = vdwg.mxu0
        %1979 = vmatpush.xpose.msra.mxu0 0.0
        %1980 = vmatpush.xpose.msra.mxu0 0.0
        %1981 = vmatpush.xpose.msra.mxu0 0.0
        %1982 = vmatpush.xpose.msra.mxu0 0.0
        %1983 = vmatpush.xpose.msra.mxu0 0.0
        %1984 = vmatpush.xpose.msra.mxu0 0.0
        %1985 = vmatpush.xpose.msra.mxu0 0.0
        %1986 = vmatpush.xpose.msra.mxu0 0.0
        %1987 = vmatpush.xpose.msra.mxu0 %v1321
        %1988 = vmatpush.xpose.msra.mxu0 %v1193
        %1989 = vmatpush.xpose.msra.mxu0 %v1065
        %1990 = vmatpush.xpose.msra.mxu0 %v937
        %1991 = vmatpush.xpose.msra.mxu0 %v809
        %1992 = vmatpush.xpose.msra.mxu0 %v681
        %1993 = vmatpush.xpose.msra.mxu0 %v553
        %1994 = vmatpush.xpose.msra.mxu0 %v425
        %1995 = vmatmul.f32.gmra.mxu0 %v1486
        %v1996 = vpop.f32.mrf.mxu0
        %v1997 = vadd.f32 %v1977, %v1996
        %1998 = vdwg.mxu0
        %1999 = vmatpush.xpose.msra.mxu0 0.0
        %2000 = vmatpush.xpose.msra.mxu0 0.0
        %2001 = vmatpush.xpose.msra.mxu0 0.0
        %2002 = vmatpush.xpose.msra.mxu0 0.0
        %2003 = vmatpush.xpose.msra.mxu0 0.0
        %2004 = vmatpush.xpose.msra.mxu0 0.0
        %2005 = vmatpush.xpose.msra.mxu0 0.0
        %2006 = vmatpush.xpose.msra.mxu0 0.0
        %2007 = vmatpush.xpose.msra.mxu0 %v1322
        %2008 = vmatpush.xpose.msra.mxu0 %v1194
        %2009 = vmatpush.xpose.msra.mxu0 %v1066
        %2010 = vmatpush.xpose.msra.mxu0 %v938
        %2011 = vmatpush.xpose.msra.mxu0 %v810
        %2012 = vmatpush.xpose.msra.mxu0 %v682
        %2013 = vmatpush.xpose.msra.mxu0 %v554
        %2014 = vmatpush.xpose.msra.mxu0 %v426
        %2015 = vmatmul.f32.gmra.mxu0 %v1487
        %v2016 = vpop.f32.mrf.mxu0
        %v2017 = vadd.f32 %v1997, %v2016
        %2018 = vdwg.mxu0
        %2019 = vmatpush.xpose.msra.mxu0 0.0
        %2020 = vmatpush.xpose.msra.mxu0 0.0
        %2021 = vmatpush.xpose.msra.mxu0 0.0
        %2022 = vmatpush.xpose.msra.mxu0 0.0
        %2023 = vmatpush.xpose.msra.mxu0 0.0
        %2024 = vmatpush.xpose.msra.mxu0 0.0
        %2025 = vmatpush.xpose.msra.mxu0 0.0
        %2026 = vmatpush.xpose.msra.mxu0 0.0
        %2027 = vmatpush.xpose.msra.mxu0 %v1323
        %2028 = vmatpush.xpose.msra.mxu0 %v1195
        %2029 = vmatpush.xpose.msra.mxu0 %v1067
        %2030 = vmatpush.xpose.msra.mxu0 %v939
        %2031 = vmatpush.xpose.msra.mxu0 %v811
        %2032 = vmatpush.xpose.msra.mxu0 %v683
        %2033 = vmatpush.xpose.msra.mxu0 %v555
        %2034 = vmatpush.xpose.msra.mxu0 %v427
        %2035 = vmatmul.f32.gmra.mxu0 %v1488
        %v2036 = vpop.f32.mrf.mxu0
        %v2037 = vadd.f32 %v2017, %v2036
        %2038 = vdwg.mxu0
        %2039 = vmatpush.xpose.msra.mxu0 0.0
        %2040 = vmatpush.xpose.msra.mxu0 0.0
        %2041 = vmatpush.xpose.msra.mxu0 0.0
        %2042 = vmatpush.xpose.msra.mxu0 0.0
        %2043 = vmatpush.xpose.msra.mxu0 0.0
        %2044 = vmatpush.xpose.msra.mxu0 0.0
        %2045 = vmatpush.xpose.msra.mxu0 0.0
        %2046 = vmatpush.xpose.msra.mxu0 0.0
        %2047 = vmatpush.xpose.msra.mxu0 %v1324
        %2048 = vmatpush.xpose.msra.mxu0 %v1196
        %2049 = vmatpush.xpose.msra.mxu0 %v1068
        %2050 = vmatpush.xpose.msra.mxu0 %v940
        %2051 = vmatpush.xpose.msra.mxu0 %v812
        %2052 = vmatpush.xpose.msra.mxu0 %v684
        %2053 = vmatpush.xpose.msra.mxu0 %v556
        %2054 = vmatpush.xpose.msra.mxu0 %v428
        %2055 = vmatmul.f32.gmra.mxu0 %v1489
        %v2056 = vpop.f32.mrf.mxu0
        %v2057 = vadd.f32 %v2037, %v2056
        %2058 = vdwg.mxu0
        %2059 = vmatpush.xpose.msra.mxu0 0.0
        %2060 = vmatpush.xpose.msra.mxu0 0.0
        %2061 = vmatpush.xpose.msra.mxu0 0.0
        %2062 = vmatpush.xpose.msra.mxu0 0.0
        %2063 = vmatpush.xpose.msra.mxu0 0.0
        %2064 = vmatpush.xpose.msra.mxu0 0.0
        %2065 = vmatpush.xpose.msra.mxu0 0.0
        %2066 = vmatpush.xpose.msra.mxu0 0.0
        %2067 = vmatpush.xpose.msra.mxu0 %v1325
        %2068 = vmatpush.xpose.msra.mxu0 %v1197
        %2069 = vmatpush.xpose.msra.mxu0 %v1069
        %2070 = vmatpush.xpose.msra.mxu0 %v941
        %2071 = vmatpush.xpose.msra.mxu0 %v813
        %2072 = vmatpush.xpose.msra.mxu0 %v685
        %2073 = vmatpush.xpose.msra.mxu0 %v557
        %2074 = vmatpush.xpose.msra.mxu0 %v429
        %2075 = vmatmul.f32.gmra.mxu0 %v1490
        %v2076 = vpop.f32.mrf.mxu0
        %v2077 = vadd.f32 %v2057, %v2076
        %2078 = vdwg.mxu0
        %2079 = vmatpush.xpose.msra.mxu0 0.0
        %2080 = vmatpush.xpose.msra.mxu0 0.0
        %2081 = vmatpush.xpose.msra.mxu0 0.0
        %2082 = vmatpush.xpose.msra.mxu0 0.0
        %2083 = vmatpush.xpose.msra.mxu0 0.0
        %2084 = vmatpush.xpose.msra.mxu0 0.0
        %2085 = vmatpush.xpose.msra.mxu0 0.0
        %2086 = vmatpush.xpose.msra.mxu0 0.0
        %2087 = vmatpush.xpose.msra.mxu0 %v1326
        %2088 = vmatpush.xpose.msra.mxu0 %v1198
        %2089 = vmatpush.xpose.msra.mxu0 %v1070
        %2090 = vmatpush.xpose.msra.mxu0 %v942
        %2091 = vmatpush.xpose.msra.mxu0 %v814
        %2092 = vmatpush.xpose.msra.mxu0 %v686
        %2093 = vmatpush.xpose.msra.mxu0 %v558
        %2094 = vmatpush.xpose.msra.mxu0 %v430
        %2095 = vmatmul.f32.gmra.mxu0 %v1493
        %v2096 = vpop.f32.mrf.mxu0
        %v2097 = vadd.f32 %v2077, %v2096
        %2098 = vdwg.mxu0
        %2099 = vmatpush.xpose.msra.mxu0 0.0
        %2100 = vmatpush.xpose.msra.mxu0 0.0
        %2101 = vmatpush.xpose.msra.mxu0 0.0
        %2102 = vmatpush.xpose.msra.mxu0 0.0
        %2103 = vmatpush.xpose.msra.mxu0 0.0
        %2104 = vmatpush.xpose.msra.mxu0 0.0
        %2105 = vmatpush.xpose.msra.mxu0 0.0
        %2106 = vmatpush.xpose.msra.mxu0 0.0
        %2107 = vmatpush.xpose.msra.mxu0 %v1327
        %2108 = vmatpush.xpose.msra.mxu0 %v1199
        %2109 = vmatpush.xpose.msra.mxu0 %v1071
        %2110 = vmatpush.xpose.msra.mxu0 %v943
        %2111 = vmatpush.xpose.msra.mxu0 %v815
        %2112 = vmatpush.xpose.msra.mxu0 %v687
        %2113 = vmatpush.xpose.msra.mxu0 %v559
        %2114 = vmatpush.xpose.msra.mxu0 %v431
        %2115 = vmatmul.f32.gmra.mxu0 %v1494
        %v2116 = vpop.f32.mrf.mxu0
        %v2117 = vadd.f32 %v2097, %v2116
        %2118 = vdwg.mxu0
        %2119 = vmatpush.xpose.msra.mxu0 0.0
        %2120 = vmatpush.xpose.msra.mxu0 0.0
        %2121 = vmatpush.xpose.msra.mxu0 0.0
        %2122 = vmatpush.xpose.msra.mxu0 0.0
        %2123 = vmatpush.xpose.msra.mxu0 0.0
        %2124 = vmatpush.xpose.msra.mxu0 0.0
        %2125 = vmatpush.xpose.msra.mxu0 0.0
        %2126 = vmatpush.xpose.msra.mxu0 0.0
        %2127 = vmatpush.xpose.msra.mxu0 %v1328
        %2128 = vmatpush.xpose.msra.mxu0 %v1200
        %2129 = vmatpush.xpose.msra.mxu0 %v1072
        %2130 = vmatpush.xpose.msra.mxu0 %v944
        %2131 = vmatpush.xpose.msra.mxu0 %v816
        %2132 = vmatpush.xpose.msra.mxu0 %v688
        %2133 = vmatpush.xpose.msra.mxu0 %v560
        %2134 = vmatpush.xpose.msra.mxu0 %v432
        %2135 = vmatmul.f32.gmra.mxu0 %v1495
        %v2136 = vpop.f32.mrf.mxu0
        %v2137 = vadd.f32 %v2117, %v2136
        %2138 = vdwg.mxu0
        %2139 = vmatpush.xpose.msra.mxu0 0.0
        %2140 = vmatpush.xpose.msra.mxu0 0.0
        %2141 = vmatpush.xpose.msra.mxu0 0.0
        %2142 = vmatpush.xpose.msra.mxu0 0.0
        %2143 = vmatpush.xpose.msra.mxu0 0.0
        %2144 = vmatpush.xpose.msra.mxu0 0.0
        %2145 = vmatpush.xpose.msra.mxu0 0.0
        %2146 = vmatpush.xpose.msra.mxu0 0.0
        %2147 = vmatpush.xpose.msra.mxu0 %v1329
        %2148 = vmatpush.xpose.msra.mxu0 %v1201
        %2149 = vmatpush.xpose.msra.mxu0 %v1073
        %2150 = vmatpush.xpose.msra.mxu0 %v945
        %2151 = vmatpush.xpose.msra.mxu0 %v817
        %2152 = vmatpush.xpose.msra.mxu0 %v689
        %2153 = vmatpush.xpose.msra.mxu0 %v561
        %2154 = vmatpush.xpose.msra.mxu0 %v433
        %2155 = vmatmul.f32.gmra.mxu0 %v1496
        %v2156 = vpop.f32.mrf.mxu0
        %v2157 = vadd.f32 %v2137, %v2156
        %2158 = vdwg.mxu0
        %2159 = vmatpush.xpose.msra.mxu0 0.0
        %2160 = vmatpush.xpose.msra.mxu0 0.0
        %2161 = vmatpush.xpose.msra.mxu0 0.0
        %2162 = vmatpush.xpose.msra.mxu0 0.0
        %2163 = vmatpush.xpose.msra.mxu0 0.0
        %2164 = vmatpush.xpose.msra.mxu0 0.0
        %2165 = vmatpush.xpose.msra.mxu0 0.0
        %2166 = vmatpush.xpose.msra.mxu0 0.0
        %2167 = vmatpush.xpose.msra.mxu0 %v1330
        %2168 = vmatpush.xpose.msra.mxu0 %v1202
        %2169 = vmatpush.xpose.msra.mxu0 %v1074
        %2170 = vmatpush.xpose.msra.mxu0 %v946
        %2171 = vmatpush.xpose.msra.mxu0 %v818
        %2172 = vmatpush.xpose.msra.mxu0 %v690
        %2173 = vmatpush.xpose.msra.mxu0 %v562
        %2174 = vmatpush.xpose.msra.mxu0 %v434
        %2175 = vmatmul.f32.gmra.mxu0 %v1497
        %v2176 = vpop.f32.mrf.mxu0
        %v2177 = vadd.f32 %v2157, %v2176
        %2178 = vdwg.mxu0
        %2179 = vmatpush.xpose.msra.mxu0 0.0
        %2180 = vmatpush.xpose.msra.mxu0 0.0
        %2181 = vmatpush.xpose.msra.mxu0 0.0
        %2182 = vmatpush.xpose.msra.mxu0 0.0
        %2183 = vmatpush.xpose.msra.mxu0 0.0
        %2184 = vmatpush.xpose.msra.mxu0 0.0
        %2185 = vmatpush.xpose.msra.mxu0 0.0
        %2186 = vmatpush.xpose.msra.mxu0 0.0
        %2187 = vmatpush.xpose.msra.mxu0 %v1331
        %2188 = vmatpush.xpose.msra.mxu0 %v1203
        %2189 = vmatpush.xpose.msra.mxu0 %v1075
        %2190 = vmatpush.xpose.msra.mxu0 %v947
        %2191 = vmatpush.xpose.msra.mxu0 %v819
        %2192 = vmatpush.xpose.msra.mxu0 %v691
        %2193 = vmatpush.xpose.msra.mxu0 %v563
        %2194 = vmatpush.xpose.msra.mxu0 %v435
        %2195 = vmatmul.f32.gmra.mxu0 %v1498
        %v2196 = vpop.f32.mrf.mxu0
        %v2197 = vadd.f32 %v2177, %v2196
        %2198 = vdwg.mxu0
        %2199 = vmatpush.xpose.msra.mxu0 0.0
        %2200 = vmatpush.xpose.msra.mxu0 0.0
        %2201 = vmatpush.xpose.msra.mxu0 0.0
        %2202 = vmatpush.xpose.msra.mxu0 0.0
        %2203 = vmatpush.xpose.msra.mxu0 0.0
        %2204 = vmatpush.xpose.msra.mxu0 0.0
        %2205 = vmatpush.xpose.msra.mxu0 0.0
        %2206 = vmatpush.xpose.msra.mxu0 0.0
        %2207 = vmatpush.xpose.msra.mxu0 %v1332
        %2208 = vmatpush.xpose.msra.mxu0 %v1204
        %2209 = vmatpush.xpose.msra.mxu0 %v1076
        %2210 = vmatpush.xpose.msra.mxu0 %v948
        %2211 = vmatpush.xpose.msra.mxu0 %v820
        %2212 = vmatpush.xpose.msra.mxu0 %v692
        %2213 = vmatpush.xpose.msra.mxu0 %v564
        %2214 = vmatpush.xpose.msra.mxu0 %v436
        %2215 = vmatmul.f32.gmra.mxu0 %v1499
        %v2216 = vpop.f32.mrf.mxu0
        %v2217 = vadd.f32 %v2197, %v2216
        %2218 = vdwg.mxu0
        %2219 = vmatpush.xpose.msra.mxu0 0.0
        %2220 = vmatpush.xpose.msra.mxu0 0.0
        %2221 = vmatpush.xpose.msra.mxu0 0.0
        %2222 = vmatpush.xpose.msra.mxu0 0.0
        %2223 = vmatpush.xpose.msra.mxu0 0.0
        %2224 = vmatpush.xpose.msra.mxu0 0.0
        %2225 = vmatpush.xpose.msra.mxu0 0.0
        %2226 = vmatpush.xpose.msra.mxu0 0.0
        %2227 = vmatpush.xpose.msra.mxu0 %v1333
        %2228 = vmatpush.xpose.msra.mxu0 %v1205
        %2229 = vmatpush.xpose.msra.mxu0 %v1077
        %2230 = vmatpush.xpose.msra.mxu0 %v949
        %2231 = vmatpush.xpose.msra.mxu0 %v821
        %2232 = vmatpush.xpose.msra.mxu0 %v693
        %2233 = vmatpush.xpose.msra.mxu0 %v565
        %2234 = vmatpush.xpose.msra.mxu0 %v437
        %2235 = vmatmul.f32.gmra.mxu0 %v1500
        %v2236 = vpop.f32.mrf.mxu0
        %v2237 = vadd.f32 %v2217, %v2236
        %2238 = vdwg.mxu0
        %2239 = vmatpush.xpose.msra.mxu0 0.0
        %2240 = vmatpush.xpose.msra.mxu0 0.0
        %2241 = vmatpush.xpose.msra.mxu0 0.0
        %2242 = vmatpush.xpose.msra.mxu0 0.0
        %2243 = vmatpush.xpose.msra.mxu0 0.0
        %2244 = vmatpush.xpose.msra.mxu0 0.0
        %2245 = vmatpush.xpose.msra.mxu0 0.0
        %2246 = vmatpush.xpose.msra.mxu0 0.0
        %2247 = vmatpush.xpose.msra.mxu0 %v1334
        %2248 = vmatpush.xpose.msra.mxu0 %v1206
        %2249 = vmatpush.xpose.msra.mxu0 %v1078
        %2250 = vmatpush.xpose.msra.mxu0 %v950
        %2251 = vmatpush.xpose.msra.mxu0 %v822
        %2252 = vmatpush.xpose.msra.mxu0 %v694
        %2253 = vmatpush.xpose.msra.mxu0 %v566
        %2254 = vmatpush.xpose.msra.mxu0 %v438
        %2255 = vmatmul.f32.gmra.mxu0 %v1503
        %v2256 = vpop.f32.mrf.mxu0
        %v2257 = vadd.f32 %v2237, %v2256
        %2258 = vdwg.mxu0
        %2259 = vmatpush.xpose.msra.mxu0 0.0
        %2260 = vmatpush.xpose.msra.mxu0 0.0
        %2261 = vmatpush.xpose.msra.mxu0 0.0
        %2262 = vmatpush.xpose.msra.mxu0 0.0
        %2263 = vmatpush.xpose.msra.mxu0 0.0
        %2264 = vmatpush.xpose.msra.mxu0 0.0
        %2265 = vmatpush.xpose.msra.mxu0 0.0
        %2266 = vmatpush.xpose.msra.mxu0 0.0
        %2267 = vmatpush.xpose.msra.mxu0 %v1335
        %2268 = vmatpush.xpose.msra.mxu0 %v1207
        %2269 = vmatpush.xpose.msra.mxu0 %v1079
        %2270 = vmatpush.xpose.msra.mxu0 %v951
        %2271 = vmatpush.xpose.msra.mxu0 %v823
        %2272 = vmatpush.xpose.msra.mxu0 %v695
        %2273 = vmatpush.xpose.msra.mxu0 %v567
        %2274 = vmatpush.xpose.msra.mxu0 %v439
        %2275 = vmatmul.f32.gmra.mxu0 %v1504
        %v2276 = vpop.f32.mrf.mxu0
        %v2277 = vadd.f32 %v2257, %v2276
        %2278 = vdwg.mxu0
        %2279 = vmatpush.xpose.msra.mxu0 0.0
        %2280 = vmatpush.xpose.msra.mxu0 0.0
        %2281 = vmatpush.xpose.msra.mxu0 0.0
        %2282 = vmatpush.xpose.msra.mxu0 0.0
        %2283 = vmatpush.xpose.msra.mxu0 0.0
        %2284 = vmatpush.xpose.msra.mxu0 0.0
        %2285 = vmatpush.xpose.msra.mxu0 0.0
        %2286 = vmatpush.xpose.msra.mxu0 0.0
        %2287 = vmatpush.xpose.msra.mxu0 %v1336
        %2288 = vmatpush.xpose.msra.mxu0 %v1208
        %2289 = vmatpush.xpose.msra.mxu0 %v1080
        %2290 = vmatpush.xpose.msra.mxu0 %v952
        %2291 = vmatpush.xpose.msra.mxu0 %v824
        %2292 = vmatpush.xpose.msra.mxu0 %v696
        %2293 = vmatpush.xpose.msra.mxu0 %v568
        %2294 = vmatpush.xpose.msra.mxu0 %v440
        %2295 = vmatmul.f32.gmra.mxu0 %v1505
        %v2296 = vpop.f32.mrf.mxu0
        %v2297 = vadd.f32 %v2277, %v2296
        %2298 = vdwg.mxu0
        %2299 = vmatpush.xpose.msra.mxu0 0.0
        %2300 = vmatpush.xpose.msra.mxu0 0.0
        %2301 = vmatpush.xpose.msra.mxu0 0.0
        %2302 = vmatpush.xpose.msra.mxu0 0.0
        %2303 = vmatpush.xpose.msra.mxu0 0.0
        %2304 = vmatpush.xpose.msra.mxu0 0.0
        %2305 = vmatpush.xpose.msra.mxu0 0.0
        %2306 = vmatpush.xpose.msra.mxu0 0.0
        %2307 = vmatpush.xpose.msra.mxu0 %v1337
        %2308 = vmatpush.xpose.msra.mxu0 %v1209
        %2309 = vmatpush.xpose.msra.mxu0 %v1081
        %2310 = vmatpush.xpose.msra.mxu0 %v953
        %2311 = vmatpush.xpose.msra.mxu0 %v825
        %2312 = vmatpush.xpose.msra.mxu0 %v697
        %2313 = vmatpush.xpose.msra.mxu0 %v569
        %2314 = vmatpush.xpose.msra.mxu0 %v441
        %2315 = vmatmul.f32.gmra.mxu0 %v1506
        %v2316 = vpop.f32.mrf.mxu0
        %v2317 = vadd.f32 %v2297, %v2316
        %2318 = vdwg.mxu0
        %2319 = vmatpush.xpose.msra.mxu0 0.0
        %2320 = vmatpush.xpose.msra.mxu0 0.0
        %2321 = vmatpush.xpose.msra.mxu0 0.0
        %2322 = vmatpush.xpose.msra.mxu0 0.0
        %2323 = vmatpush.xpose.msra.mxu0 0.0
        %2324 = vmatpush.xpose.msra.mxu0 0.0
        %2325 = vmatpush.xpose.msra.mxu0 0.0
        %2326 = vmatpush.xpose.msra.mxu0 0.0
        %2327 = vmatpush.xpose.msra.mxu0 %v1338
        %2328 = vmatpush.xpose.msra.mxu0 %v1210
        %2329 = vmatpush.xpose.msra.mxu0 %v1082
        %2330 = vmatpush.xpose.msra.mxu0 %v954
        %2331 = vmatpush.xpose.msra.mxu0 %v826
        %2332 = vmatpush.xpose.msra.mxu0 %v698
        %2333 = vmatpush.xpose.msra.mxu0 %v570
        %2334 = vmatpush.xpose.msra.mxu0 %v442
        %2335 = vmatmul.f32.gmra.mxu0 %v1507
        %v2336 = vpop.f32.mrf.mxu0
        %v2337 = vadd.f32 %v2317, %v2336
        %2338 = vdwg.mxu0
        %2339 = vmatpush.xpose.msra.mxu0 0.0
        %2340 = vmatpush.xpose.msra.mxu0 0.0
        %2341 = vmatpush.xpose.msra.mxu0 0.0
        %2342 = vmatpush.xpose.msra.mxu0 0.0
        %2343 = vmatpush.xpose.msra.mxu0 0.0
        %2344 = vmatpush.xpose.msra.mxu0 0.0
        %2345 = vmatpush.xpose.msra.mxu0 0.0
        %2346 = vmatpush.xpose.msra.mxu0 0.0
        %2347 = vmatpush.xpose.msra.mxu0 %v1339
        %2348 = vmatpush.xpose.msra.mxu0 %v1211
        %2349 = vmatpush.xpose.msra.mxu0 %v1083
        %2350 = vmatpush.xpose.msra.mxu0 %v955
        %2351 = vmatpush.xpose.msra.mxu0 %v827
        %2352 = vmatpush.xpose.msra.mxu0 %v699
        %2353 = vmatpush.xpose.msra.mxu0 %v571
        %2354 = vmatpush.xpose.msra.mxu0 %v443
        %2355 = vmatmul.f32.gmra.mxu0 %v1508
        %v2356 = vpop.f32.mrf.mxu0
        %v2357 = vadd.f32 %v2337, %v2356
        %2358 = vdwg.mxu0
        %2359 = vmatpush.xpose.msra.mxu0 0.0
        %2360 = vmatpush.xpose.msra.mxu0 0.0
        %2361 = vmatpush.xpose.msra.mxu0 0.0
        %2362 = vmatpush.xpose.msra.mxu0 0.0
        %2363 = vmatpush.xpose.msra.mxu0 0.0
        %2364 = vmatpush.xpose.msra.mxu0 0.0
        %2365 = vmatpush.xpose.msra.mxu0 0.0
        %2366 = vmatpush.xpose.msra.mxu0 0.0
        %2367 = vmatpush.xpose.msra.mxu0 %v1340
        %2368 = vmatpush.xpose.msra.mxu0 %v1212
        %2369 = vmatpush.xpose.msra.mxu0 %v1084
        %2370 = vmatpush.xpose.msra.mxu0 %v956
        %2371 = vmatpush.xpose.msra.mxu0 %v828
        %2372 = vmatpush.xpose.msra.mxu0 %v700
        %2373 = vmatpush.xpose.msra.mxu0 %v572
        %2374 = vmatpush.xpose.msra.mxu0 %v444
        %2375 = vmatmul.f32.gmra.mxu0 %v1509
        %v2376 = vpop.f32.mrf.mxu0
        %v2377 = vadd.f32 %v2357, %v2376
        %2378 = vdwg.mxu0
        %2379 = vmatpush.xpose.msra.mxu0 0.0
        %2380 = vmatpush.xpose.msra.mxu0 0.0
        %2381 = vmatpush.xpose.msra.mxu0 0.0
        %2382 = vmatpush.xpose.msra.mxu0 0.0
        %2383 = vmatpush.xpose.msra.mxu0 0.0
        %2384 = vmatpush.xpose.msra.mxu0 0.0
        %2385 = vmatpush.xpose.msra.mxu0 0.0
        %2386 = vmatpush.xpose.msra.mxu0 0.0
        %2387 = vmatpush.xpose.msra.mxu0 %v1341
        %2388 = vmatpush.xpose.msra.mxu0 %v1213
        %2389 = vmatpush.xpose.msra.mxu0 %v1085
        %2390 = vmatpush.xpose.msra.mxu0 %v957
        %2391 = vmatpush.xpose.msra.mxu0 %v829
        %2392 = vmatpush.xpose.msra.mxu0 %v701
        %2393 = vmatpush.xpose.msra.mxu0 %v573
        %2394 = vmatpush.xpose.msra.mxu0 %v445
        %2395 = vmatmul.f32.gmra.mxu0 %v1510
        %v2396 = vpop.f32.mrf.mxu0
        %v2397 = vadd.f32 %v2377, %v2396
        %2398 = vdwg.mxu0
        %2399 = vmatpush.xpose.msra.mxu0 0.0
        %2400 = vmatpush.xpose.msra.mxu0 0.0
        %2401 = vmatpush.xpose.msra.mxu0 0.0
        %2402 = vmatpush.xpose.msra.mxu0 0.0
        %2403 = vmatpush.xpose.msra.mxu0 0.0
        %2404 = vmatpush.xpose.msra.mxu0 0.0
        %2405 = vmatpush.xpose.msra.mxu0 0.0
        %2406 = vmatpush.xpose.msra.mxu0 0.0
        %2407 = vmatpush.xpose.msra.mxu0 %v1342
        %2408 = vmatpush.xpose.msra.mxu0 %v1214
        %2409 = vmatpush.xpose.msra.mxu0 %v1086
        %2410 = vmatpush.xpose.msra.mxu0 %v958
        %2411 = vmatpush.xpose.msra.mxu0 %v830
        %2412 = vmatpush.xpose.msra.mxu0 %v702
        %2413 = vmatpush.xpose.msra.mxu0 %v574
        %2414 = vmatpush.xpose.msra.mxu0 %v446
        %2415 = vmatmul.f32.gmra.mxu0 %v1513
        %v2416 = vpop.f32.mrf.mxu0
        %v2417 = vadd.f32 %v2397, %v2416
        %2418 = vdwg.mxu0
        %2419 = vmatpush.xpose.msra.mxu0 0.0
        %2420 = vmatpush.xpose.msra.mxu0 0.0
        %2421 = vmatpush.xpose.msra.mxu0 0.0
        %2422 = vmatpush.xpose.msra.mxu0 0.0
        %2423 = vmatpush.xpose.msra.mxu0 0.0
        %2424 = vmatpush.xpose.msra.mxu0 0.0
        %2425 = vmatpush.xpose.msra.mxu0 0.0
        %2426 = vmatpush.xpose.msra.mxu0 0.0
        %2427 = vmatpush.xpose.msra.mxu0 %v1343
        %2428 = vmatpush.xpose.msra.mxu0 %v1215
        %2429 = vmatpush.xpose.msra.mxu0 %v1087
        %2430 = vmatpush.xpose.msra.mxu0 %v959
        %2431 = vmatpush.xpose.msra.mxu0 %v831
        %2432 = vmatpush.xpose.msra.mxu0 %v703
        %2433 = vmatpush.xpose.msra.mxu0 %v575
        %2434 = vmatpush.xpose.msra.mxu0 %v447
        %2435 = vmatmul.f32.gmra.mxu0 %v1514
        %v2436 = vpop.f32.mrf.mxu0
        %v2437 = vadd.f32 %v2417, %v2436
        %2438 = vdwg.mxu0
        %2439 = vmatpush.xpose.msra.mxu0 0.0
        %2440 = vmatpush.xpose.msra.mxu0 0.0
        %2441 = vmatpush.xpose.msra.mxu0 0.0
        %2442 = vmatpush.xpose.msra.mxu0 0.0
        %2443 = vmatpush.xpose.msra.mxu0 0.0
        %2444 = vmatpush.xpose.msra.mxu0 0.0
        %2445 = vmatpush.xpose.msra.mxu0 0.0
        %2446 = vmatpush.xpose.msra.mxu0 0.0
        %2447 = vmatpush.xpose.msra.mxu0 %v1344
        %2448 = vmatpush.xpose.msra.mxu0 %v1216
        %2449 = vmatpush.xpose.msra.mxu0 %v1088
        %2450 = vmatpush.xpose.msra.mxu0 %v960
        %2451 = vmatpush.xpose.msra.mxu0 %v832
        %2452 = vmatpush.xpose.msra.mxu0 %v704
        %2453 = vmatpush.xpose.msra.mxu0 %v576
        %2454 = vmatpush.xpose.msra.mxu0 %v448
        %2455 = vmatmul.f32.gmra.mxu0 %v1515
        %v2456 = vpop.f32.mrf.mxu0
        %v2457 = vadd.f32 %v2437, %v2456
        %2458 = vdwg.mxu0
        %2459 = vmatpush.xpose.msra.mxu0 0.0
        %2460 = vmatpush.xpose.msra.mxu0 0.0
        %2461 = vmatpush.xpose.msra.mxu0 0.0
        %2462 = vmatpush.xpose.msra.mxu0 0.0
        %2463 = vmatpush.xpose.msra.mxu0 0.0
        %2464 = vmatpush.xpose.msra.mxu0 0.0
        %2465 = vmatpush.xpose.msra.mxu0 0.0
        %2466 = vmatpush.xpose.msra.mxu0 0.0
        %2467 = vmatpush.xpose.msra.mxu0 %v1345
        %2468 = vmatpush.xpose.msra.mxu0 %v1217
        %2469 = vmatpush.xpose.msra.mxu0 %v1089
        %2470 = vmatpush.xpose.msra.mxu0 %v961
        %2471 = vmatpush.xpose.msra.mxu0 %v833
        %2472 = vmatpush.xpose.msra.mxu0 %v705
        %2473 = vmatpush.xpose.msra.mxu0 %v577
        %2474 = vmatpush.xpose.msra.mxu0 %v449
        %2475 = vmatmul.f32.gmra.mxu0 %v1516
        %v2476 = vpop.f32.mrf.mxu0
        %v2477 = vadd.f32 %v2457, %v2476
        %2478 = vdwg.mxu0
        %2479 = vmatpush.xpose.msra.mxu0 0.0
        %2480 = vmatpush.xpose.msra.mxu0 0.0
        %2481 = vmatpush.xpose.msra.mxu0 0.0
        %2482 = vmatpush.xpose.msra.mxu0 0.0
        %2483 = vmatpush.xpose.msra.mxu0 0.0
        %2484 = vmatpush.xpose.msra.mxu0 0.0
        %2485 = vmatpush.xpose.msra.mxu0 0.0
        %2486 = vmatpush.xpose.msra.mxu0 0.0
        %2487 = vmatpush.xpose.msra.mxu0 %v1346
        %2488 = vmatpush.xpose.msra.mxu0 %v1218
        %2489 = vmatpush.xpose.msra.mxu0 %v1090
        %2490 = vmatpush.xpose.msra.mxu0 %v962
        %2491 = vmatpush.xpose.msra.mxu0 %v834
        %2492 = vmatpush.xpose.msra.mxu0 %v706
        %2493 = vmatpush.xpose.msra.mxu0 %v578
        %2494 = vmatpush.xpose.msra.mxu0 %v450
        %2495 = vmatmul.f32.gmra.mxu0 %v1517
        %v2496 = vpop.f32.mrf.mxu0
        %v2497 = vadd.f32 %v2477, %v2496
        %2498 = vdwg.mxu0
        %2499 = vmatpush.xpose.msra.mxu0 0.0
        %2500 = vmatpush.xpose.msra.mxu0 0.0
        %2501 = vmatpush.xpose.msra.mxu0 0.0
        %2502 = vmatpush.xpose.msra.mxu0 0.0
        %2503 = vmatpush.xpose.msra.mxu0 0.0
        %2504 = vmatpush.xpose.msra.mxu0 0.0
        %2505 = vmatpush.xpose.msra.mxu0 0.0
        %2506 = vmatpush.xpose.msra.mxu0 0.0
        %2507 = vmatpush.xpose.msra.mxu0 %v1347
        %2508 = vmatpush.xpose.msra.mxu0 %v1219
        %2509 = vmatpush.xpose.msra.mxu0 %v1091
        %2510 = vmatpush.xpose.msra.mxu0 %v963
        %2511 = vmatpush.xpose.msra.mxu0 %v835
        %2512 = vmatpush.xpose.msra.mxu0 %v707
        %2513 = vmatpush.xpose.msra.mxu0 %v579
        %2514 = vmatpush.xpose.msra.mxu0 %v451
        %2515 = vmatmul.f32.gmra.mxu0 %v1518
        %v2516 = vpop.f32.mrf.mxu0
        %v2517 = vadd.f32 %v2497, %v2516
        %2518 = vdwg.mxu0
        %2519 = vmatpush.xpose.msra.mxu0 0.0
        %2520 = vmatpush.xpose.msra.mxu0 0.0
        %2521 = vmatpush.xpose.msra.mxu0 0.0
        %2522 = vmatpush.xpose.msra.mxu0 0.0
        %2523 = vmatpush.xpose.msra.mxu0 0.0
        %2524 = vmatpush.xpose.msra.mxu0 0.0
        %2525 = vmatpush.xpose.msra.mxu0 0.0
        %2526 = vmatpush.xpose.msra.mxu0 0.0
        %2527 = vmatpush.xpose.msra.mxu0 %v1348
        %2528 = vmatpush.xpose.msra.mxu0 %v1220
        %2529 = vmatpush.xpose.msra.mxu0 %v1092
        %2530 = vmatpush.xpose.msra.mxu0 %v964
        %2531 = vmatpush.xpose.msra.mxu0 %v836
        %2532 = vmatpush.xpose.msra.mxu0 %v708
        %2533 = vmatpush.xpose.msra.mxu0 %v580
        %2534 = vmatpush.xpose.msra.mxu0 %v452
        %2535 = vmatmul.f32.gmra.mxu0 %v1519
        %v2536 = vpop.f32.mrf.mxu0
        %v2537 = vadd.f32 %v2517, %v2536
        %2538 = vdwg.mxu0
        %2539 = vmatpush.xpose.msra.mxu0 0.0
        %2540 = vmatpush.xpose.msra.mxu0 0.0
        %2541 = vmatpush.xpose.msra.mxu0 0.0
        %2542 = vmatpush.xpose.msra.mxu0 0.0
        %2543 = vmatpush.xpose.msra.mxu0 0.0
        %2544 = vmatpush.xpose.msra.mxu0 0.0
        %2545 = vmatpush.xpose.msra.mxu0 0.0
        %2546 = vmatpush.xpose.msra.mxu0 0.0
        %2547 = vmatpush.xpose.msra.mxu0 %v1349
        %2548 = vmatpush.xpose.msra.mxu0 %v1221
        %2549 = vmatpush.xpose.msra.mxu0 %v1093
        %2550 = vmatpush.xpose.msra.mxu0 %v965
        %2551 = vmatpush.xpose.msra.mxu0 %v837
        %2552 = vmatpush.xpose.msra.mxu0 %v709
        %2553 = vmatpush.xpose.msra.mxu0 %v581
        %2554 = vmatpush.xpose.msra.mxu0 %v453
        %2555 = vmatmul.f32.gmra.mxu0 %v1520
        %v2556 = vpop.f32.mrf.mxu0
        %v2557 = vadd.f32 %v2537, %v2556
        %2558 = vdwg.mxu0
        %2559 = vmatpush.xpose.msra.mxu0 0.0
        %2560 = vmatpush.xpose.msra.mxu0 0.0
        %2561 = vmatpush.xpose.msra.mxu0 0.0
        %2562 = vmatpush.xpose.msra.mxu0 0.0
        %2563 = vmatpush.xpose.msra.mxu0 0.0
        %2564 = vmatpush.xpose.msra.mxu0 0.0
        %2565 = vmatpush.xpose.msra.mxu0 0.0
        %2566 = vmatpush.xpose.msra.mxu0 0.0
        %2567 = vmatpush.xpose.msra.mxu0 %v1350
        %2568 = vmatpush.xpose.msra.mxu0 %v1222
        %2569 = vmatpush.xpose.msra.mxu0 %v1094
        %2570 = vmatpush.xpose.msra.mxu0 %v966
        %2571 = vmatpush.xpose.msra.mxu0 %v838
        %2572 = vmatpush.xpose.msra.mxu0 %v710
        %2573 = vmatpush.xpose.msra.mxu0 %v582
        %2574 = vmatpush.xpose.msra.mxu0 %v454
        %2575 = vmatmul.f32.gmra.mxu0 %v1523
        %v2576 = vpop.f32.mrf.mxu0
        %v2577 = vadd.f32 %v2557, %v2576
        %2578 = vdwg.mxu0
        %2579 = vmatpush.xpose.msra.mxu0 0.0
        %2580 = vmatpush.xpose.msra.mxu0 0.0
        %2581 = vmatpush.xpose.msra.mxu0 0.0
        %2582 = vmatpush.xpose.msra.mxu0 0.0
        %2583 = vmatpush.xpose.msra.mxu0 0.0
        %2584 = vmatpush.xpose.msra.mxu0 0.0
        %2585 = vmatpush.xpose.msra.mxu0 0.0
        %2586 = vmatpush.xpose.msra.mxu0 0.0
        %2587 = vmatpush.xpose.msra.mxu0 %v1351
        %2588 = vmatpush.xpose.msra.mxu0 %v1223
        %2589 = vmatpush.xpose.msra.mxu0 %v1095
        %2590 = vmatpush.xpose.msra.mxu0 %v967
        %2591 = vmatpush.xpose.msra.mxu0 %v839
        %2592 = vmatpush.xpose.msra.mxu0 %v711
        %2593 = vmatpush.xpose.msra.mxu0 %v583
        %2594 = vmatpush.xpose.msra.mxu0 %v455
        %2595 = vmatmul.f32.gmra.mxu0 %v1524
        %v2596 = vpop.f32.mrf.mxu0
        %v2597 = vadd.f32 %v2577, %v2596
        %2598 = vdwg.mxu0
        %2599 = vmatpush.xpose.msra.mxu0 0.0
        %2600 = vmatpush.xpose.msra.mxu0 0.0
        %2601 = vmatpush.xpose.msra.mxu0 0.0
        %2602 = vmatpush.xpose.msra.mxu0 0.0
        %2603 = vmatpush.xpose.msra.mxu0 0.0
        %2604 = vmatpush.xpose.msra.mxu0 0.0
        %2605 = vmatpush.xpose.msra.mxu0 0.0
        %2606 = vmatpush.xpose.msra.mxu0 0.0
        %2607 = vmatpush.xpose.msra.mxu0 %v1352
        %2608 = vmatpush.xpose.msra.mxu0 %v1224
        %2609 = vmatpush.xpose.msra.mxu0 %v1096
        %2610 = vmatpush.xpose.msra.mxu0 %v968
        %2611 = vmatpush.xpose.msra.mxu0 %v840
        %2612 = vmatpush.xpose.msra.mxu0 %v712
        %2613 = vmatpush.xpose.msra.mxu0 %v584
        %2614 = vmatpush.xpose.msra.mxu0 %v456
        %2615 = vmatmul.f32.gmra.mxu0 %v1525
        %v2616 = vpop.f32.mrf.mxu0
        %v2617 = vadd.f32 %v2597, %v2616
        %2618 = vdwg.mxu0
        %2619 = vmatpush.xpose.msra.mxu0 0.0
        %2620 = vmatpush.xpose.msra.mxu0 0.0
        %2621 = vmatpush.xpose.msra.mxu0 0.0
        %2622 = vmatpush.xpose.msra.mxu0 0.0
        %2623 = vmatpush.xpose.msra.mxu0 0.0
        %2624 = vmatpush.xpose.msra.mxu0 0.0
        %2625 = vmatpush.xpose.msra.mxu0 0.0
        %2626 = vmatpush.xpose.msra.mxu0 0.0
        %2627 = vmatpush.xpose.msra.mxu0 %v1353
        %2628 = vmatpush.xpose.msra.mxu0 %v1225
        %2629 = vmatpush.xpose.msra.mxu0 %v1097
        %2630 = vmatpush.xpose.msra.mxu0 %v969
        %2631 = vmatpush.xpose.msra.mxu0 %v841
        %2632 = vmatpush.xpose.msra.mxu0 %v713
        %2633 = vmatpush.xpose.msra.mxu0 %v585
        %2634 = vmatpush.xpose.msra.mxu0 %v457
        %2635 = vmatmul.f32.gmra.mxu0 %v1526
        %v2636 = vpop.f32.mrf.mxu0
        %v2637 = vadd.f32 %v2617, %v2636
        %2638 = vdwg.mxu0
        %2639 = vmatpush.xpose.msra.mxu0 0.0
        %2640 = vmatpush.xpose.msra.mxu0 0.0
        %2641 = vmatpush.xpose.msra.mxu0 0.0
        %2642 = vmatpush.xpose.msra.mxu0 0.0
        %2643 = vmatpush.xpose.msra.mxu0 0.0
        %2644 = vmatpush.xpose.msra.mxu0 0.0
        %2645 = vmatpush.xpose.msra.mxu0 0.0
        %2646 = vmatpush.xpose.msra.mxu0 0.0
        %2647 = vmatpush.xpose.msra.mxu0 %v1354
        %2648 = vmatpush.xpose.msra.mxu0 %v1226
        %2649 = vmatpush.xpose.msra.mxu0 %v1098
        %2650 = vmatpush.xpose.msra.mxu0 %v970
        %2651 = vmatpush.xpose.msra.mxu0 %v842
        %2652 = vmatpush.xpose.msra.mxu0 %v714
        %2653 = vmatpush.xpose.msra.mxu0 %v586
        %2654 = vmatpush.xpose.msra.mxu0 %v458
        %2655 = vmatmul.f32.gmra.mxu0 %v1527
        %v2656 = vpop.f32.mrf.mxu0
        %v2657 = vadd.f32 %v2637, %v2656
        %2658 = vdwg.mxu0
        %2659 = vmatpush.xpose.msra.mxu0 0.0
        %2660 = vmatpush.xpose.msra.mxu0 0.0
        %2661 = vmatpush.xpose.msra.mxu0 0.0
        %2662 = vmatpush.xpose.msra.mxu0 0.0
        %2663 = vmatpush.xpose.msra.mxu0 0.0
        %2664 = vmatpush.xpose.msra.mxu0 0.0
        %2665 = vmatpush.xpose.msra.mxu0 0.0
        %2666 = vmatpush.xpose.msra.mxu0 0.0
        %2667 = vmatpush.xpose.msra.mxu0 %v1355
        %2668 = vmatpush.xpose.msra.mxu0 %v1227
        %2669 = vmatpush.xpose.msra.mxu0 %v1099
        %2670 = vmatpush.xpose.msra.mxu0 %v971
        %2671 = vmatpush.xpose.msra.mxu0 %v843
        %2672 = vmatpush.xpose.msra.mxu0 %v715
        %2673 = vmatpush.xpose.msra.mxu0 %v587
        %2674 = vmatpush.xpose.msra.mxu0 %v459
        %2675 = vmatmul.f32.gmra.mxu0 %v1528
        %v2676 = vpop.f32.mrf.mxu0
        %v2677 = vadd.f32 %v2657, %v2676
        %2678 = vdwg.mxu0
        %2679 = vmatpush.xpose.msra.mxu0 0.0
        %2680 = vmatpush.xpose.msra.mxu0 0.0
        %2681 = vmatpush.xpose.msra.mxu0 0.0
        %2682 = vmatpush.xpose.msra.mxu0 0.0
        %2683 = vmatpush.xpose.msra.mxu0 0.0
        %2684 = vmatpush.xpose.msra.mxu0 0.0
        %2685 = vmatpush.xpose.msra.mxu0 0.0
        %2686 = vmatpush.xpose.msra.mxu0 0.0
        %2687 = vmatpush.xpose.msra.mxu0 %v1356
        %2688 = vmatpush.xpose.msra.mxu0 %v1228
        %2689 = vmatpush.xpose.msra.mxu0 %v1100
        %2690 = vmatpush.xpose.msra.mxu0 %v972
        %2691 = vmatpush.xpose.msra.mxu0 %v844
        %2692 = vmatpush.xpose.msra.mxu0 %v716
        %2693 = vmatpush.xpose.msra.mxu0 %v588
        %2694 = vmatpush.xpose.msra.mxu0 %v460
        %2695 = vmatmul.f32.gmra.mxu0 %v1529
        %v2696 = vpop.f32.mrf.mxu0
        %v2697 = vadd.f32 %v2677, %v2696
        %2698 = vdwg.mxu0
        %2699 = vmatpush.xpose.msra.mxu0 0.0
        %2700 = vmatpush.xpose.msra.mxu0 0.0
        %2701 = vmatpush.xpose.msra.mxu0 0.0
        %2702 = vmatpush.xpose.msra.mxu0 0.0
        %2703 = vmatpush.xpose.msra.mxu0 0.0
        %2704 = vmatpush.xpose.msra.mxu0 0.0
        %2705 = vmatpush.xpose.msra.mxu0 0.0
        %2706 = vmatpush.xpose.msra.mxu0 0.0
        %2707 = vmatpush.xpose.msra.mxu0 %v1357
        %2708 = vmatpush.xpose.msra.mxu0 %v1229
        %2709 = vmatpush.xpose.msra.mxu0 %v1101
        %2710 = vmatpush.xpose.msra.mxu0 %v973
        %2711 = vmatpush.xpose.msra.mxu0 %v845
        %2712 = vmatpush.xpose.msra.mxu0 %v717
        %2713 = vmatpush.xpose.msra.mxu0 %v589
        %2714 = vmatpush.xpose.msra.mxu0 %v461
        %2715 = vmatmul.f32.gmra.mxu0 %v1530
        %v2716 = vpop.f32.mrf.mxu0
        %v2717 = vadd.f32 %v2697, %v2716
        %2718 = vdwg.mxu0
        %2719 = vmatpush.xpose.msra.mxu0 0.0
        %2720 = vmatpush.xpose.msra.mxu0 0.0
        %2721 = vmatpush.xpose.msra.mxu0 0.0
        %2722 = vmatpush.xpose.msra.mxu0 0.0
        %2723 = vmatpush.xpose.msra.mxu0 0.0
        %2724 = vmatpush.xpose.msra.mxu0 0.0
        %2725 = vmatpush.xpose.msra.mxu0 0.0
        %2726 = vmatpush.xpose.msra.mxu0 0.0
        %2727 = vmatpush.xpose.msra.mxu0 %v1358
        %2728 = vmatpush.xpose.msra.mxu0 %v1230
        %2729 = vmatpush.xpose.msra.mxu0 %v1102
        %2730 = vmatpush.xpose.msra.mxu0 %v974
        %2731 = vmatpush.xpose.msra.mxu0 %v846
        %2732 = vmatpush.xpose.msra.mxu0 %v718
        %2733 = vmatpush.xpose.msra.mxu0 %v590
        %2734 = vmatpush.xpose.msra.mxu0 %v462
        %2735 = vmatmul.f32.gmra.mxu0 %v1533
        %v2736 = vpop.f32.mrf.mxu0
        %v2737 = vadd.f32 %v2717, %v2736
        %2738 = vdwg.mxu0
        %2739 = vmatpush.xpose.msra.mxu0 0.0
        %2740 = vmatpush.xpose.msra.mxu0 0.0
        %2741 = vmatpush.xpose.msra.mxu0 0.0
        %2742 = vmatpush.xpose.msra.mxu0 0.0
        %2743 = vmatpush.xpose.msra.mxu0 0.0
        %2744 = vmatpush.xpose.msra.mxu0 0.0
        %2745 = vmatpush.xpose.msra.mxu0 0.0
        %2746 = vmatpush.xpose.msra.mxu0 0.0
        %2747 = vmatpush.xpose.msra.mxu0 %v1359
        %2748 = vmatpush.xpose.msra.mxu0 %v1231
        %2749 = vmatpush.xpose.msra.mxu0 %v1103
        %2750 = vmatpush.xpose.msra.mxu0 %v975
        %2751 = vmatpush.xpose.msra.mxu0 %v847
        %2752 = vmatpush.xpose.msra.mxu0 %v719
        %2753 = vmatpush.xpose.msra.mxu0 %v591
        %2754 = vmatpush.xpose.msra.mxu0 %v463
        %2755 = vmatmul.f32.gmra.mxu0 %v1534
        %v2756 = vpop.f32.mrf.mxu0
        %v2757 = vadd.f32 %v2737, %v2756
        %2758 = vdwg.mxu0
        %2759 = vmatpush.xpose.msra.mxu0 0.0
        %2760 = vmatpush.xpose.msra.mxu0 0.0
        %2761 = vmatpush.xpose.msra.mxu0 0.0
        %2762 = vmatpush.xpose.msra.mxu0 0.0
        %2763 = vmatpush.xpose.msra.mxu0 0.0
        %2764 = vmatpush.xpose.msra.mxu0 0.0
        %2765 = vmatpush.xpose.msra.mxu0 0.0
        %2766 = vmatpush.xpose.msra.mxu0 0.0
        %2767 = vmatpush.xpose.msra.mxu0 %v1360
        %2768 = vmatpush.xpose.msra.mxu0 %v1232
        %2769 = vmatpush.xpose.msra.mxu0 %v1104
        %2770 = vmatpush.xpose.msra.mxu0 %v976
        %2771 = vmatpush.xpose.msra.mxu0 %v848
        %2772 = vmatpush.xpose.msra.mxu0 %v720
        %2773 = vmatpush.xpose.msra.mxu0 %v592
        %2774 = vmatpush.xpose.msra.mxu0 %v464
        %2775 = vmatmul.f32.gmra.mxu0 %v1535
        %v2776 = vpop.f32.mrf.mxu0
        %v2777 = vadd.f32 %v2757, %v2776
        %2778 = vdwg.mxu0
        %2779 = vmatpush.xpose.msra.mxu0 0.0
        %2780 = vmatpush.xpose.msra.mxu0 0.0
        %2781 = vmatpush.xpose.msra.mxu0 0.0
        %2782 = vmatpush.xpose.msra.mxu0 0.0
        %2783 = vmatpush.xpose.msra.mxu0 0.0
        %2784 = vmatpush.xpose.msra.mxu0 0.0
        %2785 = vmatpush.xpose.msra.mxu0 0.0
        %2786 = vmatpush.xpose.msra.mxu0 0.0
        %2787 = vmatpush.xpose.msra.mxu0 %v1361
        %2788 = vmatpush.xpose.msra.mxu0 %v1233
        %2789 = vmatpush.xpose.msra.mxu0 %v1105
        %2790 = vmatpush.xpose.msra.mxu0 %v977
        %2791 = vmatpush.xpose.msra.mxu0 %v849
        %2792 = vmatpush.xpose.msra.mxu0 %v721
        %2793 = vmatpush.xpose.msra.mxu0 %v593
        %2794 = vmatpush.xpose.msra.mxu0 %v465
        %2795 = vmatmul.f32.gmra.mxu0 %v1536
        %v2796 = vpop.f32.mrf.mxu0
        %v2797 = vadd.f32 %v2777, %v2796
        %2798 = vdwg.mxu0
        %2799 = vmatpush.xpose.msra.mxu0 0.0
        %2800 = vmatpush.xpose.msra.mxu0 0.0
        %2801 = vmatpush.xpose.msra.mxu0 0.0
        %2802 = vmatpush.xpose.msra.mxu0 0.0
        %2803 = vmatpush.xpose.msra.mxu0 0.0
        %2804 = vmatpush.xpose.msra.mxu0 0.0
        %2805 = vmatpush.xpose.msra.mxu0 0.0
        %2806 = vmatpush.xpose.msra.mxu0 0.0
        %2807 = vmatpush.xpose.msra.mxu0 %v1362
        %2808 = vmatpush.xpose.msra.mxu0 %v1234
        %2809 = vmatpush.xpose.msra.mxu0 %v1106
        %2810 = vmatpush.xpose.msra.mxu0 %v978
        %2811 = vmatpush.xpose.msra.mxu0 %v850
        %2812 = vmatpush.xpose.msra.mxu0 %v722
        %2813 = vmatpush.xpose.msra.mxu0 %v594
        %2814 = vmatpush.xpose.msra.mxu0 %v466
        %2815 = vmatmul.f32.gmra.mxu0 %v1537
        %v2816 = vpop.f32.mrf.mxu0
        %v2817 = vadd.f32 %v2797, %v2816
        %2818 = vdwg.mxu0
        %2819 = vmatpush.xpose.msra.mxu0 0.0
        %2820 = vmatpush.xpose.msra.mxu0 0.0
        %2821 = vmatpush.xpose.msra.mxu0 0.0
        %2822 = vmatpush.xpose.msra.mxu0 0.0
        %2823 = vmatpush.xpose.msra.mxu0 0.0
        %2824 = vmatpush.xpose.msra.mxu0 0.0
        %2825 = vmatpush.xpose.msra.mxu0 0.0
        %2826 = vmatpush.xpose.msra.mxu0 0.0
        %2827 = vmatpush.xpose.msra.mxu0 %v1363
        %2828 = vmatpush.xpose.msra.mxu0 %v1235
        %2829 = vmatpush.xpose.msra.mxu0 %v1107
        %2830 = vmatpush.xpose.msra.mxu0 %v979
        %2831 = vmatpush.xpose.msra.mxu0 %v851
        %2832 = vmatpush.xpose.msra.mxu0 %v723
        %2833 = vmatpush.xpose.msra.mxu0 %v595
        %2834 = vmatpush.xpose.msra.mxu0 %v467
        %2835 = vmatmul.f32.gmra.mxu0 %v1538
        %v2836 = vpop.f32.mrf.mxu0
        %v2837 = vadd.f32 %v2817, %v2836
        %2838 = vdwg.mxu0
        %2839 = vmatpush.xpose.msra.mxu0 0.0
        %2840 = vmatpush.xpose.msra.mxu0 0.0
        %2841 = vmatpush.xpose.msra.mxu0 0.0
        %2842 = vmatpush.xpose.msra.mxu0 0.0
        %2843 = vmatpush.xpose.msra.mxu0 0.0
        %2844 = vmatpush.xpose.msra.mxu0 0.0
        %2845 = vmatpush.xpose.msra.mxu0 0.0
        %2846 = vmatpush.xpose.msra.mxu0 0.0
        %2847 = vmatpush.xpose.msra.mxu0 %v1364
        %2848 = vmatpush.xpose.msra.mxu0 %v1236
        %2849 = vmatpush.xpose.msra.mxu0 %v1108
        %2850 = vmatpush.xpose.msra.mxu0 %v980
        %2851 = vmatpush.xpose.msra.mxu0 %v852
        %2852 = vmatpush.xpose.msra.mxu0 %v724
        %2853 = vmatpush.xpose.msra.mxu0 %v596
        %2854 = vmatpush.xpose.msra.mxu0 %v468
        %2855 = vmatmul.f32.gmra.mxu0 %v1539
        %v2856 = vpop.f32.mrf.mxu0
        %v2857 = vadd.f32 %v2837, %v2856
        %2858 = vdwg.mxu0
        %2859 = vmatpush.xpose.msra.mxu0 0.0
        %2860 = vmatpush.xpose.msra.mxu0 0.0
        %2861 = vmatpush.xpose.msra.mxu0 0.0
        %2862 = vmatpush.xpose.msra.mxu0 0.0
        %2863 = vmatpush.xpose.msra.mxu0 0.0
        %2864 = vmatpush.xpose.msra.mxu0 0.0
        %2865 = vmatpush.xpose.msra.mxu0 0.0
        %2866 = vmatpush.xpose.msra.mxu0 0.0
        %2867 = vmatpush.xpose.msra.mxu0 %v1365
        %2868 = vmatpush.xpose.msra.mxu0 %v1237
        %2869 = vmatpush.xpose.msra.mxu0 %v1109
        %2870 = vmatpush.xpose.msra.mxu0 %v981
        %2871 = vmatpush.xpose.msra.mxu0 %v853
        %2872 = vmatpush.xpose.msra.mxu0 %v725
        %2873 = vmatpush.xpose.msra.mxu0 %v597
        %2874 = vmatpush.xpose.msra.mxu0 %v469
        %2875 = vmatmul.f32.gmra.mxu0 %v1540
        %v2876 = vpop.f32.mrf.mxu0
        %v2877 = vadd.f32 %v2857, %v2876
        %2878 = vdwg.mxu0
        %2879 = vmatpush.xpose.msra.mxu0 0.0
        %2880 = vmatpush.xpose.msra.mxu0 0.0
        %2881 = vmatpush.xpose.msra.mxu0 0.0
        %2882 = vmatpush.xpose.msra.mxu0 0.0
        %2883 = vmatpush.xpose.msra.mxu0 0.0
        %2884 = vmatpush.xpose.msra.mxu0 0.0
        %2885 = vmatpush.xpose.msra.mxu0 0.0
        %2886 = vmatpush.xpose.msra.mxu0 0.0
        %2887 = vmatpush.xpose.msra.mxu0 %v1366
        %2888 = vmatpush.xpose.msra.mxu0 %v1238
        %2889 = vmatpush.xpose.msra.mxu0 %v1110
        %2890 = vmatpush.xpose.msra.mxu0 %v982
        %2891 = vmatpush.xpose.msra.mxu0 %v854
        %2892 = vmatpush.xpose.msra.mxu0 %v726
        %2893 = vmatpush.xpose.msra.mxu0 %v598
        %2894 = vmatpush.xpose.msra.mxu0 %v470
        %2895 = vmatmul.f32.gmra.mxu0 %v1543
        %v2896 = vpop.f32.mrf.mxu0
        %v2897 = vadd.f32 %v2877, %v2896
        %2898 = vdwg.mxu0
        %2899 = vmatpush.xpose.msra.mxu0 0.0
        %2900 = vmatpush.xpose.msra.mxu0 0.0
        %2901 = vmatpush.xpose.msra.mxu0 0.0
        %2902 = vmatpush.xpose.msra.mxu0 0.0
        %2903 = vmatpush.xpose.msra.mxu0 0.0
        %2904 = vmatpush.xpose.msra.mxu0 0.0
        %2905 = vmatpush.xpose.msra.mxu0 0.0
        %2906 = vmatpush.xpose.msra.mxu0 0.0
        %2907 = vmatpush.xpose.msra.mxu0 %v1367
        %2908 = vmatpush.xpose.msra.mxu0 %v1239
        %2909 = vmatpush.xpose.msra.mxu0 %v1111
        %2910 = vmatpush.xpose.msra.mxu0 %v983
        %2911 = vmatpush.xpose.msra.mxu0 %v855
        %2912 = vmatpush.xpose.msra.mxu0 %v727
        %2913 = vmatpush.xpose.msra.mxu0 %v599
        %2914 = vmatpush.xpose.msra.mxu0 %v471
        %2915 = vmatmul.f32.gmra.mxu0 %v1544
        %v2916 = vpop.f32.mrf.mxu0
        %v2917 = vadd.f32 %v2897, %v2916
        %2918 = vdwg.mxu0
        %2919 = vmatpush.xpose.msra.mxu0 0.0
        %2920 = vmatpush.xpose.msra.mxu0 0.0
        %2921 = vmatpush.xpose.msra.mxu0 0.0
        %2922 = vmatpush.xpose.msra.mxu0 0.0
        %2923 = vmatpush.xpose.msra.mxu0 0.0
        %2924 = vmatpush.xpose.msra.mxu0 0.0
        %2925 = vmatpush.xpose.msra.mxu0 0.0
        %2926 = vmatpush.xpose.msra.mxu0 0.0
        %2927 = vmatpush.xpose.msra.mxu0 %v1368
        %2928 = vmatpush.xpose.msra.mxu0 %v1240
        %2929 = vmatpush.xpose.msra.mxu0 %v1112
        %2930 = vmatpush.xpose.msra.mxu0 %v984
        %2931 = vmatpush.xpose.msra.mxu0 %v856
        %2932 = vmatpush.xpose.msra.mxu0 %v728
        %2933 = vmatpush.xpose.msra.mxu0 %v600
        %2934 = vmatpush.xpose.msra.mxu0 %v472
        %2935 = vmatmul.f32.gmra.mxu0 %v1545
        %v2936 = vpop.f32.mrf.mxu0
        %v2937 = vadd.f32 %v2917, %v2936
        %2938 = vdwg.mxu0
        %2939 = vmatpush.xpose.msra.mxu0 0.0
        %2940 = vmatpush.xpose.msra.mxu0 0.0
        %2941 = vmatpush.xpose.msra.mxu0 0.0
        %2942 = vmatpush.xpose.msra.mxu0 0.0
        %2943 = vmatpush.xpose.msra.mxu0 0.0
        %2944 = vmatpush.xpose.msra.mxu0 0.0
        %2945 = vmatpush.xpose.msra.mxu0 0.0
        %2946 = vmatpush.xpose.msra.mxu0 0.0
        %2947 = vmatpush.xpose.msra.mxu0 %v1369
        %2948 = vmatpush.xpose.msra.mxu0 %v1241
        %2949 = vmatpush.xpose.msra.mxu0 %v1113
        %2950 = vmatpush.xpose.msra.mxu0 %v985
        %2951 = vmatpush.xpose.msra.mxu0 %v857
        %2952 = vmatpush.xpose.msra.mxu0 %v729
        %2953 = vmatpush.xpose.msra.mxu0 %v601
        %2954 = vmatpush.xpose.msra.mxu0 %v473
        %2955 = vmatmul.f32.gmra.mxu0 %v1546
        %v2956 = vpop.f32.mrf.mxu0
        %v2957 = vadd.f32 %v2937, %v2956
        %2958 = vdwg.mxu0
        %2959 = vmatpush.xpose.msra.mxu0 0.0
        %2960 = vmatpush.xpose.msra.mxu0 0.0
        %2961 = vmatpush.xpose.msra.mxu0 0.0
        %2962 = vmatpush.xpose.msra.mxu0 0.0
        %2963 = vmatpush.xpose.msra.mxu0 0.0
        %2964 = vmatpush.xpose.msra.mxu0 0.0
        %2965 = vmatpush.xpose.msra.mxu0 0.0
        %2966 = vmatpush.xpose.msra.mxu0 0.0
        %2967 = vmatpush.xpose.msra.mxu0 %v1370
        %2968 = vmatpush.xpose.msra.mxu0 %v1242
        %2969 = vmatpush.xpose.msra.mxu0 %v1114
        %2970 = vmatpush.xpose.msra.mxu0 %v986
        %2971 = vmatpush.xpose.msra.mxu0 %v858
        %2972 = vmatpush.xpose.msra.mxu0 %v730
        %2973 = vmatpush.xpose.msra.mxu0 %v602
        %2974 = vmatpush.xpose.msra.mxu0 %v474
        %2975 = vmatmul.f32.gmra.mxu0 %v1547
        %v2976 = vpop.f32.mrf.mxu0
        %v2977 = vadd.f32 %v2957, %v2976
        %2978 = vdwg.mxu0
        %2979 = vmatpush.xpose.msra.mxu0 0.0
        %2980 = vmatpush.xpose.msra.mxu0 0.0
        %2981 = vmatpush.xpose.msra.mxu0 0.0
        %2982 = vmatpush.xpose.msra.mxu0 0.0
        %2983 = vmatpush.xpose.msra.mxu0 0.0
        %2984 = vmatpush.xpose.msra.mxu0 0.0
        %2985 = vmatpush.xpose.msra.mxu0 0.0
        %2986 = vmatpush.xpose.msra.mxu0 0.0
        %2987 = vmatpush.xpose.msra.mxu0 %v1371
        %2988 = vmatpush.xpose.msra.mxu0 %v1243
        %2989 = vmatpush.xpose.msra.mxu0 %v1115
        %2990 = vmatpush.xpose.msra.mxu0 %v987
        %2991 = vmatpush.xpose.msra.mxu0 %v859
        %2992 = vmatpush.xpose.msra.mxu0 %v731
        %2993 = vmatpush.xpose.msra.mxu0 %v603
        %2994 = vmatpush.xpose.msra.mxu0 %v475
        %2995 = vmatmul.f32.gmra.mxu0 %v1548
        %v2996 = vpop.f32.mrf.mxu0
        %v2997 = vadd.f32 %v2977, %v2996
        %2998 = vdwg.mxu0
        %2999 = vmatpush.xpose.msra.mxu0 0.0
        %3000 = vmatpush.xpose.msra.mxu0 0.0
        %3001 = vmatpush.xpose.msra.mxu0 0.0
        %3002 = vmatpush.xpose.msra.mxu0 0.0
        %3003 = vmatpush.xpose.msra.mxu0 0.0
        %3004 = vmatpush.xpose.msra.mxu0 0.0
        %3005 = vmatpush.xpose.msra.mxu0 0.0
        %3006 = vmatpush.xpose.msra.mxu0 0.0
        %3007 = vmatpush.xpose.msra.mxu0 %v1372
        %3008 = vmatpush.xpose.msra.mxu0 %v1244
        %3009 = vmatpush.xpose.msra.mxu0 %v1116
        %3010 = vmatpush.xpose.msra.mxu0 %v988
        %3011 = vmatpush.xpose.msra.mxu0 %v860
        %3012 = vmatpush.xpose.msra.mxu0 %v732
        %3013 = vmatpush.xpose.msra.mxu0 %v604
        %3014 = vmatpush.xpose.msra.mxu0 %v476
        %3015 = vmatmul.f32.gmra.mxu0 %v1549
        %v3016 = vpop.f32.mrf.mxu0
        %v3017 = vadd.f32 %v2997, %v3016
        %3018 = vdwg.mxu0
        %3019 = vmatpush.xpose.msra.mxu0 0.0
        %3020 = vmatpush.xpose.msra.mxu0 0.0
        %3021 = vmatpush.xpose.msra.mxu0 0.0
        %3022 = vmatpush.xpose.msra.mxu0 0.0
        %3023 = vmatpush.xpose.msra.mxu0 0.0
        %3024 = vmatpush.xpose.msra.mxu0 0.0
        %3025 = vmatpush.xpose.msra.mxu0 0.0
        %3026 = vmatpush.xpose.msra.mxu0 0.0
        %3027 = vmatpush.xpose.msra.mxu0 %v1373
        %3028 = vmatpush.xpose.msra.mxu0 %v1245
        %3029 = vmatpush.xpose.msra.mxu0 %v1117
        %3030 = vmatpush.xpose.msra.mxu0 %v989
        %3031 = vmatpush.xpose.msra.mxu0 %v861
        %3032 = vmatpush.xpose.msra.mxu0 %v733
        %3033 = vmatpush.xpose.msra.mxu0 %v605
        %3034 = vmatpush.xpose.msra.mxu0 %v477
        %3035 = vmatmul.f32.gmra.mxu0 %v1550
        %v3036 = vpop.f32.mrf.mxu0
        %v3037 = vadd.f32 %v3017, %v3036
        %3038 = vdwg.mxu0
        %3039 = vmatpush.xpose.msra.mxu0 0.0
        %3040 = vmatpush.xpose.msra.mxu0 0.0
        %3041 = vmatpush.xpose.msra.mxu0 0.0
        %3042 = vmatpush.xpose.msra.mxu0 0.0
        %3043 = vmatpush.xpose.msra.mxu0 0.0
        %3044 = vmatpush.xpose.msra.mxu0 0.0
        %3045 = vmatpush.xpose.msra.mxu0 0.0
        %3046 = vmatpush.xpose.msra.mxu0 0.0
        %3047 = vmatpush.xpose.msra.mxu0 %v1374
        %3048 = vmatpush.xpose.msra.mxu0 %v1246
        %3049 = vmatpush.xpose.msra.mxu0 %v1118
        %3050 = vmatpush.xpose.msra.mxu0 %v990
        %3051 = vmatpush.xpose.msra.mxu0 %v862
        %3052 = vmatpush.xpose.msra.mxu0 %v734
        %3053 = vmatpush.xpose.msra.mxu0 %v606
        %3054 = vmatpush.xpose.msra.mxu0 %v478
        %3055 = vmatmul.f32.gmra.mxu0 %v1553
        %v3056 = vpop.f32.mrf.mxu0
        %v3057 = vadd.f32 %v3037, %v3056
        %3058 = vdwg.mxu0
        %3059 = vmatpush.xpose.msra.mxu0 0.0
        %3060 = vmatpush.xpose.msra.mxu0 0.0
        %3061 = vmatpush.xpose.msra.mxu0 0.0
        %3062 = vmatpush.xpose.msra.mxu0 0.0
        %3063 = vmatpush.xpose.msra.mxu0 0.0
        %3064 = vmatpush.xpose.msra.mxu0 0.0
        %3065 = vmatpush.xpose.msra.mxu0 0.0
        %3066 = vmatpush.xpose.msra.mxu0 0.0
        %3067 = vmatpush.xpose.msra.mxu0 %v1375
        %3068 = vmatpush.xpose.msra.mxu0 %v1247
        %3069 = vmatpush.xpose.msra.mxu0 %v1119
        %3070 = vmatpush.xpose.msra.mxu0 %v991
        %3071 = vmatpush.xpose.msra.mxu0 %v863
        %3072 = vmatpush.xpose.msra.mxu0 %v735
        %3073 = vmatpush.xpose.msra.mxu0 %v607
        %3074 = vmatpush.xpose.msra.mxu0 %v479
        %3075 = vmatmul.f32.gmra.mxu0 %v1554
        %v3076 = vpop.f32.mrf.mxu0
        %v3077 = vadd.f32 %v3057, %v3076
        %3078 = vdwg.mxu0
        %3079 = vmatpush.xpose.msra.mxu0 0.0
        %3080 = vmatpush.xpose.msra.mxu0 0.0
        %3081 = vmatpush.xpose.msra.mxu0 0.0
        %3082 = vmatpush.xpose.msra.mxu0 0.0
        %3083 = vmatpush.xpose.msra.mxu0 0.0
        %3084 = vmatpush.xpose.msra.mxu0 0.0
        %3085 = vmatpush.xpose.msra.mxu0 0.0
        %3086 = vmatpush.xpose.msra.mxu0 0.0
        %3087 = vmatpush.xpose.msra.mxu0 %v1376
        %3088 = vmatpush.xpose.msra.mxu0 %v1248
        %3089 = vmatpush.xpose.msra.mxu0 %v1120
        %3090 = vmatpush.xpose.msra.mxu0 %v992
        %3091 = vmatpush.xpose.msra.mxu0 %v864
        %3092 = vmatpush.xpose.msra.mxu0 %v736
        %3093 = vmatpush.xpose.msra.mxu0 %v608
        %3094 = vmatpush.xpose.msra.mxu0 %v480
        %3095 = vmatmul.f32.gmra.mxu0 %v1555
        %v3096 = vpop.f32.mrf.mxu0
        %v3097 = vadd.f32 %v3077, %v3096
        %3098 = vdwg.mxu0
        %3099 = vmatpush.xpose.msra.mxu0 0.0
        %3100 = vmatpush.xpose.msra.mxu0 0.0
        %3101 = vmatpush.xpose.msra.mxu0 0.0
        %3102 = vmatpush.xpose.msra.mxu0 0.0
        %3103 = vmatpush.xpose.msra.mxu0 0.0
        %3104 = vmatpush.xpose.msra.mxu0 0.0
        %3105 = vmatpush.xpose.msra.mxu0 0.0
        %3106 = vmatpush.xpose.msra.mxu0 0.0
        %3107 = vmatpush.xpose.msra.mxu0 %v1377
        %3108 = vmatpush.xpose.msra.mxu0 %v1249
        %3109 = vmatpush.xpose.msra.mxu0 %v1121
        %3110 = vmatpush.xpose.msra.mxu0 %v993
        %3111 = vmatpush.xpose.msra.mxu0 %v865
        %3112 = vmatpush.xpose.msra.mxu0 %v737
        %3113 = vmatpush.xpose.msra.mxu0 %v609
        %3114 = vmatpush.xpose.msra.mxu0 %v481
        %3115 = vmatmul.f32.gmra.mxu0 %v1556
        %v3116 = vpop.f32.mrf.mxu0
        %v3117 = vadd.f32 %v3097, %v3116
        %3118 = vdwg.mxu0
        %3119 = vmatpush.xpose.msra.mxu0 0.0
        %3120 = vmatpush.xpose.msra.mxu0 0.0
        %3121 = vmatpush.xpose.msra.mxu0 0.0
        %3122 = vmatpush.xpose.msra.mxu0 0.0
        %3123 = vmatpush.xpose.msra.mxu0 0.0
        %3124 = vmatpush.xpose.msra.mxu0 0.0
        %3125 = vmatpush.xpose.msra.mxu0 0.0
        %3126 = vmatpush.xpose.msra.mxu0 0.0
        %3127 = vmatpush.xpose.msra.mxu0 %v1378
        %3128 = vmatpush.xpose.msra.mxu0 %v1250
        %3129 = vmatpush.xpose.msra.mxu0 %v1122
        %3130 = vmatpush.xpose.msra.mxu0 %v994
        %3131 = vmatpush.xpose.msra.mxu0 %v866
        %3132 = vmatpush.xpose.msra.mxu0 %v738
        %3133 = vmatpush.xpose.msra.mxu0 %v610
        %3134 = vmatpush.xpose.msra.mxu0 %v482
        %3135 = vmatmul.f32.gmra.mxu0 %v1557
        %v3136 = vpop.f32.mrf.mxu0
        %v3137 = vadd.f32 %v3117, %v3136
        %3138 = vdwg.mxu0
        %3139 = vmatpush.xpose.msra.mxu0 0.0
        %3140 = vmatpush.xpose.msra.mxu0 0.0
        %3141 = vmatpush.xpose.msra.mxu0 0.0
        %3142 = vmatpush.xpose.msra.mxu0 0.0
        %3143 = vmatpush.xpose.msra.mxu0 0.0
        %3144 = vmatpush.xpose.msra.mxu0 0.0
        %3145 = vmatpush.xpose.msra.mxu0 0.0
        %3146 = vmatpush.xpose.msra.mxu0 0.0
        %3147 = vmatpush.xpose.msra.mxu0 %v1379
        %3148 = vmatpush.xpose.msra.mxu0 %v1251
        %3149 = vmatpush.xpose.msra.mxu0 %v1123
        %3150 = vmatpush.xpose.msra.mxu0 %v995
        %3151 = vmatpush.xpose.msra.mxu0 %v867
        %3152 = vmatpush.xpose.msra.mxu0 %v739
        %3153 = vmatpush.xpose.msra.mxu0 %v611
        %3154 = vmatpush.xpose.msra.mxu0 %v483
        %3155 = vmatmul.f32.gmra.mxu0 %v1558
        %v3156 = vpop.f32.mrf.mxu0
        %v3157 = vadd.f32 %v3137, %v3156
        %3158 = vdwg.mxu0
        %3159 = vmatpush.xpose.msra.mxu0 0.0
        %3160 = vmatpush.xpose.msra.mxu0 0.0
        %3161 = vmatpush.xpose.msra.mxu0 0.0
        %3162 = vmatpush.xpose.msra.mxu0 0.0
        %3163 = vmatpush.xpose.msra.mxu0 0.0
        %3164 = vmatpush.xpose.msra.mxu0 0.0
        %3165 = vmatpush.xpose.msra.mxu0 0.0
        %3166 = vmatpush.xpose.msra.mxu0 0.0
        %3167 = vmatpush.xpose.msra.mxu0 %v1380
        %3168 = vmatpush.xpose.msra.mxu0 %v1252
        %3169 = vmatpush.xpose.msra.mxu0 %v1124
        %3170 = vmatpush.xpose.msra.mxu0 %v996
        %3171 = vmatpush.xpose.msra.mxu0 %v868
        %3172 = vmatpush.xpose.msra.mxu0 %v740
        %3173 = vmatpush.xpose.msra.mxu0 %v612
        %3174 = vmatpush.xpose.msra.mxu0 %v484
        %3175 = vmatmul.f32.gmra.mxu0 %v1559
        %v3176 = vpop.f32.mrf.mxu0
        %v3177 = vadd.f32 %v3157, %v3176
        %3178 = vdwg.mxu0
        %3179 = vmatpush.xpose.msra.mxu0 0.0
        %3180 = vmatpush.xpose.msra.mxu0 0.0
        %3181 = vmatpush.xpose.msra.mxu0 0.0
        %3182 = vmatpush.xpose.msra.mxu0 0.0
        %3183 = vmatpush.xpose.msra.mxu0 0.0
        %3184 = vmatpush.xpose.msra.mxu0 0.0
        %3185 = vmatpush.xpose.msra.mxu0 0.0
        %3186 = vmatpush.xpose.msra.mxu0 0.0
        %3187 = vmatpush.xpose.msra.mxu0 %v1381
        %3188 = vmatpush.xpose.msra.mxu0 %v1253
        %3189 = vmatpush.xpose.msra.mxu0 %v1125
        %3190 = vmatpush.xpose.msra.mxu0 %v997
        %3191 = vmatpush.xpose.msra.mxu0 %v869
        %3192 = vmatpush.xpose.msra.mxu0 %v741
        %3193 = vmatpush.xpose.msra.mxu0 %v613
        %3194 = vmatpush.xpose.msra.mxu0 %v485
        %3195 = vmatmul.f32.gmra.mxu0 %v1560
        %v3196 = vpop.f32.mrf.mxu0
        %v3197 = vadd.f32 %v3177, %v3196
        %3198 = vdwg.mxu0
        %3199 = vmatpush.xpose.msra.mxu0 0.0
        %3200 = vmatpush.xpose.msra.mxu0 0.0
        %3201 = vmatpush.xpose.msra.mxu0 0.0
        %3202 = vmatpush.xpose.msra.mxu0 0.0
        %3203 = vmatpush.xpose.msra.mxu0 0.0
        %3204 = vmatpush.xpose.msra.mxu0 0.0
        %3205 = vmatpush.xpose.msra.mxu0 0.0
        %3206 = vmatpush.xpose.msra.mxu0 0.0
        %3207 = vmatpush.xpose.msra.mxu0 %v1382
        %3208 = vmatpush.xpose.msra.mxu0 %v1254
        %3209 = vmatpush.xpose.msra.mxu0 %v1126
        %3210 = vmatpush.xpose.msra.mxu0 %v998
        %3211 = vmatpush.xpose.msra.mxu0 %v870
        %3212 = vmatpush.xpose.msra.mxu0 %v742
        %3213 = vmatpush.xpose.msra.mxu0 %v614
        %3214 = vmatpush.xpose.msra.mxu0 %v486
        %3215 = vmatmul.f32.gmra.mxu0 %v1563
        %v3216 = vpop.f32.mrf.mxu0
        %v3217 = vadd.f32 %v3197, %v3216
        %3218 = vdwg.mxu0
        %3219 = vmatpush.xpose.msra.mxu0 0.0
        %3220 = vmatpush.xpose.msra.mxu0 0.0
        %3221 = vmatpush.xpose.msra.mxu0 0.0
        %3222 = vmatpush.xpose.msra.mxu0 0.0
        %3223 = vmatpush.xpose.msra.mxu0 0.0
        %3224 = vmatpush.xpose.msra.mxu0 0.0
        %3225 = vmatpush.xpose.msra.mxu0 0.0
        %3226 = vmatpush.xpose.msra.mxu0 0.0
        %3227 = vmatpush.xpose.msra.mxu0 %v1383
        %3228 = vmatpush.xpose.msra.mxu0 %v1255
        %3229 = vmatpush.xpose.msra.mxu0 %v1127
        %3230 = vmatpush.xpose.msra.mxu0 %v999
        %3231 = vmatpush.xpose.msra.mxu0 %v871
        %3232 = vmatpush.xpose.msra.mxu0 %v743
        %3233 = vmatpush.xpose.msra.mxu0 %v615
        %3234 = vmatpush.xpose.msra.mxu0 %v487
        %3235 = vmatmul.f32.gmra.mxu0 %v1564
        %v3236 = vpop.f32.mrf.mxu0
        %v3237 = vadd.f32 %v3217, %v3236
        %3238 = vdwg.mxu0
        %3239 = vmatpush.xpose.msra.mxu0 0.0
        %3240 = vmatpush.xpose.msra.mxu0 0.0
        %3241 = vmatpush.xpose.msra.mxu0 0.0
        %3242 = vmatpush.xpose.msra.mxu0 0.0
        %3243 = vmatpush.xpose.msra.mxu0 0.0
        %3244 = vmatpush.xpose.msra.mxu0 0.0
        %3245 = vmatpush.xpose.msra.mxu0 0.0
        %3246 = vmatpush.xpose.msra.mxu0 0.0
        %3247 = vmatpush.xpose.msra.mxu0 %v1384
        %3248 = vmatpush.xpose.msra.mxu0 %v1256
        %3249 = vmatpush.xpose.msra.mxu0 %v1128
        %3250 = vmatpush.xpose.msra.mxu0 %v1000
        %3251 = vmatpush.xpose.msra.mxu0 %v872
        %3252 = vmatpush.xpose.msra.mxu0 %v744
        %3253 = vmatpush.xpose.msra.mxu0 %v616
        %3254 = vmatpush.xpose.msra.mxu0 %v488
        %3255 = vmatmul.f32.gmra.mxu0 %v1565
        %v3256 = vpop.f32.mrf.mxu0
        %v3257 = vadd.f32 %v3237, %v3256
        %3258 = vdwg.mxu0
        %3259 = vmatpush.xpose.msra.mxu0 0.0
        %3260 = vmatpush.xpose.msra.mxu0 0.0
        %3261 = vmatpush.xpose.msra.mxu0 0.0
        %3262 = vmatpush.xpose.msra.mxu0 0.0
        %3263 = vmatpush.xpose.msra.mxu0 0.0
        %3264 = vmatpush.xpose.msra.mxu0 0.0
        %3265 = vmatpush.xpose.msra.mxu0 0.0
        %3266 = vmatpush.xpose.msra.mxu0 0.0
        %3267 = vmatpush.xpose.msra.mxu0 %v1385
        %3268 = vmatpush.xpose.msra.mxu0 %v1257
        %3269 = vmatpush.xpose.msra.mxu0 %v1129
        %3270 = vmatpush.xpose.msra.mxu0 %v1001
        %3271 = vmatpush.xpose.msra.mxu0 %v873
        %3272 = vmatpush.xpose.msra.mxu0 %v745
        %3273 = vmatpush.xpose.msra.mxu0 %v617
        %3274 = vmatpush.xpose.msra.mxu0 %v489
        %3275 = vmatmul.f32.gmra.mxu0 %v1566
        %v3276 = vpop.f32.mrf.mxu0
        %v3277 = vadd.f32 %v3257, %v3276
        %3278 = vdwg.mxu0
        %3279 = vmatpush.xpose.msra.mxu0 0.0
        %3280 = vmatpush.xpose.msra.mxu0 0.0
        %3281 = vmatpush.xpose.msra.mxu0 0.0
        %3282 = vmatpush.xpose.msra.mxu0 0.0
        %3283 = vmatpush.xpose.msra.mxu0 0.0
        %3284 = vmatpush.xpose.msra.mxu0 0.0
        %3285 = vmatpush.xpose.msra.mxu0 0.0
        %3286 = vmatpush.xpose.msra.mxu0 0.0
        %3287 = vmatpush.xpose.msra.mxu0 %v1386
        %3288 = vmatpush.xpose.msra.mxu0 %v1258
        %3289 = vmatpush.xpose.msra.mxu0 %v1130
        %3290 = vmatpush.xpose.msra.mxu0 %v1002
        %3291 = vmatpush.xpose.msra.mxu0 %v874
        %3292 = vmatpush.xpose.msra.mxu0 %v746
        %3293 = vmatpush.xpose.msra.mxu0 %v618
        %3294 = vmatpush.xpose.msra.mxu0 %v490
        %3295 = vmatmul.f32.gmra.mxu0 %v1567
        %v3296 = vpop.f32.mrf.mxu0
        %v3297 = vadd.f32 %v3277, %v3296
        %3298 = vdwg.mxu0
        %3299 = vmatpush.xpose.msra.mxu0 0.0
        %3300 = vmatpush.xpose.msra.mxu0 0.0
        %3301 = vmatpush.xpose.msra.mxu0 0.0
        %3302 = vmatpush.xpose.msra.mxu0 0.0
        %3303 = vmatpush.xpose.msra.mxu0 0.0
        %3304 = vmatpush.xpose.msra.mxu0 0.0
        %3305 = vmatpush.xpose.msra.mxu0 0.0
        %3306 = vmatpush.xpose.msra.mxu0 0.0
        %3307 = vmatpush.xpose.msra.mxu0 %v1387
        %3308 = vmatpush.xpose.msra.mxu0 %v1259
        %3309 = vmatpush.xpose.msra.mxu0 %v1131
        %3310 = vmatpush.xpose.msra.mxu0 %v1003
        %3311 = vmatpush.xpose.msra.mxu0 %v875
        %3312 = vmatpush.xpose.msra.mxu0 %v747
        %3313 = vmatpush.xpose.msra.mxu0 %v619
        %3314 = vmatpush.xpose.msra.mxu0 %v491
        %3315 = vmatmul.f32.gmra.mxu0 %v1568
        %v3316 = vpop.f32.mrf.mxu0
        %v3317 = vadd.f32 %v3297, %v3316
        %3318 = vdwg.mxu0
        %3319 = vmatpush.xpose.msra.mxu0 0.0
        %3320 = vmatpush.xpose.msra.mxu0 0.0
        %3321 = vmatpush.xpose.msra.mxu0 0.0
        %3322 = vmatpush.xpose.msra.mxu0 0.0
        %3323 = vmatpush.xpose.msra.mxu0 0.0
        %3324 = vmatpush.xpose.msra.mxu0 0.0
        %3325 = vmatpush.xpose.msra.mxu0 0.0
        %3326 = vmatpush.xpose.msra.mxu0 0.0
        %3327 = vmatpush.xpose.msra.mxu0 %v1388
        %3328 = vmatpush.xpose.msra.mxu0 %v1260
        %3329 = vmatpush.xpose.msra.mxu0 %v1132
        %3330 = vmatpush.xpose.msra.mxu0 %v1004
        %3331 = vmatpush.xpose.msra.mxu0 %v876
        %3332 = vmatpush.xpose.msra.mxu0 %v748
        %3333 = vmatpush.xpose.msra.mxu0 %v620
        %3334 = vmatpush.xpose.msra.mxu0 %v492
        %3335 = vmatmul.f32.gmra.mxu0 %v1569
        %v3336 = vpop.f32.mrf.mxu0
        %v3337 = vadd.f32 %v3317, %v3336
        %3338 = vdwg.mxu0
        %3339 = vmatpush.xpose.msra.mxu0 0.0
        %3340 = vmatpush.xpose.msra.mxu0 0.0
        %3341 = vmatpush.xpose.msra.mxu0 0.0
        %3342 = vmatpush.xpose.msra.mxu0 0.0
        %3343 = vmatpush.xpose.msra.mxu0 0.0
        %3344 = vmatpush.xpose.msra.mxu0 0.0
        %3345 = vmatpush.xpose.msra.mxu0 0.0
        %3346 = vmatpush.xpose.msra.mxu0 0.0
        %3347 = vmatpush.xpose.msra.mxu0 %v1389
        %3348 = vmatpush.xpose.msra.mxu0 %v1261
        %3349 = vmatpush.xpose.msra.mxu0 %v1133
        %3350 = vmatpush.xpose.msra.mxu0 %v1005
        %3351 = vmatpush.xpose.msra.mxu0 %v877
        %3352 = vmatpush.xpose.msra.mxu0 %v749
        %3353 = vmatpush.xpose.msra.mxu0 %v621
        %3354 = vmatpush.xpose.msra.mxu0 %v493
        %3355 = vmatmul.f32.gmra.mxu0 %v1570
        %v3356 = vpop.f32.mrf.mxu0
        %v3357 = vadd.f32 %v3337, %v3356
        %3358 = vdwg.mxu0
        %3359 = vmatpush.xpose.msra.mxu0 0.0
        %3360 = vmatpush.xpose.msra.mxu0 0.0
        %3361 = vmatpush.xpose.msra.mxu0 0.0
        %3362 = vmatpush.xpose.msra.mxu0 0.0
        %3363 = vmatpush.xpose.msra.mxu0 0.0
        %3364 = vmatpush.xpose.msra.mxu0 0.0
        %3365 = vmatpush.xpose.msra.mxu0 0.0
        %3366 = vmatpush.xpose.msra.mxu0 0.0
        %3367 = vmatpush.xpose.msra.mxu0 %v1390
        %3368 = vmatpush.xpose.msra.mxu0 %v1262
        %3369 = vmatpush.xpose.msra.mxu0 %v1134
        %3370 = vmatpush.xpose.msra.mxu0 %v1006
        %3371 = vmatpush.xpose.msra.mxu0 %v878
        %3372 = vmatpush.xpose.msra.mxu0 %v750
        %3373 = vmatpush.xpose.msra.mxu0 %v622
        %3374 = vmatpush.xpose.msra.mxu0 %v494
        %3375 = vmatmul.f32.gmra.mxu0 %v1573
        %v3376 = vpop.f32.mrf.mxu0
        %v3377 = vadd.f32 %v3357, %v3376
        %3378 = vdwg.mxu0
        %3379 = vmatpush.xpose.msra.mxu0 0.0
        %3380 = vmatpush.xpose.msra.mxu0 0.0
        %3381 = vmatpush.xpose.msra.mxu0 0.0
        %3382 = vmatpush.xpose.msra.mxu0 0.0
        %3383 = vmatpush.xpose.msra.mxu0 0.0
        %3384 = vmatpush.xpose.msra.mxu0 0.0
        %3385 = vmatpush.xpose.msra.mxu0 0.0
        %3386 = vmatpush.xpose.msra.mxu0 0.0
        %3387 = vmatpush.xpose.msra.mxu0 %v1391
        %3388 = vmatpush.xpose.msra.mxu0 %v1263
        %3389 = vmatpush.xpose.msra.mxu0 %v1135
        %3390 = vmatpush.xpose.msra.mxu0 %v1007
        %3391 = vmatpush.xpose.msra.mxu0 %v879
        %3392 = vmatpush.xpose.msra.mxu0 %v751
        %3393 = vmatpush.xpose.msra.mxu0 %v623
        %3394 = vmatpush.xpose.msra.mxu0 %v495
        %3395 = vmatmul.f32.gmra.mxu0 %v1574
        %v3396 = vpop.f32.mrf.mxu0
        %v3397 = vadd.f32 %v3377, %v3396
        %3398 = vdwg.mxu0
        %3399 = vmatpush.xpose.msra.mxu0 0.0
        %3400 = vmatpush.xpose.msra.mxu0 0.0
        %3401 = vmatpush.xpose.msra.mxu0 0.0
        %3402 = vmatpush.xpose.msra.mxu0 0.0
        %3403 = vmatpush.xpose.msra.mxu0 0.0
        %3404 = vmatpush.xpose.msra.mxu0 0.0
        %3405 = vmatpush.xpose.msra.mxu0 0.0
        %3406 = vmatpush.xpose.msra.mxu0 0.0
        %3407 = vmatpush.xpose.msra.mxu0 %v1392
        %3408 = vmatpush.xpose.msra.mxu0 %v1264
        %3409 = vmatpush.xpose.msra.mxu0 %v1136
        %3410 = vmatpush.xpose.msra.mxu0 %v1008
        %3411 = vmatpush.xpose.msra.mxu0 %v880
        %3412 = vmatpush.xpose.msra.mxu0 %v752
        %3413 = vmatpush.xpose.msra.mxu0 %v624
        %3414 = vmatpush.xpose.msra.mxu0 %v496
        %3415 = vmatmul.f32.gmra.mxu0 %v1575
        %v3416 = vpop.f32.mrf.mxu0
        %v3417 = vadd.f32 %v3397, %v3416
        %3418 = vdwg.mxu0
        %3419 = vmatpush.xpose.msra.mxu0 0.0
        %3420 = vmatpush.xpose.msra.mxu0 0.0
        %3421 = vmatpush.xpose.msra.mxu0 0.0
        %3422 = vmatpush.xpose.msra.mxu0 0.0
        %3423 = vmatpush.xpose.msra.mxu0 0.0
        %3424 = vmatpush.xpose.msra.mxu0 0.0
        %3425 = vmatpush.xpose.msra.mxu0 0.0
        %3426 = vmatpush.xpose.msra.mxu0 0.0
        %3427 = vmatpush.xpose.msra.mxu0 %v1393
        %3428 = vmatpush.xpose.msra.mxu0 %v1265
        %3429 = vmatpush.xpose.msra.mxu0 %v1137
        %3430 = vmatpush.xpose.msra.mxu0 %v1009
        %3431 = vmatpush.xpose.msra.mxu0 %v881
        %3432 = vmatpush.xpose.msra.mxu0 %v753
        %3433 = vmatpush.xpose.msra.mxu0 %v625
        %3434 = vmatpush.xpose.msra.mxu0 %v497
        %3435 = vmatmul.f32.gmra.mxu0 %v1576
        %v3436 = vpop.f32.mrf.mxu0
        %v3437 = vadd.f32 %v3417, %v3436
        %3438 = vdwg.mxu0
        %3439 = vmatpush.xpose.msra.mxu0 0.0
        %3440 = vmatpush.xpose.msra.mxu0 0.0
        %3441 = vmatpush.xpose.msra.mxu0 0.0
        %3442 = vmatpush.xpose.msra.mxu0 0.0
        %3443 = vmatpush.xpose.msra.mxu0 0.0
        %3444 = vmatpush.xpose.msra.mxu0 0.0
        %3445 = vmatpush.xpose.msra.mxu0 0.0
        %3446 = vmatpush.xpose.msra.mxu0 0.0
        %3447 = vmatpush.xpose.msra.mxu0 %v1394
        %3448 = vmatpush.xpose.msra.mxu0 %v1266
        %3449 = vmatpush.xpose.msra.mxu0 %v1138
        %3450 = vmatpush.xpose.msra.mxu0 %v1010
        %3451 = vmatpush.xpose.msra.mxu0 %v882
        %3452 = vmatpush.xpose.msra.mxu0 %v754
        %3453 = vmatpush.xpose.msra.mxu0 %v626
        %3454 = vmatpush.xpose.msra.mxu0 %v498
        %3455 = vmatmul.f32.gmra.mxu0 %v1577
        %v3456 = vpop.f32.mrf.mxu0
        %v3457 = vadd.f32 %v3437, %v3456
        %3458 = vdwg.mxu0
        %3459 = vmatpush.xpose.msra.mxu0 0.0
        %3460 = vmatpush.xpose.msra.mxu0 0.0
        %3461 = vmatpush.xpose.msra.mxu0 0.0
        %3462 = vmatpush.xpose.msra.mxu0 0.0
        %3463 = vmatpush.xpose.msra.mxu0 0.0
        %3464 = vmatpush.xpose.msra.mxu0 0.0
        %3465 = vmatpush.xpose.msra.mxu0 0.0
        %3466 = vmatpush.xpose.msra.mxu0 0.0
        %3467 = vmatpush.xpose.msra.mxu0 %v1395
        %3468 = vmatpush.xpose.msra.mxu0 %v1267
        %3469 = vmatpush.xpose.msra.mxu0 %v1139
        %3470 = vmatpush.xpose.msra.mxu0 %v1011
        %3471 = vmatpush.xpose.msra.mxu0 %v883
        %3472 = vmatpush.xpose.msra.mxu0 %v755
        %3473 = vmatpush.xpose.msra.mxu0 %v627
        %3474 = vmatpush.xpose.msra.mxu0 %v499
        %3475 = vmatmul.f32.gmra.mxu0 %v1578
        %v3476 = vpop.f32.mrf.mxu0
        %v3477 = vadd.f32 %v3457, %v3476
        %3478 = vdwg.mxu0
        %3479 = vmatpush.xpose.msra.mxu0 0.0
        %3480 = vmatpush.xpose.msra.mxu0 0.0
        %3481 = vmatpush.xpose.msra.mxu0 0.0
        %3482 = vmatpush.xpose.msra.mxu0 0.0
        %3483 = vmatpush.xpose.msra.mxu0 0.0
        %3484 = vmatpush.xpose.msra.mxu0 0.0
        %3485 = vmatpush.xpose.msra.mxu0 0.0
        %3486 = vmatpush.xpose.msra.mxu0 0.0
        %3487 = vmatpush.xpose.msra.mxu0 %v1396
        %3488 = vmatpush.xpose.msra.mxu0 %v1268
        %3489 = vmatpush.xpose.msra.mxu0 %v1140
        %3490 = vmatpush.xpose.msra.mxu0 %v1012
        %3491 = vmatpush.xpose.msra.mxu0 %v884
        %3492 = vmatpush.xpose.msra.mxu0 %v756
        %3493 = vmatpush.xpose.msra.mxu0 %v628
        %3494 = vmatpush.xpose.msra.mxu0 %v500
        %3495 = vmatmul.f32.gmra.mxu0 %v1579
        %v3496 = vpop.f32.mrf.mxu0
        %v3497 = vadd.f32 %v3477, %v3496
        %3498 = vdwg.mxu0
        %3499 = vmatpush.xpose.msra.mxu0 0.0
        %3500 = vmatpush.xpose.msra.mxu0 0.0
        %3501 = vmatpush.xpose.msra.mxu0 0.0
        %3502 = vmatpush.xpose.msra.mxu0 0.0
        %3503 = vmatpush.xpose.msra.mxu0 0.0
        %3504 = vmatpush.xpose.msra.mxu0 0.0
        %3505 = vmatpush.xpose.msra.mxu0 0.0
        %3506 = vmatpush.xpose.msra.mxu0 0.0
        %3507 = vmatpush.xpose.msra.mxu0 %v1397
        %3508 = vmatpush.xpose.msra.mxu0 %v1269
        %3509 = vmatpush.xpose.msra.mxu0 %v1141
        %3510 = vmatpush.xpose.msra.mxu0 %v1013
        %3511 = vmatpush.xpose.msra.mxu0 %v885
        %3512 = vmatpush.xpose.msra.mxu0 %v757
        %3513 = vmatpush.xpose.msra.mxu0 %v629
        %3514 = vmatpush.xpose.msra.mxu0 %v501
        %3515 = vmatmul.f32.gmra.mxu0 %v1580
        %v3516 = vpop.f32.mrf.mxu0
        %v3517 = vadd.f32 %v3497, %v3516
        %3518 = vdwg.mxu0
        %3519 = vmatpush.xpose.msra.mxu0 0.0
        %3520 = vmatpush.xpose.msra.mxu0 0.0
        %3521 = vmatpush.xpose.msra.mxu0 0.0
        %3522 = vmatpush.xpose.msra.mxu0 0.0
        %3523 = vmatpush.xpose.msra.mxu0 0.0
        %3524 = vmatpush.xpose.msra.mxu0 0.0
        %3525 = vmatpush.xpose.msra.mxu0 0.0
        %3526 = vmatpush.xpose.msra.mxu0 0.0
        %3527 = vmatpush.xpose.msra.mxu0 %v1398
        %3528 = vmatpush.xpose.msra.mxu0 %v1270
        %3529 = vmatpush.xpose.msra.mxu0 %v1142
        %3530 = vmatpush.xpose.msra.mxu0 %v1014
        %3531 = vmatpush.xpose.msra.mxu0 %v886
        %3532 = vmatpush.xpose.msra.mxu0 %v758
        %3533 = vmatpush.xpose.msra.mxu0 %v630
        %3534 = vmatpush.xpose.msra.mxu0 %v502
        %3535 = vmatmul.f32.gmra.mxu0 %v1583
        %v3536 = vpop.f32.mrf.mxu0
        %v3537 = vadd.f32 %v3517, %v3536
        %3538 = vdwg.mxu0
        %3539 = vmatpush.xpose.msra.mxu0 0.0
        %3540 = vmatpush.xpose.msra.mxu0 0.0
        %3541 = vmatpush.xpose.msra.mxu0 0.0
        %3542 = vmatpush.xpose.msra.mxu0 0.0
        %3543 = vmatpush.xpose.msra.mxu0 0.0
        %3544 = vmatpush.xpose.msra.mxu0 0.0
        %3545 = vmatpush.xpose.msra.mxu0 0.0
        %3546 = vmatpush.xpose.msra.mxu0 0.0
        %3547 = vmatpush.xpose.msra.mxu0 %v1399
        %3548 = vmatpush.xpose.msra.mxu0 %v1271
        %3549 = vmatpush.xpose.msra.mxu0 %v1143
        %3550 = vmatpush.xpose.msra.mxu0 %v1015
        %3551 = vmatpush.xpose.msra.mxu0 %v887
        %3552 = vmatpush.xpose.msra.mxu0 %v759
        %3553 = vmatpush.xpose.msra.mxu0 %v631
        %3554 = vmatpush.xpose.msra.mxu0 %v503
        %3555 = vmatmul.f32.gmra.mxu0 %v1584
        %v3556 = vpop.f32.mrf.mxu0
        %v3557 = vadd.f32 %v3537, %v3556
        %3558 = vdwg.mxu0
        %3559 = vmatpush.xpose.msra.mxu0 0.0
        %3560 = vmatpush.xpose.msra.mxu0 0.0
        %3561 = vmatpush.xpose.msra.mxu0 0.0
        %3562 = vmatpush.xpose.msra.mxu0 0.0
        %3563 = vmatpush.xpose.msra.mxu0 0.0
        %3564 = vmatpush.xpose.msra.mxu0 0.0
        %3565 = vmatpush.xpose.msra.mxu0 0.0
        %3566 = vmatpush.xpose.msra.mxu0 0.0
        %3567 = vmatpush.xpose.msra.mxu0 %v1400
        %3568 = vmatpush.xpose.msra.mxu0 %v1272
        %3569 = vmatpush.xpose.msra.mxu0 %v1144
        %3570 = vmatpush.xpose.msra.mxu0 %v1016
        %3571 = vmatpush.xpose.msra.mxu0 %v888
        %3572 = vmatpush.xpose.msra.mxu0 %v760
        %3573 = vmatpush.xpose.msra.mxu0 %v632
        %3574 = vmatpush.xpose.msra.mxu0 %v504
        %3575 = vmatmul.f32.gmra.mxu0 %v1585
        %v3576 = vpop.f32.mrf.mxu0
        %v3577 = vadd.f32 %v3557, %v3576
        %3578 = vdwg.mxu0
        %3579 = vmatpush.xpose.msra.mxu0 0.0
        %3580 = vmatpush.xpose.msra.mxu0 0.0
        %3581 = vmatpush.xpose.msra.mxu0 0.0
        %3582 = vmatpush.xpose.msra.mxu0 0.0
        %3583 = vmatpush.xpose.msra.mxu0 0.0
        %3584 = vmatpush.xpose.msra.mxu0 0.0
        %3585 = vmatpush.xpose.msra.mxu0 0.0
        %3586 = vmatpush.xpose.msra.mxu0 0.0
        %3587 = vmatpush.xpose.msra.mxu0 %v1401
        %3588 = vmatpush.xpose.msra.mxu0 %v1273
        %3589 = vmatpush.xpose.msra.mxu0 %v1145
        %3590 = vmatpush.xpose.msra.mxu0 %v1017
        %3591 = vmatpush.xpose.msra.mxu0 %v889
        %3592 = vmatpush.xpose.msra.mxu0 %v761
        %3593 = vmatpush.xpose.msra.mxu0 %v633
        %3594 = vmatpush.xpose.msra.mxu0 %v505
        %3595 = vmatmul.f32.gmra.mxu0 %v1586
        %v3596 = vpop.f32.mrf.mxu0
        %v3597 = vadd.f32 %v3577, %v3596
        %3598 = vdwg.mxu0
        %3599 = vmatpush.xpose.msra.mxu0 0.0
        %3600 = vmatpush.xpose.msra.mxu0 0.0
        %3601 = vmatpush.xpose.msra.mxu0 0.0
        %3602 = vmatpush.xpose.msra.mxu0 0.0
        %3603 = vmatpush.xpose.msra.mxu0 0.0
        %3604 = vmatpush.xpose.msra.mxu0 0.0
        %3605 = vmatpush.xpose.msra.mxu0 0.0
        %3606 = vmatpush.xpose.msra.mxu0 0.0
        %3607 = vmatpush.xpose.msra.mxu0 %v1402
        %3608 = vmatpush.xpose.msra.mxu0 %v1274
        %3609 = vmatpush.xpose.msra.mxu0 %v1146
        %3610 = vmatpush.xpose.msra.mxu0 %v1018
        %3611 = vmatpush.xpose.msra.mxu0 %v890
        %3612 = vmatpush.xpose.msra.mxu0 %v762
        %3613 = vmatpush.xpose.msra.mxu0 %v634
        %3614 = vmatpush.xpose.msra.mxu0 %v506
        %3615 = vmatmul.f32.gmra.mxu0 %v1587
        %v3616 = vpop.f32.mrf.mxu0
        %v3617 = vadd.f32 %v3597, %v3616
        %3618 = vdwg.mxu0
        %3619 = vmatpush.xpose.msra.mxu0 0.0
        %3620 = vmatpush.xpose.msra.mxu0 0.0
        %3621 = vmatpush.xpose.msra.mxu0 0.0
        %3622 = vmatpush.xpose.msra.mxu0 0.0
        %3623 = vmatpush.xpose.msra.mxu0 0.0
        %3624 = vmatpush.xpose.msra.mxu0 0.0
        %3625 = vmatpush.xpose.msra.mxu0 0.0
        %3626 = vmatpush.xpose.msra.mxu0 0.0
        %3627 = vmatpush.xpose.msra.mxu0 %v1403
        %3628 = vmatpush.xpose.msra.mxu0 %v1275
        %3629 = vmatpush.xpose.msra.mxu0 %v1147
        %3630 = vmatpush.xpose.msra.mxu0 %v1019
        %3631 = vmatpush.xpose.msra.mxu0 %v891
        %3632 = vmatpush.xpose.msra.mxu0 %v763
        %3633 = vmatpush.xpose.msra.mxu0 %v635
        %3634 = vmatpush.xpose.msra.mxu0 %v507
        %3635 = vmatmul.f32.gmra.mxu0 %v1588
        %v3636 = vpop.f32.mrf.mxu0
        %v3637 = vadd.f32 %v3617, %v3636
        %3638 = vdwg.mxu0
        %3639 = vmatpush.xpose.msra.mxu0 0.0
        %3640 = vmatpush.xpose.msra.mxu0 0.0
        %3641 = vmatpush.xpose.msra.mxu0 0.0
        %3642 = vmatpush.xpose.msra.mxu0 0.0
        %3643 = vmatpush.xpose.msra.mxu0 0.0
        %3644 = vmatpush.xpose.msra.mxu0 0.0
        %3645 = vmatpush.xpose.msra.mxu0 0.0
        %3646 = vmatpush.xpose.msra.mxu0 0.0
        %3647 = vmatpush.xpose.msra.mxu0 %v1404
        %3648 = vmatpush.xpose.msra.mxu0 %v1276
        %3649 = vmatpush.xpose.msra.mxu0 %v1148
        %3650 = vmatpush.xpose.msra.mxu0 %v1020
        %3651 = vmatpush.xpose.msra.mxu0 %v892
        %3652 = vmatpush.xpose.msra.mxu0 %v764
        %3653 = vmatpush.xpose.msra.mxu0 %v636
        %3654 = vmatpush.xpose.msra.mxu0 %v508
        %3655 = vmatmul.f32.gmra.mxu0 %v1589
        %v3656 = vpop.f32.mrf.mxu0
        %v3657 = vadd.f32 %v3637, %v3656
        %3658 = vdwg.mxu0
        %3659 = vmatpush.xpose.msra.mxu0 0.0
        %3660 = vmatpush.xpose.msra.mxu0 0.0
        %3661 = vmatpush.xpose.msra.mxu0 0.0
        %3662 = vmatpush.xpose.msra.mxu0 0.0
        %3663 = vmatpush.xpose.msra.mxu0 0.0
        %3664 = vmatpush.xpose.msra.mxu0 0.0
        %3665 = vmatpush.xpose.msra.mxu0 0.0
        %3666 = vmatpush.xpose.msra.mxu0 0.0
        %3667 = vmatpush.xpose.msra.mxu0 %v1405
        %3668 = vmatpush.xpose.msra.mxu0 %v1277
        %3669 = vmatpush.xpose.msra.mxu0 %v1149
        %3670 = vmatpush.xpose.msra.mxu0 %v1021
        %3671 = vmatpush.xpose.msra.mxu0 %v893
        %3672 = vmatpush.xpose.msra.mxu0 %v765
        %3673 = vmatpush.xpose.msra.mxu0 %v637
        %3674 = vmatpush.xpose.msra.mxu0 %v509
        %3675 = vmatmul.f32.gmra.mxu0 %v1590
        %v3676 = vpop.f32.mrf.mxu0
        %v3677 = vadd.f32 %v3657, %v3676
        %3678 = vdwg.mxu0
        %3679 = vmatpush.xpose.msra.mxu0 0.0
        %3680 = vmatpush.xpose.msra.mxu0 0.0
        %3681 = vmatpush.xpose.msra.mxu0 0.0
        %3682 = vmatpush.xpose.msra.mxu0 0.0
        %3683 = vmatpush.xpose.msra.mxu0 0.0
        %3684 = vmatpush.xpose.msra.mxu0 0.0
        %3685 = vmatpush.xpose.msra.mxu0 0.0
        %3686 = vmatpush.xpose.msra.mxu0 0.0
        %3687 = vmatpush.xpose.msra.mxu0 %v1406
        %3688 = vmatpush.xpose.msra.mxu0 %v1278
        %3689 = vmatpush.xpose.msra.mxu0 %v1150
        %3690 = vmatpush.xpose.msra.mxu0 %v1022
        %3691 = vmatpush.xpose.msra.mxu0 %v894
        %3692 = vmatpush.xpose.msra.mxu0 %v766
        %3693 = vmatpush.xpose.msra.mxu0 %v638
        %3694 = vmatpush.xpose.msra.mxu0 %v510
        %3695 = vmatmul.f32.gmra.mxu0 %v1593
        %v3696 = vpop.f32.mrf.mxu0
        %v3697 = vadd.f32 %v3677, %v3696
        %3698 = vdwg.mxu0
        %3699 = vmatpush.xpose.msra.mxu0 0.0
        %3700 = vmatpush.xpose.msra.mxu0 0.0
        %3701 = vmatpush.xpose.msra.mxu0 0.0
        %3702 = vmatpush.xpose.msra.mxu0 0.0
        %3703 = vmatpush.xpose.msra.mxu0 0.0
        %3704 = vmatpush.xpose.msra.mxu0 0.0
        %3705 = vmatpush.xpose.msra.mxu0 0.0
        %3706 = vmatpush.xpose.msra.mxu0 0.0
        %3707 = vmatpush.xpose.msra.mxu0 %v1407
        %3708 = vmatpush.xpose.msra.mxu0 %v1279
        %3709 = vmatpush.xpose.msra.mxu0 %v1151
        %3710 = vmatpush.xpose.msra.mxu0 %v1023
        %3711 = vmatpush.xpose.msra.mxu0 %v895
        %3712 = vmatpush.xpose.msra.mxu0 %v767
        %3713 = vmatpush.xpose.msra.mxu0 %v639
        %3714 = vmatpush.xpose.msra.mxu0 %v511
        %3715 = vmatmul.f32.gmra.mxu0 %v1594
        %v3716 = vpop.f32.mrf.mxu0
        %v3717 = vadd.f32 %v3697, %v3716
        %3718 = vdwg.mxu0
        %3719 = vmatpush.xpose.msra.mxu0 0.0
        %3720 = vmatpush.xpose.msra.mxu0 0.0
        %3721 = vmatpush.xpose.msra.mxu0 0.0
        %3722 = vmatpush.xpose.msra.mxu0 0.0
        %3723 = vmatpush.xpose.msra.mxu0 0.0
        %3724 = vmatpush.xpose.msra.mxu0 0.0
        %3725 = vmatpush.xpose.msra.mxu0 0.0
        %3726 = vmatpush.xpose.msra.mxu0 0.0
        %3727 = vmatpush.xpose.msra.mxu0 %v1408
        %3728 = vmatpush.xpose.msra.mxu0 %v1280
        %3729 = vmatpush.xpose.msra.mxu0 %v1152
        %3730 = vmatpush.xpose.msra.mxu0 %v1024
        %3731 = vmatpush.xpose.msra.mxu0 %v896
        %3732 = vmatpush.xpose.msra.mxu0 %v768
        %3733 = vmatpush.xpose.msra.mxu0 %v640
        %3734 = vmatpush.xpose.msra.mxu0 %v512
        %3735 = vmatmul.f32.gmra.mxu0 %v1595
        %v3736 = vpop.f32.mrf.mxu0
        %v3737 = vadd.f32 %v3717, %v3736
        %3738 = vdwg.mxu0
        %3739 = vmatpush.xpose.msra.mxu0 0.0
        %3740 = vmatpush.xpose.msra.mxu0 0.0
        %3741 = vmatpush.xpose.msra.mxu0 0.0
        %3742 = vmatpush.xpose.msra.mxu0 0.0
        %3743 = vmatpush.xpose.msra.mxu0 0.0
        %3744 = vmatpush.xpose.msra.mxu0 0.0
        %3745 = vmatpush.xpose.msra.mxu0 0.0
        %3746 = vmatpush.xpose.msra.mxu0 0.0
        %3747 = vmatpush.xpose.msra.mxu0 %v1409
        %3748 = vmatpush.xpose.msra.mxu0 %v1281
        %3749 = vmatpush.xpose.msra.mxu0 %v1153
        %3750 = vmatpush.xpose.msra.mxu0 %v1025
        %3751 = vmatpush.xpose.msra.mxu0 %v897
        %3752 = vmatpush.xpose.msra.mxu0 %v769
        %3753 = vmatpush.xpose.msra.mxu0 %v641
        %3754 = vmatpush.xpose.msra.mxu0 %v513
        %3755 = vmatmul.f32.gmra.mxu0 %v1596
        %v3756 = vpop.f32.mrf.mxu0
        %v3757 = vadd.f32 %v3737, %v3756
        %3758 = vdwg.mxu0
        %3759 = vmatpush.xpose.msra.mxu0 0.0
        %3760 = vmatpush.xpose.msra.mxu0 0.0
        %3761 = vmatpush.xpose.msra.mxu0 0.0
        %3762 = vmatpush.xpose.msra.mxu0 0.0
        %3763 = vmatpush.xpose.msra.mxu0 0.0
        %3764 = vmatpush.xpose.msra.mxu0 0.0
        %3765 = vmatpush.xpose.msra.mxu0 0.0
        %3766 = vmatpush.xpose.msra.mxu0 0.0
        %3767 = vmatpush.xpose.msra.mxu0 %v1410
        %3768 = vmatpush.xpose.msra.mxu0 %v1282
        %3769 = vmatpush.xpose.msra.mxu0 %v1154
        %3770 = vmatpush.xpose.msra.mxu0 %v1026
        %3771 = vmatpush.xpose.msra.mxu0 %v898
        %3772 = vmatpush.xpose.msra.mxu0 %v770
        %3773 = vmatpush.xpose.msra.mxu0 %v642
        %3774 = vmatpush.xpose.msra.mxu0 %v514
        %3775 = vmatmul.f32.gmra.mxu0 %v1597
        %v3776 = vpop.f32.mrf.mxu0
        %v3777 = vadd.f32 %v3757, %v3776
        %3778 = vdwg.mxu0
        %3779 = vmatpush.xpose.msra.mxu0 0.0
        %3780 = vmatpush.xpose.msra.mxu0 0.0
        %3781 = vmatpush.xpose.msra.mxu0 0.0
        %3782 = vmatpush.xpose.msra.mxu0 0.0
        %3783 = vmatpush.xpose.msra.mxu0 0.0
        %3784 = vmatpush.xpose.msra.mxu0 0.0
        %3785 = vmatpush.xpose.msra.mxu0 0.0
        %3786 = vmatpush.xpose.msra.mxu0 0.0
        %3787 = vmatpush.xpose.msra.mxu0 %v1411
        %3788 = vmatpush.xpose.msra.mxu0 %v1283
        %3789 = vmatpush.xpose.msra.mxu0 %v1155
        %3790 = vmatpush.xpose.msra.mxu0 %v1027
        %3791 = vmatpush.xpose.msra.mxu0 %v899
        %3792 = vmatpush.xpose.msra.mxu0 %v771
        %3793 = vmatpush.xpose.msra.mxu0 %v643
        %3794 = vmatpush.xpose.msra.mxu0 %v515
        %3795 = vmatmul.f32.gmra.mxu0 %v1598
        %v3796 = vpop.f32.mrf.mxu0
        %v3797 = vadd.f32 %v3777, %v3796
        %3798 = vdwg.mxu0
        %3799 = vmatpush.xpose.msra.mxu0 0.0
        %3800 = vmatpush.xpose.msra.mxu0 0.0
        %3801 = vmatpush.xpose.msra.mxu0 0.0
        %3802 = vmatpush.xpose.msra.mxu0 0.0
        %3803 = vmatpush.xpose.msra.mxu0 0.0
        %3804 = vmatpush.xpose.msra.mxu0 0.0
        %3805 = vmatpush.xpose.msra.mxu0 0.0
        %3806 = vmatpush.xpose.msra.mxu0 0.0
        %3807 = vmatpush.xpose.msra.mxu0 %v1412
        %3808 = vmatpush.xpose.msra.mxu0 %v1284
        %3809 = vmatpush.xpose.msra.mxu0 %v1156
        %3810 = vmatpush.xpose.msra.mxu0 %v1028
        %3811 = vmatpush.xpose.msra.mxu0 %v900
        %3812 = vmatpush.xpose.msra.mxu0 %v772
        %3813 = vmatpush.xpose.msra.mxu0 %v644
        %3814 = vmatpush.xpose.msra.mxu0 %v516
        %3815 = vmatmul.f32.gmra.mxu0 %v1599
        %v3816 = vpop.f32.mrf.mxu0
        %v3817 = vadd.f32 %v3797, %v3816
        %3818 = vdwg.mxu0
        %3819 = vmatpush.xpose.msra.mxu0 0.0
        %3820 = vmatpush.xpose.msra.mxu0 0.0
        %3821 = vmatpush.xpose.msra.mxu0 0.0
        %3822 = vmatpush.xpose.msra.mxu0 0.0
        %3823 = vmatpush.xpose.msra.mxu0 0.0
        %3824 = vmatpush.xpose.msra.mxu0 0.0
        %3825 = vmatpush.xpose.msra.mxu0 0.0
        %3826 = vmatpush.xpose.msra.mxu0 0.0
        %3827 = vmatpush.xpose.msra.mxu0 %v1413
        %3828 = vmatpush.xpose.msra.mxu0 %v1285
        %3829 = vmatpush.xpose.msra.mxu0 %v1157
        %3830 = vmatpush.xpose.msra.mxu0 %v1029
        %3831 = vmatpush.xpose.msra.mxu0 %v901
        %3832 = vmatpush.xpose.msra.mxu0 %v773
        %3833 = vmatpush.xpose.msra.mxu0 %v645
        %3834 = vmatpush.xpose.msra.mxu0 %v517
        %3835 = vmatmul.f32.gmra.mxu0 %v1600
        %v3836 = vpop.f32.mrf.mxu0
        %v3837 = vadd.f32 %v3817, %v3836
        %3838 = vdwg.mxu0
        %3839 = vmatpush.xpose.msra.mxu0 0.0
        %3840 = vmatpush.xpose.msra.mxu0 0.0
        %3841 = vmatpush.xpose.msra.mxu0 0.0
        %3842 = vmatpush.xpose.msra.mxu0 0.0
        %3843 = vmatpush.xpose.msra.mxu0 0.0
        %3844 = vmatpush.xpose.msra.mxu0 0.0
        %3845 = vmatpush.xpose.msra.mxu0 0.0
        %3846 = vmatpush.xpose.msra.mxu0 0.0
        %3847 = vmatpush.xpose.msra.mxu0 %v1414
        %3848 = vmatpush.xpose.msra.mxu0 %v1286
        %3849 = vmatpush.xpose.msra.mxu0 %v1158
        %3850 = vmatpush.xpose.msra.mxu0 %v1030
        %3851 = vmatpush.xpose.msra.mxu0 %v902
        %3852 = vmatpush.xpose.msra.mxu0 %v774
        %3853 = vmatpush.xpose.msra.mxu0 %v646
        %3854 = vmatpush.xpose.msra.mxu0 %v518
        %3855 = vmatmul.f32.gmra.mxu0 %v1603
        %v3856 = vpop.f32.mrf.mxu0
        %v3857 = vadd.f32 %v3837, %v3856
        %3858 = vdwg.mxu0
        %3859 = vmatpush.xpose.msra.mxu0 0.0
        %3860 = vmatpush.xpose.msra.mxu0 0.0
        %3861 = vmatpush.xpose.msra.mxu0 0.0
        %3862 = vmatpush.xpose.msra.mxu0 0.0
        %3863 = vmatpush.xpose.msra.mxu0 0.0
        %3864 = vmatpush.xpose.msra.mxu0 0.0
        %3865 = vmatpush.xpose.msra.mxu0 0.0
        %3866 = vmatpush.xpose.msra.mxu0 0.0
        %3867 = vmatpush.xpose.msra.mxu0 %v1415
        %3868 = vmatpush.xpose.msra.mxu0 %v1287
        %3869 = vmatpush.xpose.msra.mxu0 %v1159
        %3870 = vmatpush.xpose.msra.mxu0 %v1031
        %3871 = vmatpush.xpose.msra.mxu0 %v903
        %3872 = vmatpush.xpose.msra.mxu0 %v775
        %3873 = vmatpush.xpose.msra.mxu0 %v647
        %3874 = vmatpush.xpose.msra.mxu0 %v519
        %3875 = vmatmul.f32.gmra.mxu0 %v1604
        %v3876 = vpop.f32.mrf.mxu0
        %v3877 = vadd.f32 %v3857, %v3876
        %3878 = vdwg.mxu0
        %3879 = vmatpush.xpose.msra.mxu0 0.0
        %3880 = vmatpush.xpose.msra.mxu0 0.0
        %3881 = vmatpush.xpose.msra.mxu0 0.0
        %3882 = vmatpush.xpose.msra.mxu0 0.0
        %3883 = vmatpush.xpose.msra.mxu0 0.0
        %3884 = vmatpush.xpose.msra.mxu0 0.0
        %3885 = vmatpush.xpose.msra.mxu0 0.0
        %3886 = vmatpush.xpose.msra.mxu0 0.0
        %3887 = vmatpush.xpose.msra.mxu0 %v1416
        %3888 = vmatpush.xpose.msra.mxu0 %v1288
        %3889 = vmatpush.xpose.msra.mxu0 %v1160
        %3890 = vmatpush.xpose.msra.mxu0 %v1032
        %3891 = vmatpush.xpose.msra.mxu0 %v904
        %3892 = vmatpush.xpose.msra.mxu0 %v776
        %3893 = vmatpush.xpose.msra.mxu0 %v648
        %3894 = vmatpush.xpose.msra.mxu0 %v520
        %3895 = vmatmul.f32.gmra.mxu0 %v1605
        %v3896 = vpop.f32.mrf.mxu0
        %v3897 = vadd.f32 %v3877, %v3896
        %3898 = vdwg.mxu0
        %3899 = vmatpush.xpose.msra.mxu0 0.0
        %3900 = vmatpush.xpose.msra.mxu0 0.0
        %3901 = vmatpush.xpose.msra.mxu0 0.0
        %3902 = vmatpush.xpose.msra.mxu0 0.0
        %3903 = vmatpush.xpose.msra.mxu0 0.0
        %3904 = vmatpush.xpose.msra.mxu0 0.0
        %3905 = vmatpush.xpose.msra.mxu0 0.0
        %3906 = vmatpush.xpose.msra.mxu0 0.0
        %3907 = vmatpush.xpose.msra.mxu0 %v1417
        %3908 = vmatpush.xpose.msra.mxu0 %v1289
        %3909 = vmatpush.xpose.msra.mxu0 %v1161
        %3910 = vmatpush.xpose.msra.mxu0 %v1033
        %3911 = vmatpush.xpose.msra.mxu0 %v905
        %3912 = vmatpush.xpose.msra.mxu0 %v777
        %3913 = vmatpush.xpose.msra.mxu0 %v649
        %3914 = vmatpush.xpose.msra.mxu0 %v521
        %3915 = vmatmul.f32.gmra.mxu0 %v1606
        %v3916 = vpop.f32.mrf.mxu0
        %v3917 = vadd.f32 %v3897, %v3916
        %3918 = vdwg.mxu0
        %3919 = vmatpush.xpose.msra.mxu0 0.0
        %3920 = vmatpush.xpose.msra.mxu0 0.0
        %3921 = vmatpush.xpose.msra.mxu0 0.0
        %3922 = vmatpush.xpose.msra.mxu0 0.0
        %3923 = vmatpush.xpose.msra.mxu0 0.0
        %3924 = vmatpush.xpose.msra.mxu0 0.0
        %3925 = vmatpush.xpose.msra.mxu0 0.0
        %3926 = vmatpush.xpose.msra.mxu0 0.0
        %3927 = vmatpush.xpose.msra.mxu0 %v1418
        %3928 = vmatpush.xpose.msra.mxu0 %v1290
        %3929 = vmatpush.xpose.msra.mxu0 %v1162
        %3930 = vmatpush.xpose.msra.mxu0 %v1034
        %3931 = vmatpush.xpose.msra.mxu0 %v906
        %3932 = vmatpush.xpose.msra.mxu0 %v778
        %3933 = vmatpush.xpose.msra.mxu0 %v650
        %3934 = vmatpush.xpose.msra.mxu0 %v522
        %3935 = vmatmul.f32.gmra.mxu0 %v1607
        %v3936 = vpop.f32.mrf.mxu0
        %v3937 = vadd.f32 %v3917, %v3936
        %3938 = vdwg.mxu0
        %3939 = vmatpush.xpose.msra.mxu0 0.0
        %3940 = vmatpush.xpose.msra.mxu0 0.0
        %3941 = vmatpush.xpose.msra.mxu0 0.0
        %3942 = vmatpush.xpose.msra.mxu0 0.0
        %3943 = vmatpush.xpose.msra.mxu0 0.0
        %3944 = vmatpush.xpose.msra.mxu0 0.0
        %3945 = vmatpush.xpose.msra.mxu0 0.0
        %3946 = vmatpush.xpose.msra.mxu0 0.0
        %3947 = vmatpush.xpose.msra.mxu0 %v1419
        %3948 = vmatpush.xpose.msra.mxu0 %v1291
        %3949 = vmatpush.xpose.msra.mxu0 %v1163
        %3950 = vmatpush.xpose.msra.mxu0 %v1035
        %3951 = vmatpush.xpose.msra.mxu0 %v907
        %3952 = vmatpush.xpose.msra.mxu0 %v779
        %3953 = vmatpush.xpose.msra.mxu0 %v651
        %3954 = vmatpush.xpose.msra.mxu0 %v523
        %3955 = vmatmul.f32.gmra.mxu0 %v1608
        %v3956 = vpop.f32.mrf.mxu0
        %v3957 = vadd.f32 %v3937, %v3956
        %3958 = vdwg.mxu0
        %3959 = vmatpush.xpose.msra.mxu0 0.0
        %3960 = vmatpush.xpose.msra.mxu0 0.0
        %3961 = vmatpush.xpose.msra.mxu0 0.0
        %3962 = vmatpush.xpose.msra.mxu0 0.0
        %3963 = vmatpush.xpose.msra.mxu0 0.0
        %3964 = vmatpush.xpose.msra.mxu0 0.0
        %3965 = vmatpush.xpose.msra.mxu0 0.0
        %3966 = vmatpush.xpose.msra.mxu0 0.0
        %3967 = vmatpush.xpose.msra.mxu0 %v1420
        %3968 = vmatpush.xpose.msra.mxu0 %v1292
        %3969 = vmatpush.xpose.msra.mxu0 %v1164
        %3970 = vmatpush.xpose.msra.mxu0 %v1036
        %3971 = vmatpush.xpose.msra.mxu0 %v908
        %3972 = vmatpush.xpose.msra.mxu0 %v780
        %3973 = vmatpush.xpose.msra.mxu0 %v652
        %3974 = vmatpush.xpose.msra.mxu0 %v524
        %3975 = vmatmul.f32.gmra.mxu0 %v1609
        %v3976 = vpop.f32.mrf.mxu0
        %v3977 = vadd.f32 %v3957, %v3976
        %3978 = vdwg.mxu0
        %3979 = vmatpush.xpose.msra.mxu0 0.0
        %3980 = vmatpush.xpose.msra.mxu0 0.0
        %3981 = vmatpush.xpose.msra.mxu0 0.0
        %3982 = vmatpush.xpose.msra.mxu0 0.0
        %3983 = vmatpush.xpose.msra.mxu0 0.0
        %3984 = vmatpush.xpose.msra.mxu0 0.0
        %3985 = vmatpush.xpose.msra.mxu0 0.0
        %3986 = vmatpush.xpose.msra.mxu0 0.0
        %3987 = vmatpush.xpose.msra.mxu0 %v1421
        %3988 = vmatpush.xpose.msra.mxu0 %v1293
        %3989 = vmatpush.xpose.msra.mxu0 %v1165
        %3990 = vmatpush.xpose.msra.mxu0 %v1037
        %3991 = vmatpush.xpose.msra.mxu0 %v909
        %3992 = vmatpush.xpose.msra.mxu0 %v781
        %3993 = vmatpush.xpose.msra.mxu0 %v653
        %3994 = vmatpush.xpose.msra.mxu0 %v525
        %3995 = vmatmul.f32.gmra.mxu0 %v1610
        %v3996 = vpop.f32.mrf.mxu0
        %v3997 = vadd.f32 %v3977, %v3996
        %3998 = vdwg.mxu0
        %3999 = vmatpush.xpose.msra.mxu0 0.0
        %4000 = vmatpush.xpose.msra.mxu0 0.0
        %4001 = vmatpush.xpose.msra.mxu0 0.0
        %4002 = vmatpush.xpose.msra.mxu0 0.0
        %4003 = vmatpush.xpose.msra.mxu0 0.0
        %4004 = vmatpush.xpose.msra.mxu0 0.0
        %4005 = vmatpush.xpose.msra.mxu0 0.0
        %4006 = vmatpush.xpose.msra.mxu0 0.0
        %4007 = vmatpush.xpose.msra.mxu0 %v1422
        %4008 = vmatpush.xpose.msra.mxu0 %v1294
        %4009 = vmatpush.xpose.msra.mxu0 %v1166
        %4010 = vmatpush.xpose.msra.mxu0 %v1038
        %4011 = vmatpush.xpose.msra.mxu0 %v910
        %4012 = vmatpush.xpose.msra.mxu0 %v782
        %4013 = vmatpush.xpose.msra.mxu0 %v654
        %4014 = vmatpush.xpose.msra.mxu0 %v526
        %4015 = vmatmul.f32.gmra.mxu0 %v1613
        %v4016 = vpop.f32.mrf.mxu0
        %v4017 = vadd.f32 %v3997, %v4016
        %4018 = vdwg.mxu0
        %4019 = vmatpush.xpose.msra.mxu0 0.0
        %4020 = vmatpush.xpose.msra.mxu0 0.0
        %4021 = vmatpush.xpose.msra.mxu0 0.0
        %4022 = vmatpush.xpose.msra.mxu0 0.0
        %4023 = vmatpush.xpose.msra.mxu0 0.0
        %4024 = vmatpush.xpose.msra.mxu0 0.0
        %4025 = vmatpush.xpose.msra.mxu0 0.0
        %4026 = vmatpush.xpose.msra.mxu0 0.0
        %4027 = vmatpush.xpose.msra.mxu0 %v1423
        %4028 = vmatpush.xpose.msra.mxu0 %v1295
        %4029 = vmatpush.xpose.msra.mxu0 %v1167
        %4030 = vmatpush.xpose.msra.mxu0 %v1039
        %4031 = vmatpush.xpose.msra.mxu0 %v911
        %4032 = vmatpush.xpose.msra.mxu0 %v783
        %4033 = vmatpush.xpose.msra.mxu0 %v655
        %4034 = vmatpush.xpose.msra.mxu0 %v527
        %4035 = vmatmul.f32.gmra.mxu0 %v1614
        %v4036 = vpop.f32.mrf.mxu0
        %v4037 = vadd.f32 %v4017, %v4036
        %4038 = vdwg.mxu0
        %4039 = vmatpush.xpose.msra.mxu0 0.0
        %4040 = vmatpush.xpose.msra.mxu0 0.0
        %4041 = vmatpush.xpose.msra.mxu0 0.0
        %4042 = vmatpush.xpose.msra.mxu0 0.0
        %4043 = vmatpush.xpose.msra.mxu0 0.0
        %4044 = vmatpush.xpose.msra.mxu0 0.0
        %4045 = vmatpush.xpose.msra.mxu0 0.0
        %4046 = vmatpush.xpose.msra.mxu0 0.0
        %4047 = vmatpush.xpose.msra.mxu0 %v1424
        %4048 = vmatpush.xpose.msra.mxu0 %v1296
        %4049 = vmatpush.xpose.msra.mxu0 %v1168
        %4050 = vmatpush.xpose.msra.mxu0 %v1040
        %4051 = vmatpush.xpose.msra.mxu0 %v912
        %4052 = vmatpush.xpose.msra.mxu0 %v784
        %4053 = vmatpush.xpose.msra.mxu0 %v656
        %4054 = vmatpush.xpose.msra.mxu0 %v528
        %4055 = vmatmul.f32.gmra.mxu0 %v1615
        %v4056 = vpop.f32.mrf.mxu0
        %v4057 = vadd.f32 %v4037, %v4056
        %4058 = vdwg.mxu0
        %4059 = vmatpush.xpose.msra.mxu0 0.0
        %4060 = vmatpush.xpose.msra.mxu0 0.0
        %4061 = vmatpush.xpose.msra.mxu0 0.0
        %4062 = vmatpush.xpose.msra.mxu0 0.0
        %4063 = vmatpush.xpose.msra.mxu0 0.0
        %4064 = vmatpush.xpose.msra.mxu0 0.0
        %4065 = vmatpush.xpose.msra.mxu0 0.0
        %4066 = vmatpush.xpose.msra.mxu0 0.0
        %4067 = vmatpush.xpose.msra.mxu0 %v1425
        %4068 = vmatpush.xpose.msra.mxu0 %v1297
        %4069 = vmatpush.xpose.msra.mxu0 %v1169
        %4070 = vmatpush.xpose.msra.mxu0 %v1041
        %4071 = vmatpush.xpose.msra.mxu0 %v913
        %4072 = vmatpush.xpose.msra.mxu0 %v785
        %4073 = vmatpush.xpose.msra.mxu0 %v657
        %4074 = vmatpush.xpose.msra.mxu0 %v529
        %4075 = vmatmul.f32.gmra.mxu0 %v1616
        %v4076 = vpop.f32.mrf.mxu0
        %v4077 = vadd.f32 %v4057, %v4076
        %4078 = vdwg.mxu0
        %4079 = vmatpush.xpose.msra.mxu0 0.0
        %4080 = vmatpush.xpose.msra.mxu0 0.0
        %4081 = vmatpush.xpose.msra.mxu0 0.0
        %4082 = vmatpush.xpose.msra.mxu0 0.0
        %4083 = vmatpush.xpose.msra.mxu0 0.0
        %4084 = vmatpush.xpose.msra.mxu0 0.0
        %4085 = vmatpush.xpose.msra.mxu0 0.0
        %4086 = vmatpush.xpose.msra.mxu0 0.0
        %4087 = vmatpush.xpose.msra.mxu0 %v1426
        %4088 = vmatpush.xpose.msra.mxu0 %v1298
        %4089 = vmatpush.xpose.msra.mxu0 %v1170
        %4090 = vmatpush.xpose.msra.mxu0 %v1042
        %4091 = vmatpush.xpose.msra.mxu0 %v914
        %4092 = vmatpush.xpose.msra.mxu0 %v786
        %4093 = vmatpush.xpose.msra.mxu0 %v658
        %4094 = vmatpush.xpose.msra.mxu0 %v530
        %4095 = vmatmul.f32.gmra.mxu0 %v1617
        %v4096 = vpop.f32.mrf.mxu0
        %v4097 = vadd.f32 %v4077, %v4096
        %4098 = vdwg.mxu0
        %4099 = vmatpush.xpose.msra.mxu0 0.0
        %4100 = vmatpush.xpose.msra.mxu0 0.0
        %4101 = vmatpush.xpose.msra.mxu0 0.0
        %4102 = vmatpush.xpose.msra.mxu0 0.0
        %4103 = vmatpush.xpose.msra.mxu0 0.0
        %4104 = vmatpush.xpose.msra.mxu0 0.0
        %4105 = vmatpush.xpose.msra.mxu0 0.0
        %4106 = vmatpush.xpose.msra.mxu0 0.0
        %4107 = vmatpush.xpose.msra.mxu0 %v1427
        %4108 = vmatpush.xpose.msra.mxu0 %v1299
        %4109 = vmatpush.xpose.msra.mxu0 %v1171
        %4110 = vmatpush.xpose.msra.mxu0 %v1043
        %4111 = vmatpush.xpose.msra.mxu0 %v915
        %4112 = vmatpush.xpose.msra.mxu0 %v787
        %4113 = vmatpush.xpose.msra.mxu0 %v659
        %4114 = vmatpush.xpose.msra.mxu0 %v531
        %4115 = vmatmul.f32.gmra.mxu0 %v1618
        %v4116 = vpop.f32.mrf.mxu0
        %v4117 = vadd.f32 %v4097, %v4116
        %4118 = vdwg.mxu0
        %4119 = vmatpush.xpose.msra.mxu0 0.0
        %4120 = vmatpush.xpose.msra.mxu0 0.0
        %4121 = vmatpush.xpose.msra.mxu0 0.0
        %4122 = vmatpush.xpose.msra.mxu0 0.0
        %4123 = vmatpush.xpose.msra.mxu0 0.0
        %4124 = vmatpush.xpose.msra.mxu0 0.0
        %4125 = vmatpush.xpose.msra.mxu0 0.0
        %4126 = vmatpush.xpose.msra.mxu0 0.0
        %4127 = vmatpush.xpose.msra.mxu0 %v1428
        %4128 = vmatpush.xpose.msra.mxu0 %v1300
        %4129 = vmatpush.xpose.msra.mxu0 %v1172
        %4130 = vmatpush.xpose.msra.mxu0 %v1044
        %4131 = vmatpush.xpose.msra.mxu0 %v916
        %4132 = vmatpush.xpose.msra.mxu0 %v788
        %4133 = vmatpush.xpose.msra.mxu0 %v660
        %4134 = vmatpush.xpose.msra.mxu0 %v532
        %4135 = vmatmul.f32.gmra.mxu0 %v1619
        %v4136 = vpop.f32.mrf.mxu0
        %v4137 = vadd.f32 %v4117, %v4136
        %4138 = vdwg.mxu0
        %4139 = vmatpush.xpose.msra.mxu0 0.0
        %4140 = vmatpush.xpose.msra.mxu0 0.0
        %4141 = vmatpush.xpose.msra.mxu0 0.0
        %4142 = vmatpush.xpose.msra.mxu0 0.0
        %4143 = vmatpush.xpose.msra.mxu0 0.0
        %4144 = vmatpush.xpose.msra.mxu0 0.0
        %4145 = vmatpush.xpose.msra.mxu0 0.0
        %4146 = vmatpush.xpose.msra.mxu0 0.0
        %4147 = vmatpush.xpose.msra.mxu0 %v1429
        %4148 = vmatpush.xpose.msra.mxu0 %v1301
        %4149 = vmatpush.xpose.msra.mxu0 %v1173
        %4150 = vmatpush.xpose.msra.mxu0 %v1045
        %4151 = vmatpush.xpose.msra.mxu0 %v917
        %4152 = vmatpush.xpose.msra.mxu0 %v789
        %4153 = vmatpush.xpose.msra.mxu0 %v661
        %4154 = vmatpush.xpose.msra.mxu0 %v533
        %4155 = vmatmul.f32.gmra.mxu0 %v1620
        %v4156 = vpop.f32.mrf.mxu0
        %v4157 = vadd.f32 %v4137, %v4156
        %4158 = vdwg.mxu0
        %4159 = vmatpush.xpose.msra.mxu0 0.0
        %4160 = vmatpush.xpose.msra.mxu0 0.0
        %4161 = vmatpush.xpose.msra.mxu0 0.0
        %4162 = vmatpush.xpose.msra.mxu0 0.0
        %4163 = vmatpush.xpose.msra.mxu0 0.0
        %4164 = vmatpush.xpose.msra.mxu0 0.0
        %4165 = vmatpush.xpose.msra.mxu0 0.0
        %4166 = vmatpush.xpose.msra.mxu0 0.0
        %4167 = vmatpush.xpose.msra.mxu0 %v1430
        %4168 = vmatpush.xpose.msra.mxu0 %v1302
        %4169 = vmatpush.xpose.msra.mxu0 %v1174
        %4170 = vmatpush.xpose.msra.mxu0 %v1046
        %4171 = vmatpush.xpose.msra.mxu0 %v918
        %4172 = vmatpush.xpose.msra.mxu0 %v790
        %4173 = vmatpush.xpose.msra.mxu0 %v662
        %4174 = vmatpush.xpose.msra.mxu0 %v534
        %4175 = vmatmul.f32.gmra.mxu0 %v1623
        %v4176 = vpop.f32.mrf.mxu0
        %v4177 = vadd.f32 %v4157, %v4176
        %4178 = vdwg.mxu0
        %4179 = vmatpush.xpose.msra.mxu0 0.0
        %4180 = vmatpush.xpose.msra.mxu0 0.0
        %4181 = vmatpush.xpose.msra.mxu0 0.0
        %4182 = vmatpush.xpose.msra.mxu0 0.0
        %4183 = vmatpush.xpose.msra.mxu0 0.0
        %4184 = vmatpush.xpose.msra.mxu0 0.0
        %4185 = vmatpush.xpose.msra.mxu0 0.0
        %4186 = vmatpush.xpose.msra.mxu0 0.0
        %4187 = vmatpush.xpose.msra.mxu0 %v1431
        %4188 = vmatpush.xpose.msra.mxu0 %v1303
        %4189 = vmatpush.xpose.msra.mxu0 %v1175
        %4190 = vmatpush.xpose.msra.mxu0 %v1047
        %4191 = vmatpush.xpose.msra.mxu0 %v919
        %4192 = vmatpush.xpose.msra.mxu0 %v791
        %4193 = vmatpush.xpose.msra.mxu0 %v663
        %4194 = vmatpush.xpose.msra.mxu0 %v535
        %4195 = vmatmul.f32.gmra.mxu0 %v1624
        %v4196 = vpop.f32.mrf.mxu0
        %v4197 = vadd.f32 %v4177, %v4196
        %4198 = vdwg.mxu0
        %4199 = vmatpush.xpose.msra.mxu0 0.0
        %4200 = vmatpush.xpose.msra.mxu0 0.0
        %4201 = vmatpush.xpose.msra.mxu0 0.0
        %4202 = vmatpush.xpose.msra.mxu0 0.0
        %4203 = vmatpush.xpose.msra.mxu0 0.0
        %4204 = vmatpush.xpose.msra.mxu0 0.0
        %4205 = vmatpush.xpose.msra.mxu0 0.0
        %4206 = vmatpush.xpose.msra.mxu0 0.0
        %4207 = vmatpush.xpose.msra.mxu0 %v1432
        %4208 = vmatpush.xpose.msra.mxu0 %v1304
        %4209 = vmatpush.xpose.msra.mxu0 %v1176
        %4210 = vmatpush.xpose.msra.mxu0 %v1048
        %4211 = vmatpush.xpose.msra.mxu0 %v920
        %4212 = vmatpush.xpose.msra.mxu0 %v792
        %4213 = vmatpush.xpose.msra.mxu0 %v664
        %4214 = vmatpush.xpose.msra.mxu0 %v536
        %4215 = vmatmul.f32.gmra.mxu0 %v1625
        %v4216 = vpop.f32.mrf.mxu0
        %v4217 = vadd.f32 %v4197, %v4216
        %4218 = vdwg.mxu0
        %4219 = vmatpush.xpose.msra.mxu0 0.0
        %4220 = vmatpush.xpose.msra.mxu0 0.0
        %4221 = vmatpush.xpose.msra.mxu0 0.0
        %4222 = vmatpush.xpose.msra.mxu0 0.0
        %4223 = vmatpush.xpose.msra.mxu0 0.0
        %4224 = vmatpush.xpose.msra.mxu0 0.0
        %4225 = vmatpush.xpose.msra.mxu0 0.0
        %4226 = vmatpush.xpose.msra.mxu0 0.0
        %4227 = vmatpush.xpose.msra.mxu0 %v1433
        %4228 = vmatpush.xpose.msra.mxu0 %v1305
        %4229 = vmatpush.xpose.msra.mxu0 %v1177
        %4230 = vmatpush.xpose.msra.mxu0 %v1049
        %4231 = vmatpush.xpose.msra.mxu0 %v921
        %4232 = vmatpush.xpose.msra.mxu0 %v793
        %4233 = vmatpush.xpose.msra.mxu0 %v665
        %4234 = vmatpush.xpose.msra.mxu0 %v537
        %4235 = vmatmul.f32.gmra.mxu0 %v1626
        %v4236 = vpop.f32.mrf.mxu0
        %v4237 = vadd.f32 %v4217, %v4236
        %4238 = vdwg.mxu0
        %4239 = vmatpush.xpose.msra.mxu0 0.0
        %4240 = vmatpush.xpose.msra.mxu0 0.0
        %4241 = vmatpush.xpose.msra.mxu0 0.0
        %4242 = vmatpush.xpose.msra.mxu0 0.0
        %4243 = vmatpush.xpose.msra.mxu0 0.0
        %4244 = vmatpush.xpose.msra.mxu0 0.0
        %4245 = vmatpush.xpose.msra.mxu0 0.0
        %4246 = vmatpush.xpose.msra.mxu0 0.0
        %4247 = vmatpush.xpose.msra.mxu0 %v1434
        %4248 = vmatpush.xpose.msra.mxu0 %v1306
        %4249 = vmatpush.xpose.msra.mxu0 %v1178
        %4250 = vmatpush.xpose.msra.mxu0 %v1050
        %4251 = vmatpush.xpose.msra.mxu0 %v922
        %4252 = vmatpush.xpose.msra.mxu0 %v794
        %4253 = vmatpush.xpose.msra.mxu0 %v666
        %4254 = vmatpush.xpose.msra.mxu0 %v538
        %4255 = vmatmul.f32.gmra.mxu0 %v1627
        %v4256 = vpop.f32.mrf.mxu0
        %v4257 = vadd.f32 %v4237, %v4256
        %4258 = vdwg.mxu0
        %4259 = vmatpush.xpose.msra.mxu0 0.0
        %4260 = vmatpush.xpose.msra.mxu0 0.0
        %4261 = vmatpush.xpose.msra.mxu0 0.0
        %4262 = vmatpush.xpose.msra.mxu0 0.0
        %4263 = vmatpush.xpose.msra.mxu0 0.0
        %4264 = vmatpush.xpose.msra.mxu0 0.0
        %4265 = vmatpush.xpose.msra.mxu0 0.0
        %4266 = vmatpush.xpose.msra.mxu0 0.0
        %4267 = vmatpush.xpose.msra.mxu0 %v1435
        %4268 = vmatpush.xpose.msra.mxu0 %v1307
        %4269 = vmatpush.xpose.msra.mxu0 %v1179
        %4270 = vmatpush.xpose.msra.mxu0 %v1051
        %4271 = vmatpush.xpose.msra.mxu0 %v923
        %4272 = vmatpush.xpose.msra.mxu0 %v795
        %4273 = vmatpush.xpose.msra.mxu0 %v667
        %4274 = vmatpush.xpose.msra.mxu0 %v539
        %4275 = vmatmul.f32.gmra.mxu0 %v1628
        %v4276 = vpop.f32.mrf.mxu0
        %v4277 = vadd.f32 %v4257, %v4276
        %4278 = vdwg.mxu0
        %4279 = vmatpush.xpose.msra.mxu0 0.0
        %4280 = vmatpush.xpose.msra.mxu0 0.0
        %4281 = vmatpush.xpose.msra.mxu0 0.0
        %4282 = vmatpush.xpose.msra.mxu0 0.0
        %4283 = vmatpush.xpose.msra.mxu0 0.0
        %4284 = vmatpush.xpose.msra.mxu0 0.0
        %4285 = vmatpush.xpose.msra.mxu0 0.0
        %4286 = vmatpush.xpose.msra.mxu0 0.0
        %4287 = vmatpush.xpose.msra.mxu0 %v1436
        %4288 = vmatpush.xpose.msra.mxu0 %v1308
        %4289 = vmatpush.xpose.msra.mxu0 %v1180
        %4290 = vmatpush.xpose.msra.mxu0 %v1052
        %4291 = vmatpush.xpose.msra.mxu0 %v924
        %4292 = vmatpush.xpose.msra.mxu0 %v796
        %4293 = vmatpush.xpose.msra.mxu0 %v668
        %4294 = vmatpush.xpose.msra.mxu0 %v540
        %4295 = vmatmul.f32.gmra.mxu0 %v1629
        %v4296 = vpop.f32.mrf.mxu0
        %v4297 = vadd.f32 %v4277, %v4296
        %4298 = vdwg.mxu0
        %4299 = vmatpush.xpose.msra.mxu0 0.0
        %4300 = vmatpush.xpose.msra.mxu0 0.0
        %4301 = vmatpush.xpose.msra.mxu0 0.0
        %4302 = vmatpush.xpose.msra.mxu0 0.0
        %4303 = vmatpush.xpose.msra.mxu0 0.0
        %4304 = vmatpush.xpose.msra.mxu0 0.0
        %4305 = vmatpush.xpose.msra.mxu0 0.0
        %4306 = vmatpush.xpose.msra.mxu0 0.0
        %4307 = vmatpush.xpose.msra.mxu0 %v1437
        %4308 = vmatpush.xpose.msra.mxu0 %v1309
        %4309 = vmatpush.xpose.msra.mxu0 %v1181
        %4310 = vmatpush.xpose.msra.mxu0 %v1053
        %4311 = vmatpush.xpose.msra.mxu0 %v925
        %4312 = vmatpush.xpose.msra.mxu0 %v797
        %4313 = vmatpush.xpose.msra.mxu0 %v669
        %4314 = vmatpush.xpose.msra.mxu0 %v541
        %4315 = vmatmul.f32.gmra.mxu0 %v1630
        %v4316 = vpop.f32.mrf.mxu0
        %v4317 = vadd.f32 %v4297, %v4316
        %4318 = vdwg.mxu0
        %v4319 = vadd.f32 %v381, %v4317
        %vm4320 = vcmask 517120
        %4321 = vst.msk [vmem:[#allocation2] sm:$0x3] %vm4320, %v4319
        %p4322 = scmp.eq.s32.totalorder %s27, 3
        // Predicated region
        $region73: #{tpu_custom_call.1} parent=47 // pred_check
          %p4323 = pneg %p4322
        $region74: #{tpu_custom_call.1} parent=47 // pred_check_branch
          %4325 = sbr.rel (%p4323) target = $region76
        $region75: #{tpu_custom_call.1} parent=47 // pred_region
          %v4326 = vld [vmem:[#allocation2] sm:$0x3]
          %v4327 = vld [vmem:[#allocation8] sm:$0x1]
          %v4328 = vld [vmem:[#allocation9] sm:$0xff]
          %v4329 = vld [vmem:[#allocation9 + $0x8] sm:$0xff]
          %v4330 = vld [vmem:[#allocation9 + $0x10] sm:$0xff]
          %v4331 = vld [vmem:[#allocation9 + $0x18] sm:$0xff]
          %v4332 = vld [vmem:[#allocation9 + $0x20] sm:$0xff]
          %v4333 = vld [vmem:[#allocation9 + $0x28] sm:$0xff]
          %v4334 = vld [vmem:[#allocation9 + $0x30] sm:$0xff]
          %v4335 = vld [vmem:[#allocation9 + $0x38] sm:$0xff]
          %v4336 = vld [vmem:[#allocation11] sm:$0x1]
          %v4337 = vld [vmem:[%s5] sm:$0xff]
          %v4338 = vld [vmem:[%s5 + $0x8] sm:$0xff]
          %v4339 = vld [vmem:[%s5 + $0x10] sm:$0xff]
          %v4340 = vld [vmem:[%s5 + $0x18] sm:$0xff]
          %v4341 = vld [vmem:[%s5 + $0x20] sm:$0xff]
          %v4342 = vld [vmem:[%s5 + $0x28] sm:$0xff]
          %v4343 = vld [vmem:[%s5 + $0x30] sm:$0xff]
          %v4344 = vld [vmem:[%s5 + $0x38] sm:$0xff]
          %v4345 = vld [vmem:[#allocation3] sm:$0x1]
          %v4347 = vperm.slane %v4327, 0
          %v4349 = vadd.f32 %v4326, %v4347
          %v4350 = vmax.f32 %v4349, 0.0
          %v4352 = vperm.slane %v4336, 0
          %vm4354 = vcmask 523264
          %v4356 = vsel %vm4354, %v4350, 0
          %4358 = vmatpush.msra.mxu0 0.0
          %4359 = vmatpush.msra.mxu0 0.0
          %4360 = vmatpush.msra.mxu0 0.0
          %4361 = vmatpush.msra.mxu0 0.0
          %4362 = vmatpush.msra.mxu0 0.0
          %4363 = vmatpush.msra.mxu0 0.0
          %4364 = vmatpush.msra.mxu0 0.0
          %4365 = vmatpush.msra.mxu0 0.0
          %4366 = vmatpush.msra.mxu0 %v4335
          %4367 = vmatpush.msra.mxu0 %v4334
          %4368 = vmatpush.msra.mxu0 %v4333
          %4369 = vmatpush.msra.mxu0 %v4332
          %4370 = vmatpush.msra.mxu0 %v4331
          %4371 = vmatpush.msra.mxu0 %v4330
          %4372 = vmatpush.msra.mxu0 %v4329
          %4373 = vmatpush.msra.mxu0 %v4328
          %4374 = vmatmul.f32.gmra.mxu0 %v4356
          %v4375 = vpop.f32.mrf.mxu0
          %v4376 = vadd.f32 %v4352, %v4375
          %4377 = vdwg.mxu0
          %v4378 = vmax.f32 %v4376, 0.0
          %v4379 = vadd.f32 %v4378, %v4350
          %v4381 = vperm.slane %v4345, 0
          %v4384 = vsel %vm4354, %v4379, 0
          %4386 = vmatpush.msra.mxu0 0.0
          %4387 = vmatpush.msra.mxu0 0.0
          %4388 = vmatpush.msra.mxu0 0.0
          %4389 = vmatpush.msra.mxu0 0.0
          %4390 = vmatpush.msra.mxu0 0.0
          %4391 = vmatpush.msra.mxu0 0.0
          %4392 = vmatpush.msra.mxu0 0.0
          %4393 = vmatpush.msra.mxu0 0.0
          %4394 = vmatpush.msra.mxu0 %v4344
          %4395 = vmatpush.msra.mxu0 %v4343
          %4396 = vmatpush.msra.mxu0 %v4342
          %4397 = vmatpush.msra.mxu0 %v4341
          %4398 = vmatpush.msra.mxu0 %v4340
          %4399 = vmatpush.msra.mxu0 %v4339
          %4400 = vmatpush.msra.mxu0 %v4338
          %4401 = vmatpush.msra.mxu0 %v4337
          %4402 = vmatmul.f32.gmra.mxu0 %v4384
          %v4403 = vpop.f32.mrf.mxu0
          %v4404 = vadd.f32 %v4381, %v4403
          %4405 = vdwg.mxu0
          %vm4406 = vcmask 1024
          %4407 = vst.msk [vmem:[%s7] sm:$0x3] %vm4406, %v4404
        $region76: #{tpu_custom_call.1} parent=47 // pred_fallthru
          _
        // Predicated region
        $region77: #{tpu_custom_call.1} parent=47 // pred_check
          %p4408 = pneg %p197
        $region78: #{tpu_custom_call.1} parent=47 // pred_check_branch
          %4410 = sbr.rel (%p4408) target = $region80
        $region79: #{tpu_custom_call.1} parent=47 // pred_region
          _
        $region80: #{tpu_custom_call.1} parent=47 // pred_fallthru
          _
        // Predicated region
        $region81: #{tpu_custom_call.1} parent=47 // pred_check
          %p4411 = pneg %p197
        $region82: #{tpu_custom_call.1} parent=47 // pred_check_branch
          %4413 = sbr.rel (%p4411) target = $region84
        $region83: #{tpu_custom_call.1} parent=47 // pred_region
          _
        $region84: #{tpu_custom_call.1} parent=47 // pred_fallthru
          _
      $region48: #{tpu_custom_call.1} parent=5 // pred_fallthru
        _
      %p4414 = scmp.le.s32.totalorder 2, %s22
      // Predicated region
      $region85: #{tpu_custom_call.1} parent=5 // pred_check
        %p4415 = pneg %p4414
      $region86: #{tpu_custom_call.1} parent=5 // pred_check_branch
        %4417 = sbr.rel (%p4415) target = $region88
      $region87: #{tpu_custom_call.1} parent=5 // pred_region
        %s4418 = ssub.s32 %s22, 2
      $region88: #{tpu_custom_call.1} parent=5 // pred_fallthru
        _
    $region6: #{tpu_custom_call.1} parent=1 // loop_footer
      %s26 = sadd.s32 1, %s22
    $region7: #{tpu_custom_call.1} parent=1 // loop_footer_branch
      %21 = sbr.rel target = $region3
    $region8: #{tpu_custom_call.1} parent=1 // loop_exit
      _
    %4419 = vsyncpa [#allocation5], 1
    %s4420 = scalar_lea.sflag [#allocation5], 1
    %4421 = vsyncpa %s4420, 1
    %4422 = vsyncpa [#allocation7], 1
    %s4423 = scalar_lea.sflag [#allocation7], 1
    %4424 = vsyncpa %s4423, 1
    %4425 = vsyncpa [#allocation10], 1

</llo_original>
